<compile_context>
chip_gen: v7x
topology: tpu7x:2x2x1
jax: 0.10.0
libtpu: 0.0.40
codegen_flags: <defaults>
</compile_context>

<pallas_src>
import numpy as np

import jax
import jax.numpy as jnp
from jax.experimental import pallas as pl
from jax.experimental.pallas import tpu as pltpu


# --------------------------------------------------------------------------
# Fused kernel: whole LeNet forward for one batch tile, entirely in VMEM.
# --------------------------------------------------------------------------

def _lenet_kernel(x_ref, t1_ref, cb1_ref, t2_ref, cb2_ref,
                  w1_ref, b1_ref, w2_ref, b2_ref, w3_ref, b3_ref,
                  out_ref, p1_sc, p2_sc):
    """Refs:
      x_ref  : (BT, 1024)  zero-padded 32x32 images, row-major flattened
      t1_ref : (192, 336)  conv1 packed as pooled width-Toeplitz GEMM
      t2_ref : (504, 320)  conv2 packed the same way (6 rows x 6 ch x 14 w)
      cb*    : (1, 84)/(1, 80) packed conv biases
      w*/b*  : FC weights/biases, outputs padded to 128 lanes
      out_ref: (BT, 128)   logits padded to 128 lanes (cols 10.. are zero)
      p1_sc  : (BT, 14*84) pooled conv1 activations, lane = ci*14 + w
      p2_sc  : (BT, 5*80)  pooled conv2 activations, lane = r*80 + co*5 + w
    """
    t1 = t1_ref[...]
    cb1 = cb1_ref[...]
    # conv1 (5x5, pad 2) + bias + ReLU + 2x2 max-pool, one pooled row at a time.
    # Columns of t1: [h_par, w_par, c_out, pooled_w] -> 4 contiguous 84-lane
    # blocks holding the four corners of every 2x2 pooling window.
    for r in range(14):
        rows6 = x_ref[:, pl.ds(2 * r * 32, 6 * 32)]                    # (BT, 192)
        y = jnp.dot(rows6, t1, preferred_element_type=jnp.float32)     # (BT, 336)
        m = jnp.maximum(jnp.maximum(y[:, 0:84], y[:, 84:168]),
                        jnp.maximum(y[:, 168:252], y[:, 252:336]))
        p1_sc[:, pl.ds(r * 84, 84)] = jnp.maximum(m + cb1, 0.0)

    t2 = t2_ref[...]
    cb2 = cb2_ref[...]
    # conv2 (5x5, valid) + bias + ReLU + 2x2 max-pool.
    for r in range(5):
        rows6 = p1_sc[:, pl.ds(2 * r * 84, 6 * 84)]                    # (BT, 504)
        y = jnp.dot(rows6, t2, preferred_element_type=jnp.float32)     # (BT, 320)
        m = jnp.maximum(jnp.maximum(y[:, 0:80], y[:, 80:160]),
                        jnp.maximum(y[:, 160:240], y[:, 240:320]))
        p2_sc[:, pl.ds(r * 80, 80)] = jnp.maximum(m + cb2, 0.0)

    # FC stack; every output is 128 lanes wide so loads/stores are lane-dense.
    feat = p2_sc[...]                                                  # (BT, 400)
    h = jnp.dot(feat, w1_ref[...], preferred_element_type=jnp.float32) + b1_ref[...]
    h = jnp.maximum(h, 0.0)
    h = jnp.dot(h, w2_ref[...], preferred_element_type=jnp.float32) + b2_ref[...]
    h = jnp.maximum(h, 0.0)
    out = jnp.dot(h, w3_ref[...], preferred_element_type=jnp.float32) + b3_ref[...]
    out_ref[...] = out.astype(out_ref.dtype)


# --------------------------------------------------------------------------
# One-time weight packing (host side, outside the traced forward).
# --------------------------------------------------------------------------

def _pack_pooled_conv(w, b, in_w):
    """Pack a 5x5 conv + fused 2x2 max-pool as a width-Toeplitz GEMM.

    Input slab layout (lhs lanes):  q = h_local*Cin*in_w + ci*in_w + w,
      h_local in [0,6) = 6 consecutive input rows (one pooled output row).
    Output layout (rhs columns):    n = hpar*2*Cout*OWh + wpar*Cout*OWh
                                        + co*OWh + j      (OWh = out_w // 2)
    so  lhs @ T  yields all 4 pooling corners of pooled row r as 4 contiguous
    lane blocks; the kernel takes their elementwise max.
    """
    w = np.asarray(w, np.float32)
    b = np.asarray(b, np.float32)
    co_n, ci_n, kh, kw = w.shape                       # 5x5 kernels
    out_w = in_w - kw + 1
    ow_half = out_w // 2
    K = (kh + 1) * ci_n * in_w
    N = 4 * co_n * ow_half
    T = np.zeros((K, N), np.float32)
    for hpar in range(2):
        for wpar in range(2):
            nbase = (hpar * 2 + wpar) * co_n * ow_half
            for ki in range(kh):
                h_local = hpar + ki
                for kj in range(kw):
                    for j in range(ow_half):
                        wcol = 2 * j + wpar + kj
                        for ci in range(ci_n):
                            row = h_local * ci_n * in_w + ci * in_w + wcol
                            for co in range(co_n):
                                T[row, nbase + co * ow_half + j] = w[co, ci, ki, kj]
    cb = np.repeat(b, ow_half)[None, :]                # (1, Cout*OWh)
    return T, cb


def _pack_fc(w, b, k_pad, n_pad, perm=None):
    """PyTorch (out,in) Linear -> (k_pad, n_pad) GEMM operand + (1, n_pad) bias."""
    w = np.asarray(w, np.float32)
    b = np.asarray(b, np.float32)
    out_f, in_f = w.shape
    wt = w.T
    if perm is not None:
        wt = wt[perm, :]
    wp = np.zeros((k_pad, n_pad), np.float32)
    wp[:in_f, :out_f] = wt
    bp = np.zeros((1, n_pad), np.float32)
    bp[0, :out_f] = b
    return wp, bp


def pack_params(params):
    t1, cb1 = _pack_pooled_conv(params["conv1_w"], params["conv1_b"], in_w=32)
    t2, cb2 = _pack_pooled_conv(params["conv2_w"], params["conv2_b"], in_w=14)
    # Our pooled-conv2 feature order is g = r*80 + co*5 + j; PyTorch's flatten
    # of (16,5,5) is f = co*25 + r*5 + j.  Fold the permutation into fc1.
    g = np.arange(400)
    r, rem = g // 80, g % 80
    co, j = rem // 5, rem % 5
    perm = co * 25 + r * 5 + j
    w1, b1 = _pack_fc(params["fc1_w"], params["fc1_b"], 400, 128, perm)
    w2, b2 = _pack_fc(params["fc2_w"], params["fc2_b"], 128, 128)
    w3, b3 = _pack_fc(params["fc3_w"], params["fc3_b"], 128, 128)
    packed = dict(t1=t1, cb1=cb1, t2=t2, cb2=cb2,
                  w1=w1, b1=b1, w2=w2, b2=b2, w3=w3, b3=b3)
    return {k: jnp.asarray(v) for k, v in packed.items()}


# --------------------------------------------------------------------------
# Forward wrapper: single pallas_call, grid tiled over the batch.
# --------------------------------------------------------------------------

def lenet_forward(packed, x_nchw):
    """x_nchw: (B, 1, 28, 28) float32 -> logits (B, 10) float32."""
    B = x_nchw.shape[0]
    x = x_nchw.astype(jnp.float32).reshape(B, 28, 28)
    x = jnp.pad(x, ((0, 0), (2, 2), (2, 2)))               # conv1 padding=2
    x = x.reshape(B, 32 * 32)

    bt = 128 if B >= 128 else ((B + 7) // 8) * 8            # batch tile (MXU rows)
    bp = ((B + bt - 1) // bt) * bt
    if bp != B:
        x = jnp.pad(x, ((0, bp - B), (0, 0)))

    const = lambda i: (0, 0)                                 # weights: VMEM-resident
    out = pl.pallas_call(
        _lenet_kernel,
        out_shape=jax.ShapeDtypeStruct((bp, 128), jnp.float32),
        grid_spec=pltpu.PrefetchScalarGridSpec(
            num_scalar_prefetch=0,
            grid=(bp // bt,),
            in_specs=[
                pl.BlockSpec((bt, 1024), lambda i: (i, 0)),  # images
                pl.BlockSpec((192, 336), const),             # conv1 Toeplitz
                pl.BlockSpec((1, 84), const),                # conv1 bias
                pl.BlockSpec((504, 320), const),             # conv2 Toeplitz
                pl.BlockSpec((1, 80), const),                # conv2 bias
                pl.BlockSpec((400, 128), const),             # fc1
                pl.BlockSpec((1, 128), const),
                pl.BlockSpec((128, 128), const),             # fc2
                pl.BlockSpec((1, 128), const),
                pl.BlockSpec((128, 128), const),             # fc3
                pl.BlockSpec((1, 128), const),
            ],
            out_specs=pl.BlockSpec((bt, 128), lambda i: (i, 0)),
            scratch_shapes=[
                pltpu.VMEM((bt, 14 * 84), jnp.float32),      # pooled conv1
                pltpu.VMEM((bt, 5 * 80), jnp.float32),       # pooled conv2
            ],
        ),
        compiler_params=pltpu.CompilerParams(
            dimension_semantics=("parallel",)),              # 2 TCs on v7x
    )(x, packed["t1"], packed["cb1"], packed["t2"], packed["cb2"],
      packed["w1"], packed["b1"], packed["w2"], packed["b2"],
      packed["w3"], packed["b3"])
    return out[:B, :10]


# --------------------------------------------------------------------------
# Parameters + pure-JAX reference (validation only).
# --------------------------------------------------------------------------

def init_params(key):
    def uni(k, shape, fan_in):
        bound = 1.0 / (fan_in ** 0.5)
        return jax.random.uniform(k, shape, jnp.float32, -bound, bound)

    ks = jax.random.split(key, 10)
    return {
        "conv1_w": uni(ks[0], (6, 1, 5, 5), 1 * 5 * 5),
        "conv1_b": uni(ks[1], (6,), 1 * 5 * 5),
        "conv2_w": uni(ks[2], (16, 6, 5, 5), 6 * 5 * 5),
        "conv2_b": uni(ks[3], (16,), 6 * 5 * 5),
        "fc1_w": uni(ks[4], (120, 400), 400),
        "fc1_b": uni(ks[5], (120,), 400),
        "fc2_w": uni(ks[6], (84, 120), 120),
        "fc2_b": uni(ks[7], (84,), 120),
        "fc3_w": uni(ks[8], (10, 84), 84),
        "fc3_b": uni(ks[9], (10,), 84),
    }


def lenet_reference(params, x):
    dn = ("NCHW", "OIHW", "NCHW")
    hp = jax.lax.Precision.HIGHEST
    y = jax.lax.conv_general_dilated(x, params["conv1_w"], (1, 1),
                                     ((2, 2), (2, 2)), dimension_numbers=dn,
                                     precision=hp)
    y = jax.nn.relu(y + params["conv1_b"][None, :, None, None])
    y = jax.lax.reduce_window(y, -jnp.inf, jax.lax.max,
                              (1, 1, 2, 2), (1, 1, 2, 2), "VALID")
    y = jax.lax.conv_general_dilated(y, params["conv2_w"], (1, 1),
                                     ((0, 0), (0, 0)), dimension_numbers=dn,
                                     precision=hp)
    y = jax.nn.relu(y + params["conv2_b"][None, :, None, None])
    y = jax.lax.reduce_window(y, -jnp.inf, jax.lax.max,
                              (1, 1, 2, 2), (1, 1, 2, 2), "VALID")
    f = y.reshape(y.shape[0], -1)
    f = jax.nn.relu(f @ params["fc1_w"].T + params["fc1_b"])
    f = jax.nn.relu(f @ params["fc2_w"].T + params["fc2_b"])
    return f @ params["fc3_w"].T + params["fc3_b"]


if __name__ == "__main__":
    key = jax.random.PRNGKey(0)
    k_param, k_x = jax.random.split(key)
    params = init_params(k_param)
    packed = pack_params(params)                 # one-time weight repacking
    x = jax.random.normal(k_x, (2, 1, 28, 28), dtype=jnp.float32)

    fwd = jax.jit(lenet_forward)
    out = jax.block_until_ready(fwd(packed, x))

    assert out.shape == (2, 10), out.shape
    assert out.dtype == jnp.float32
    assert bool(jnp.all(jnp.isfinite(out)))

    ref = jax.block_until_ready(lenet_reference(params, x))
    max_err = float(jnp.max(jnp.abs(out - ref)))
    assert max_err < 3e-2, f"mismatch vs reference: {max_err}"

    print("KERNEL_OK")
</pallas_src>

<mosaic_0001>
module attributes {stable_mosaic.version = 11 : i64} {
  func.func @_lenet_kernel(%arg0: i32, %arg1: memref<8x1024xf32, #tpu.memory_space<vmem>>, %arg2: memref<192x336xf32, #tpu.memory_space<vmem>>, %arg3: memref<1x84xf32, #tpu.memory_space<vmem>>, %arg4: memref<504x320xf32, #tpu.memory_space<vmem>>, %arg5: memref<1x80xf32, #tpu.memory_space<vmem>>, %arg6: memref<400x128xf32, #tpu.memory_space<vmem>>, %arg7: memref<1x128xf32, #tpu.memory_space<vmem>>, %arg8: memref<128x128xf32, #tpu.memory_space<vmem>>, %arg9: memref<1x128xf32, #tpu.memory_space<vmem>>, %arg10: memref<128x128xf32, #tpu.memory_space<vmem>>, %arg11: memref<1x128xf32, #tpu.memory_space<vmem>>, %arg12: memref<8x128xf32, #tpu.memory_space<vmem>>, %arg13: memref<8x1176xf32, #tpu.memory_space<vmem>>, %arg14: memref<8x400xf32, #tpu.memory_space<vmem>>) attributes {dimension_semantics = [#tpu.dimension_semantics<parallel>], iteration_bounds = array<i64: 1>, scalar_prefetch = 0 : i64, scratch_operands = 2 : i64, tpu.core_type = #tpu.core_type<tc>, window_params = [{transform_indices = @transform_0, window_bounds = array<i64: 8, 1024>}, {pipeline_mode = #tpu.pipeline_mode<synchronous>, transform_indices = @transform_1, window_bounds = array<i64: 192, 336>}, {pipeline_mode = #tpu.pipeline_mode<synchronous>, transform_indices = @transform_2, window_bounds = array<i64: 1, 84>}, {pipeline_mode = #tpu.pipeline_mode<synchronous>, transform_indices = @transform_3, window_bounds = array<i64: 504, 320>}, {pipeline_mode = #tpu.pipeline_mode<synchronous>, transform_indices = @transform_4, window_bounds = array<i64: 1, 80>}, {pipeline_mode = #tpu.pipeline_mode<synchronous>, transform_indices = @transform_5, window_bounds = array<i64: 400, 128>}, {pipeline_mode = #tpu.pipeline_mode<synchronous>, transform_indices = @transform_6, window_bounds = array<i64: 1, 128>}, {pipeline_mode = #tpu.pipeline_mode<synchronous>, transform_indices = @transform_7, window_bounds = array<i64: 128, 128>}, {pipeline_mode = #tpu.pipeline_mode<synchronous>, transform_indices = @transform_8, window_bounds = array<i64: 1, 128>}, {pipeline_mode = #tpu.pipeline_mode<synchronous>, transform_indices = @transform_9, window_bounds = array<i64: 128, 128>}, {pipeline_mode = #tpu.pipeline_mode<synchronous>, transform_indices = @transform_10, window_bounds = array<i64: 1, 128>}, {transform_indices = @transform_11, window_bounds = array<i64: 8, 128>}]} {
    %c0 = arith.constant 0 : index
    %c0_0 = arith.constant 0 : index
    %0 = vector.load %arg2[%c0, %c0_0] : memref<192x336xf32, #tpu.memory_space<vmem>>, vector<192x336xf32>
    %c0_1 = arith.constant 0 : index
    %c0_2 = arith.constant 0 : index
    %1 = vector.load %arg3[%c0_1, %c0_2] : memref<1x84xf32, #tpu.memory_space<vmem>>, vector<1x84xf32>
    %c0_3 = arith.constant 0 : index
    %c0_4 = arith.constant 0 : index
    %2 = vector.load %arg1[%c0_3, %c0_4] : memref<8x1024xf32, #tpu.memory_space<vmem>>, vector<8x192xf32>
    %cst = arith.constant dense<0.000000e+00> : vector<8x336xf32>
    %3 = tpu.matmul %2, %0, %cst {dimension_numbers = #tpu.dot_dimension_numbers<[1], [0], [0], [1], [0, 0, 1, 1], [], []>} : vector<8x192xf32>, vector<192x336xf32>, vector<8x336xf32> -> vector<8x336xf32>
    %4 = vector.extract_strided_slice %3 {offsets = [0, 0], sizes = [8, 84], strides = [1, 1]} : vector<8x336xf32> to vector<8x84xf32>
    %5 = vector.extract_strided_slice %3 {offsets = [0, 84], sizes = [8, 84], strides = [1, 1]} : vector<8x336xf32> to vector<8x84xf32>
    %6 = arith.maximumf %4, %5 : vector<8x84xf32>
    %7 = vector.extract_strided_slice %3 {offsets = [0, 168], sizes = [8, 84], strides = [1, 1]} : vector<8x336xf32> to vector<8x84xf32>
    %8 = vector.extract_strided_slice %3 {offsets = [0, 252], sizes = [8, 84], strides = [1, 1]} : vector<8x336xf32> to vector<8x84xf32>
    %9 = arith.maximumf %7, %8 : vector<8x84xf32>
    %10 = arith.maximumf %6, %9 : vector<8x84xf32>
    %11 = vector.broadcast %1 : vector<1x84xf32> to vector<8x84xf32>
    %12 = arith.addf %10, %11 : vector<8x84xf32>
    %cst_5 = arith.constant 0.000000e+00 : f32
    %13 = vector.broadcast %cst_5 : f32 to vector<8x84xf32>
    %14 = arith.maximumf %12, %13 : vector<8x84xf32>
    %c0_6 = arith.constant 0 : index
    %c0_7 = arith.constant 0 : index
    %15 = vector.load %arg13[%c0_6, %c0_7] : memref<8x1176xf32, #tpu.memory_space<vmem>>, vector<8x84xf32>
    tpu.vector_store %arg13[%c0_6, %c0_7], %14 {strides = array<i32>} : memref<8x1176xf32, #tpu.memory_space<vmem>>, vector<8x84xf32>,
    %c0_8 = arith.constant 0 : index
    %c64 = arith.constant 64 : index
    %16 = vector.load %arg1[%c0_8, %c64] : memref<8x1024xf32, #tpu.memory_space<vmem>>, vector<8x192xf32>
    %cst_9 = arith.constant dense<0.000000e+00> : vector<8x336xf32>
    %17 = tpu.matmul %16, %0, %cst_9 {dimension_numbers = #tpu.dot_dimension_numbers<[1], [0], [0], [1], [0, 0, 1, 1], [], []>} : vector<8x192xf32>, vector<192x336xf32>, vector<8x336xf32> -> vector<8x336xf32>
    %18 = vector.extract_strided_slice %17 {offsets = [0, 0], sizes = [8, 84], strides = [1, 1]} : vector<8x336xf32> to vector<8x84xf32>
    %19 = vector.extract_strided_slice %17 {offsets = [0, 84], sizes = [8, 84], strides = [1, 1]} : vector<8x336xf32> to vector<8x84xf32>
    %20 = arith.maximumf %18, %19 : vector<8x84xf32>
    %21 = vector.extract_strided_slice %17 {offsets = [0, 168], sizes = [8, 84], strides = [1, 1]} : vector<8x336xf32> to vector<8x84xf32>
    %22 = vector.extract_strided_slice %17 {offsets = [0, 252], sizes = [8, 84], strides = [1, 1]} : vector<8x336xf32> to vector<8x84xf32>
    %23 = arith.maximumf %21, %22 : vector<8x84xf32>
    %24 = arith.maximumf %20, %23 : vector<8x84xf32>
    %25 = vector.broadcast %1 : vector<1x84xf32> to vector<8x84xf32>
    %26 = arith.addf %24, %25 : vector<8x84xf32>
    %cst_10 = arith.constant 0.000000e+00 : f32
    %27 = vector.broadcast %cst_10 : f32 to vector<8x84xf32>
    %28 = arith.maximumf %26, %27 : vector<8x84xf32>
    %c0_11 = arith.constant 0 : index
    %c84 = arith.constant 84 : index
    %29 = vector.load %arg13[%c0_11, %c84] : memref<8x1176xf32, #tpu.memory_space<vmem>>, vector<8x84xf32>
    tpu.vector_store %arg13[%c0_11, %c84], %28 {strides = array<i32>} : memref<8x1176xf32, #tpu.memory_space<vmem>>, vector<8x84xf32>,
    %c0_12 = arith.constant 0 : index
    %c128 = arith.constant 128 : index
    %30 = vector.load %arg1[%c0_12, %c128] : memref<8x1024xf32, #tpu.memory_space<vmem>>, vector<8x192xf32>
    %cst_13 = arith.constant dense<0.000000e+00> : vector<8x336xf32>
    %31 = tpu.matmul %30, %0, %cst_13 {dimension_numbers = #tpu.dot_dimension_numbers<[1], [0], [0], [1], [0, 0, 1, 1], [], []>} : vector<8x192xf32>, vector<192x336xf32>, vector<8x336xf32> -> vector<8x336xf32>
    %32 = vector.extract_strided_slice %31 {offsets = [0, 0], sizes = [8, 84], strides = [1, 1]} : vector<8x336xf32> to vector<8x84xf32>
    %33 = vector.extract_strided_slice %31 {offsets = [0, 84], sizes = [8, 84], strides = [1, 1]} : vector<8x336xf32> to vector<8x84xf32>
    %34 = arith.maximumf %32, %33 : vector<8x84xf32>
    %35 = vector.extract_strided_slice %31 {offsets = [0, 168], sizes = [8, 84], strides = [1, 1]} : vector<8x336xf32> to vector<8x84xf32>
    %36 = vector.extract_strided_slice %31 {offsets = [0, 252], sizes = [8, 84], strides = [1, 1]} : vector<8x336xf32> to vector<8x84xf32>
    %37 = arith.maximumf %35, %36 : vector<8x84xf32>
    %38 = arith.maximumf %34, %37 : vector<8x84xf32>
    %39 = vector.broadcast %1 : vector<1x84xf32> to vector<8x84xf32>
    %40 = arith.addf %38, %39 : vector<8x84xf32>
    %cst_14 = arith.constant 0.000000e+00 : f32
    %41 = vector.broadcast %cst_14 : f32 to vector<8x84xf32>
    %42 = arith.maximumf %40, %41 : vector<8x84xf32>
    %c0_15 = arith.constant 0 : index
    %c168 = arith.constant 168 : index
    %43 = vector.load %arg13[%c0_15, %c168] : memref<8x1176xf32, #tpu.memory_space<vmem>>, vector<8x84xf32>
    tpu.vector_store %arg13[%c0_15, %c168], %42 {strides = array<i32>} : memref<8x1176xf32, #tpu.memory_space<vmem>>, vector<8x84xf32>,
    %c0_16 = arith.constant 0 : index
    %c192 = arith.constant 192 : index
    %44 = vector.load %arg1[%c0_16, %c192] : memref<8x1024xf32, #tpu.memory_space<vmem>>, vector<8x192xf32>
    %cst_17 = arith.constant dense<0.000000e+00> : vector<8x336xf32>
    %45 = tpu.matmul %44, %0, %cst_17 {dimension_numbers = #tpu.dot_dimension_numbers<[1], [0], [0], [1], [0, 0, 1, 1], [], []>} : vector<8x192xf32>, vector<192x336xf32>, vector<8x336xf32> -> vector<8x336xf32>
    %46 = vector.extract_strided_slice %45 {offsets = [0, 0], sizes = [8, 84], strides = [1, 1]} : vector<8x336xf32> to vector<8x84xf32>
    %47 = vector.extract_strided_slice %45 {offsets = [0, 84], sizes = [8, 84], strides = [1, 1]} : vector<8x336xf32> to vector<8x84xf32>
    %48 = arith.maximumf %46, %47 : vector<8x84xf32>
    %49 = vector.extract_strided_slice %45 {offsets = [0, 168], sizes = [8, 84], strides = [1, 1]} : vector<8x336xf32> to vector<8x84xf32>
    %50 = vector.extract_strided_slice %45 {offsets = [0, 252], sizes = [8, 84], strides = [1, 1]} : vector<8x336xf32> to vector<8x84xf32>
    %51 = arith.maximumf %49, %50 : vector<8x84xf32>
    %52 = arith.maximumf %48, %51 : vector<8x84xf32>
    %53 = vector.broadcast %1 : vector<1x84xf32> to vector<8x84xf32>
    %54 = arith.addf %52, %53 : vector<8x84xf32>
    %cst_18 = arith.constant 0.000000e+00 : f32
    %55 = vector.broadcast %cst_18 : f32 to vector<8x84xf32>
    %56 = arith.maximumf %54, %55 : vector<8x84xf32>
    %c0_19 = arith.constant 0 : index
    %c252 = arith.constant 252 : index
    %57 = vector.load %arg13[%c0_19, %c252] : memref<8x1176xf32, #tpu.memory_space<vmem>>, vector<8x84xf32>
    tpu.vector_store %arg13[%c0_19, %c252], %56 {strides = array<i32>} : memref<8x1176xf32, #tpu.memory_space<vmem>>, vector<8x84xf32>,
    %c0_20 = arith.constant 0 : index
    %c256 = arith.constant 256 : index
    %58 = vector.load %arg1[%c0_20, %c256] : memref<8x1024xf32, #tpu.memory_space<vmem>>, vector<8x192xf32>
    %cst_21 = arith.constant dense<0.000000e+00> : vector<8x336xf32>
    %59 = tpu.matmul %58, %0, %cst_21 {dimension_numbers = #tpu.dot_dimension_numbers<[1], [0], [0], [1], [0, 0, 1, 1], [], []>} : vector<8x192xf32>, vector<192x336xf32>, vector<8x336xf32> -> vector<8x336xf32>
    %60 = vector.extract_strided_slice %59 {offsets = [0, 0], sizes = [8, 84], strides = [1, 1]} : vector<8x336xf32> to vector<8x84xf32>
    %61 = vector.extract_strided_slice %59 {offsets = [0, 84], sizes = [8, 84], strides = [1, 1]} : vector<8x336xf32> to vector<8x84xf32>
    %62 = arith.maximumf %60, %61 : vector<8x84xf32>
    %63 = vector.extract_strided_slice %59 {offsets = [0, 168], sizes = [8, 84], strides = [1, 1]} : vector<8x336xf32> to vector<8x84xf32>
    %64 = vector.extract_strided_slice %59 {offsets = [0, 252], sizes = [8, 84], strides = [1, 1]} : vector<8x336xf32> to vector<8x84xf32>
    %65 = arith.maximumf %63, %64 : vector<8x84xf32>
    %66 = arith.maximumf %62, %65 : vector<8x84xf32>
    %67 = vector.broadcast %1 : vector<1x84xf32> to vector<8x84xf32>
    %68 = arith.addf %66, %67 : vector<8x84xf32>
    %cst_22 = arith.constant 0.000000e+00 : f32
    %69 = vector.broadcast %cst_22 : f32 to vector<8x84xf32>
    %70 = arith.maximumf %68, %69 : vector<8x84xf32>
    %c0_23 = arith.constant 0 : index
    %c336 = arith.constant 336 : index
    %71 = vector.load %arg13[%c0_23, %c336] : memref<8x1176xf32, #tpu.memory_space<vmem>>, vector<8x84xf32>
    tpu.vector_store %arg13[%c0_23, %c336], %70 {strides = array<i32>} : memref<8x1176xf32, #tpu.memory_space<vmem>>, vector<8x84xf32>,
    %c0_24 = arith.constant 0 : index
    %c320 = arith.constant 320 : index
    %72 = vector.load %arg1[%c0_24, %c320] : memref<8x1024xf32, #tpu.memory_space<vmem>>, vector<8x192xf32>
    %cst_25 = arith.constant dense<0.000000e+00> : vector<8x336xf32>
    %73 = tpu.matmul %72, %0, %cst_25 {dimension_numbers = #tpu.dot_dimension_numbers<[1], [0], [0], [1], [0, 0, 1, 1], [], []>} : vector<8x192xf32>, vector<192x336xf32>, vector<8x336xf32> -> vector<8x336xf32>
    %74 = vector.extract_strided_slice %73 {offsets = [0, 0], sizes = [8, 84], strides = [1, 1]} : vector<8x336xf32> to vector<8x84xf32>
    %75 = vector.extract_strided_slice %73 {offsets = [0, 84], sizes = [8, 84], strides = [1, 1]} : vector<8x336xf32> to vector<8x84xf32>
    %76 = arith.maximumf %74, %75 : vector<8x84xf32>
    %77 = vector.extract_strided_slice %73 {offsets = [0, 168], sizes = [8, 84], strides = [1, 1]} : vector<8x336xf32> to vector<8x84xf32>
    %78 = vector.extract_strided_slice %73 {offsets = [0, 252], sizes = [8, 84], strides = [1, 1]} : vector<8x336xf32> to vector<8x84xf32>
    %79 = arith.maximumf %77, %78 : vector<8x84xf32>
    %80 = arith.maximumf %76, %79 : vector<8x84xf32>
    %81 = vector.broadcast %1 : vector<1x84xf32> to vector<8x84xf32>
    %82 = arith.addf %80, %81 : vector<8x84xf32>
    %cst_26 = arith.constant 0.000000e+00 : f32
    %83 = vector.broadcast %cst_26 : f32 to vector<8x84xf32>
    %84 = arith.maximumf %82, %83 : vector<8x84xf32>
    %c0_27 = arith.constant 0 : index
    %c420 = arith.constant 420 : index
    %85 = vector.load %arg13[%c0_27, %c420] : memref<8x1176xf32, #tpu.memory_space<vmem>>, vector<8x84xf32>
    tpu.vector_store %arg13[%c0_27, %c420], %84 {strides = array<i32>} : memref<8x1176xf32, #tpu.memory_space<vmem>>, vector<8x84xf32>,
    %c0_28 = arith.constant 0 : index
    %c384 = arith.constant 384 : index
    %86 = vector.load %arg1[%c0_28, %c384] : memref<8x1024xf32, #tpu.memory_space<vmem>>, vector<8x192xf32>
    %cst_29 = arith.constant dense<0.000000e+00> : vector<8x336xf32>
    %87 = tpu.matmul %86, %0, %cst_29 {dimension_numbers = #tpu.dot_dimension_numbers<[1], [0], [0], [1], [0, 0, 1, 1], [], []>} : vector<8x192xf32>, vector<192x336xf32>, vector<8x336xf32> -> vector<8x336xf32>
    %88 = vector.extract_strided_slice %87 {offsets = [0, 0], sizes = [8, 84], strides = [1, 1]} : vector<8x336xf32> to vector<8x84xf32>
    %89 = vector.extract_strided_slice %87 {offsets = [0, 84], sizes = [8, 84], strides = [1, 1]} : vector<8x336xf32> to vector<8x84xf32>
    %90 = arith.maximumf %88, %89 : vector<8x84xf32>
    %91 = vector.extract_strided_slice %87 {offsets = [0, 168], sizes = [8, 84], strides = [1, 1]} : vector<8x336xf32> to vector<8x84xf32>
    %92 = vector.extract_strided_slice %87 {offsets = [0, 252], sizes = [8, 84], strides = [1, 1]} : vector<8x336xf32> to vector<8x84xf32>
    %93 = arith.maximumf %91, %92 : vector<8x84xf32>
    %94 = arith.maximumf %90, %93 : vector<8x84xf32>
    %95 = vector.broadcast %1 : vector<1x84xf32> to vector<8x84xf32>
    %96 = arith.addf %94, %95 : vector<8x84xf32>
    %cst_30 = arith.constant 0.000000e+00 : f32
    %97 = vector.broadcast %cst_30 : f32 to vector<8x84xf32>
    %98 = arith.maximumf %96, %97 : vector<8x84xf32>
    %c0_31 = arith.constant 0 : index
    %c504 = arith.constant 504 : index
    %99 = vector.load %arg13[%c0_31, %c504] : memref<8x1176xf32, #tpu.memory_space<vmem>>, vector<8x84xf32>
    tpu.vector_store %arg13[%c0_31, %c504], %98 {strides = array<i32>} : memref<8x1176xf32, #tpu.memory_space<vmem>>, vector<8x84xf32>,
    %c0_32 = arith.constant 0 : index
    %c448 = arith.constant 448 : index
    %100 = vector.load %arg1[%c0_32, %c448] : memref<8x1024xf32, #tpu.memory_space<vmem>>, vector<8x192xf32>
    %cst_33 = arith.constant dense<0.000000e+00> : vector<8x336xf32>
    %101 = tpu.matmul %100, %0, %cst_33 {dimension_numbers = #tpu.dot_dimension_numbers<[1], [0], [0], [1], [0, 0, 1, 1], [], []>} : vector<8x192xf32>, vector<192x336xf32>, vector<8x336xf32> -> vector<8x336xf32>
    %102 = vector.extract_strided_slice %101 {offsets = [0, 0], sizes = [8, 84], strides = [1, 1]} : vector<8x336xf32> to vector<8x84xf32>
    %103 = vector.extract_strided_slice %101 {offsets = [0, 84], sizes = [8, 84], strides = [1, 1]} : vector<8x336xf32> to vector<8x84xf32>
    %104 = arith.maximumf %102, %103 : vector<8x84xf32>
    %105 = vector.extract_strided_slice %101 {offsets = [0, 168], sizes = [8, 84], strides = [1, 1]} : vector<8x336xf32> to vector<8x84xf32>
    %106 = vector.extract_strided_slice %101 {offsets = [0, 252], sizes = [8, 84], strides = [1, 1]} : vector<8x336xf32> to vector<8x84xf32>
    %107 = arith.maximumf %105, %106 : vector<8x84xf32>
    %108 = arith.maximumf %104, %107 : vector<8x84xf32>
    %109 = vector.broadcast %1 : vector<1x84xf32> to vector<8x84xf32>
    %110 = arith.addf %108, %109 : vector<8x84xf32>
    %cst_34 = arith.constant 0.000000e+00 : f32
    %111 = vector.broadcast %cst_34 : f32 to vector<8x84xf32>
    %112 = arith.maximumf %110, %111 : vector<8x84xf32>
    %c0_35 = arith.constant 0 : index
    %c588 = arith.constant 588 : index
    %113 = vector.load %arg13[%c0_35, %c588] : memref<8x1176xf32, #tpu.memory_space<vmem>>, vector<8x84xf32>
    tpu.vector_store %arg13[%c0_35, %c588], %112 {strides = array<i32>} : memref<8x1176xf32, #tpu.memory_space<vmem>>, vector<8x84xf32>,
    %c0_36 = arith.constant 0 : index
    %c512 = arith.constant 512 : index
    %114 = vector.load %arg1[%c0_36, %c512] : memref<8x1024xf32, #tpu.memory_space<vmem>>, vector<8x192xf32>
    %cst_37 = arith.constant dense<0.000000e+00> : vector<8x336xf32>
    %115 = tpu.matmul %114, %0, %cst_37 {dimension_numbers = #tpu.dot_dimension_numbers<[1], [0], [0], [1], [0, 0, 1, 1], [], []>} : vector<8x192xf32>, vector<192x336xf32>, vector<8x336xf32> -> vector<8x336xf32>
    %116 = vector.extract_strided_slice %115 {offsets = [0, 0], sizes = [8, 84], strides = [1, 1]} : vector<8x336xf32> to vector<8x84xf32>
    %117 = vector.extract_strided_slice %115 {offsets = [0, 84], sizes = [8, 84], strides = [1, 1]} : vector<8x336xf32> to vector<8x84xf32>
    %118 = arith.maximumf %116, %117 : vector<8x84xf32>
    %119 = vector.extract_strided_slice %115 {offsets = [0, 168], sizes = [8, 84], strides = [1, 1]} : vector<8x336xf32> to vector<8x84xf32>
    %120 = vector.extract_strided_slice %115 {offsets = [0, 252], sizes = [8, 84], strides = [1, 1]} : vector<8x336xf32> to vector<8x84xf32>
    %121 = arith.maximumf %119, %120 : vector<8x84xf32>
    %122 = arith.maximumf %118, %121 : vector<8x84xf32>
    %123 = vector.broadcast %1 : vector<1x84xf32> to vector<8x84xf32>
    %124 = arith.addf %122, %123 : vector<8x84xf32>
    %cst_38 = arith.constant 0.000000e+00 : f32
    %125 = vector.broadcast %cst_38 : f32 to vector<8x84xf32>
    %126 = arith.maximumf %124, %125 : vector<8x84xf32>
    %c0_39 = arith.constant 0 : index
    %c672 = arith.constant 672 : index
    %127 = vector.load %arg13[%c0_39, %c672] : memref<8x1176xf32, #tpu.memory_space<vmem>>, vector<8x84xf32>
    tpu.vector_store %arg13[%c0_39, %c672], %126 {strides = array<i32>} : memref<8x1176xf32, #tpu.memory_space<vmem>>, vector<8x84xf32>,
    %c0_40 = arith.constant 0 : index
    %c576 = arith.constant 576 : index
    %128 = vector.load %arg1[%c0_40, %c576] : memref<8x1024xf32, #tpu.memory_space<vmem>>, vector<8x192xf32>
    %cst_41 = arith.constant dense<0.000000e+00> : vector<8x336xf32>
    %129 = tpu.matmul %128, %0, %cst_41 {dimension_numbers = #tpu.dot_dimension_numbers<[1], [0], [0], [1], [0, 0, 1, 1], [], []>} : vector<8x192xf32>, vector<192x336xf32>, vector<8x336xf32> -> vector<8x336xf32>
    %130 = vector.extract_strided_slice %129 {offsets = [0, 0], sizes = [8, 84], strides = [1, 1]} : vector<8x336xf32> to vector<8x84xf32>
    %131 = vector.extract_strided_slice %129 {offsets = [0, 84], sizes = [8, 84], strides = [1, 1]} : vector<8x336xf32> to vector<8x84xf32>
    %132 = arith.maximumf %130, %131 : vector<8x84xf32>
    %133 = vector.extract_strided_slice %129 {offsets = [0, 168], sizes = [8, 84], strides = [1, 1]} : vector<8x336xf32> to vector<8x84xf32>
    %134 = vector.extract_strided_slice %129 {offsets = [0, 252], sizes = [8, 84], strides = [1, 1]} : vector<8x336xf32> to vector<8x84xf32>
    %135 = arith.maximumf %133, %134 : vector<8x84xf32>
    %136 = arith.maximumf %132, %135 : vector<8x84xf32>
    %137 = vector.broadcast %1 : vector<1x84xf32> to vector<8x84xf32>
    %138 = arith.addf %136, %137 : vector<8x84xf32>
    %cst_42 = arith.constant 0.000000e+00 : f32
    %139 = vector.broadcast %cst_42 : f32 to vector<8x84xf32>
    %140 = arith.maximumf %138, %139 : vector<8x84xf32>
    %c0_43 = arith.constant 0 : index
    %c756 = arith.constant 756 : index
    %141 = vector.load %arg13[%c0_43, %c756] : memref<8x1176xf32, #tpu.memory_space<vmem>>, vector<8x84xf32>
    tpu.vector_store %arg13[%c0_43, %c756], %140 {strides = array<i32>} : memref<8x1176xf32, #tpu.memory_space<vmem>>, vector<8x84xf32>,
    %c0_44 = arith.constant 0 : index
    %c640 = arith.constant 640 : index
    %142 = vector.load %arg1[%c0_44, %c640] : memref<8x1024xf32, #tpu.memory_space<vmem>>, vector<8x192xf32>
    %cst_45 = arith.constant dense<0.000000e+00> : vector<8x336xf32>
    %143 = tpu.matmul %142, %0, %cst_45 {dimension_numbers = #tpu.dot_dimension_numbers<[1], [0], [0], [1], [0, 0, 1, 1], [], []>} : vector<8x192xf32>, vector<192x336xf32>, vector<8x336xf32> -> vector<8x336xf32>
    %144 = vector.extract_strided_slice %143 {offsets = [0, 0], sizes = [8, 84], strides = [1, 1]} : vector<8x336xf32> to vector<8x84xf32>
    %145 = vector.extract_strided_slice %143 {offsets = [0, 84], sizes = [8, 84], strides = [1, 1]} : vector<8x336xf32> to vector<8x84xf32>
    %146 = arith.maximumf %144, %145 : vector<8x84xf32>
    %147 = vector.extract_strided_slice %143 {offsets = [0, 168], sizes = [8, 84], strides = [1, 1]} : vector<8x336xf32> to vector<8x84xf32>
    %148 = vector.extract_strided_slice %143 {offsets = [0, 252], sizes = [8, 84], strides = [1, 1]} : vector<8x336xf32> to vector<8x84xf32>
    %149 = arith.maximumf %147, %148 : vector<8x84xf32>
    %150 = arith.maximumf %146, %149 : vector<8x84xf32>
    %151 = vector.broadcast %1 : vector<1x84xf32> to vector<8x84xf32>
    %152 = arith.addf %150, %151 : vector<8x84xf32>
    %cst_46 = arith.constant 0.000000e+00 : f32
    %153 = vector.broadcast %cst_46 : f32 to vector<8x84xf32>
    %154 = arith.maximumf %152, %153 : vector<8x84xf32>
    %c0_47 = arith.constant 0 : index
    %c840 = arith.constant 840 : index
    %155 = vector.load %arg13[%c0_47, %c840] : memref<8x1176xf32, #tpu.memory_space<vmem>>, vector<8x84xf32>
    tpu.vector_store %arg13[%c0_47, %c840], %154 {strides = array<i32>} : memref<8x1176xf32, #tpu.memory_space<vmem>>, vector<8x84xf32>,
    %c0_48 = arith.constant 0 : index
    %c704 = arith.constant 704 : index
    %156 = vector.load %arg1[%c0_48, %c704] : memref<8x1024xf32, #tpu.memory_space<vmem>>, vector<8x192xf32>
    %cst_49 = arith.constant dense<0.000000e+00> : vector<8x336xf32>
    %157 = tpu.matmul %156, %0, %cst_49 {dimension_numbers = #tpu.dot_dimension_numbers<[1], [0], [0], [1], [0, 0, 1, 1], [], []>} : vector<8x192xf32>, vector<192x336xf32>, vector<8x336xf32> -> vector<8x336xf32>
    %158 = vector.extract_strided_slice %157 {offsets = [0, 0], sizes = [8, 84], strides = [1, 1]} : vector<8x336xf32> to vector<8x84xf32>
    %159 = vector.extract_strided_slice %157 {offsets = [0, 84], sizes = [8, 84], strides = [1, 1]} : vector<8x336xf32> to vector<8x84xf32>
    %160 = arith.maximumf %158, %159 : vector<8x84xf32>
    %161 = vector.extract_strided_slice %157 {offsets = [0, 168], sizes = [8, 84], strides = [1, 1]} : vector<8x336xf32> to vector<8x84xf32>
    %162 = vector.extract_strided_slice %157 {offsets = [0, 252], sizes = [8, 84], strides = [1, 1]} : vector<8x336xf32> to vector<8x84xf32>
    %163 = arith.maximumf %161, %162 : vector<8x84xf32>
    %164 = arith.maximumf %160, %163 : vector<8x84xf32>
    %165 = vector.broadcast %1 : vector<1x84xf32> to vector<8x84xf32>
    %166 = arith.addf %164, %165 : vector<8x84xf32>
    %cst_50 = arith.constant 0.000000e+00 : f32
    %167 = vector.broadcast %cst_50 : f32 to vector<8x84xf32>
    %168 = arith.maximumf %166, %167 : vector<8x84xf32>
    %c0_51 = arith.constant 0 : index
    %c924 = arith.constant 924 : index
    %169 = vector.load %arg13[%c0_51, %c924] : memref<8x1176xf32, #tpu.memory_space<vmem>>, vector<8x84xf32>
    tpu.vector_store %arg13[%c0_51, %c924], %168 {strides = array<i32>} : memref<8x1176xf32, #tpu.memory_space<vmem>>, vector<8x84xf32>,
    %c0_52 = arith.constant 0 : index
    %c768 = arith.constant 768 : index
    %170 = vector.load %arg1[%c0_52, %c768] : memref<8x1024xf32, #tpu.memory_space<vmem>>, vector<8x192xf32>
    %cst_53 = arith.constant dense<0.000000e+00> : vector<8x336xf32>
    %171 = tpu.matmul %170, %0, %cst_53 {dimension_numbers = #tpu.dot_dimension_numbers<[1], [0], [0], [1], [0, 0, 1, 1], [], []>} : vector<8x192xf32>, vector<192x336xf32>, vector<8x336xf32> -> vector<8x336xf32>
    %172 = vector.extract_strided_slice %171 {offsets = [0, 0], sizes = [8, 84], strides = [1, 1]} : vector<8x336xf32> to vector<8x84xf32>
    %173 = vector.extract_strided_slice %171 {offsets = [0, 84], sizes = [8, 84], strides = [1, 1]} : vector<8x336xf32> to vector<8x84xf32>
    %174 = arith.maximumf %172, %173 : vector<8x84xf32>
    %175 = vector.extract_strided_slice %171 {offsets = [0, 168], sizes = [8, 84], strides = [1, 1]} : vector<8x336xf32> to vector<8x84xf32>
    %176 = vector.extract_strided_slice %171 {offsets = [0, 252], sizes = [8, 84], strides = [1, 1]} : vector<8x336xf32> to vector<8x84xf32>
    %177 = arith.maximumf %175, %176 : vector<8x84xf32>
    %178 = arith.maximumf %174, %177 : vector<8x84xf32>
    %179 = vector.broadcast %1 : vector<1x84xf32> to vector<8x84xf32>
    %180 = arith.addf %178, %179 : vector<8x84xf32>
    %cst_54 = arith.constant 0.000000e+00 : f32
    %181 = vector.broadcast %cst_54 : f32 to vector<8x84xf32>
    %182 = arith.maximumf %180, %181 : vector<8x84xf32>
    %c0_55 = arith.constant 0 : index
    %c1008 = arith.constant 1008 : index
    %183 = vector.load %arg13[%c0_55, %c1008] : memref<8x1176xf32, #tpu.memory_space<vmem>>, vector<8x84xf32>
    tpu.vector_store %arg13[%c0_55, %c1008], %182 {strides = array<i32>} : memref<8x1176xf32, #tpu.memory_space<vmem>>, vector<8x84xf32>,
    %c0_56 = arith.constant 0 : index
    %c832 = arith.constant 832 : index
    %184 = vector.load %arg1[%c0_56, %c832] : memref<8x1024xf32, #tpu.memory_space<vmem>>, vector<8x192xf32>
    %cst_57 = arith.constant dense<0.000000e+00> : vector<8x336xf32>
    %185 = tpu.matmul %184, %0, %cst_57 {dimension_numbers = #tpu.dot_dimension_numbers<[1], [0], [0], [1], [0, 0, 1, 1], [], []>} : vector<8x192xf32>, vector<192x336xf32>, vector<8x336xf32> -> vector<8x336xf32>
    %186 = vector.extract_strided_slice %185 {offsets = [0, 0], sizes = [8, 84], strides = [1, 1]} : vector<8x336xf32> to vector<8x84xf32>
    %187 = vector.extract_strided_slice %185 {offsets = [0, 84], sizes = [8, 84], strides = [1, 1]} : vector<8x336xf32> to vector<8x84xf32>
    %188 = arith.maximumf %186, %187 : vector<8x84xf32>
    %189 = vector.extract_strided_slice %185 {offsets = [0, 168], sizes = [8, 84], strides = [1, 1]} : vector<8x336xf32> to vector<8x84xf32>
    %190 = vector.extract_strided_slice %185 {offsets = [0, 252], sizes = [8, 84], strides = [1, 1]} : vector<8x336xf32> to vector<8x84xf32>
    %191 = arith.maximumf %189, %190 : vector<8x84xf32>
    %192 = arith.maximumf %188, %191 : vector<8x84xf32>
    %193 = vector.broadcast %1 : vector<1x84xf32> to vector<8x84xf32>
    %194 = arith.addf %192, %193 : vector<8x84xf32>
    %cst_58 = arith.constant 0.000000e+00 : f32
    %195 = vector.broadcast %cst_58 : f32 to vector<8x84xf32>
    %196 = arith.maximumf %194, %195 : vector<8x84xf32>
    %c0_59 = arith.constant 0 : index
    %c1092 = arith.constant 1092 : index
    %197 = vector.load %arg13[%c0_59, %c1092] : memref<8x1176xf32, #tpu.memory_space<vmem>>, vector<8x84xf32>
    tpu.vector_store %arg13[%c0_59, %c1092], %196 {strides = array<i32>} : memref<8x1176xf32, #tpu.memory_space<vmem>>, vector<8x84xf32>,
    %c0_60 = arith.constant 0 : index
    %c0_61 = arith.constant 0 : index
    %198 = vector.load %arg4[%c0_60, %c0_61] : memref<504x320xf32, #tpu.memory_space<vmem>>, vector<504x320xf32>
    %c0_62 = arith.constant 0 : index
    %c0_63 = arith.constant 0 : index
    %199 = vector.load %arg5[%c0_62, %c0_63] : memref<1x80xf32, #tpu.memory_space<vmem>>, vector<1x80xf32>
    %c0_64 = arith.constant 0 : index
    %c0_65 = arith.constant 0 : index
    %200 = vector.load %arg13[%c0_64, %c0_65] : memref<8x1176xf32, #tpu.memory_space<vmem>>, vector<8x504xf32>
    %cst_66 = arith.constant dense<0.000000e+00> : vector<8x320xf32>
    %201 = tpu.matmul %200, %198, %cst_66 {dimension_numbers = #tpu.dot_dimension_numbers<[1], [0], [0], [1], [0, 0, 1, 1], [], []>} : vector<8x504xf32>, vector<504x320xf32>, vector<8x320xf32> -> vector<8x320xf32>
    %202 = vector.extract_strided_slice %201 {offsets = [0, 0], sizes = [8, 80], strides = [1, 1]} : vector<8x320xf32> to vector<8x80xf32>
    %203 = vector.extract_strided_slice %201 {offsets = [0, 80], sizes = [8, 80], strides = [1, 1]} : vector<8x320xf32> to vector<8x80xf32>
    %204 = arith.maximumf %202, %203 : vector<8x80xf32>
    %205 = vector.extract_strided_slice %201 {offsets = [0, 160], sizes = [8, 80], strides = [1, 1]} : vector<8x320xf32> to vector<8x80xf32>
    %206 = vector.extract_strided_slice %201 {offsets = [0, 240], sizes = [8, 80], strides = [1, 1]} : vector<8x320xf32> to vector<8x80xf32>
    %207 = arith.maximumf %205, %206 : vector<8x80xf32>
    %208 = arith.maximumf %204, %207 : vector<8x80xf32>
    %209 = vector.broadcast %199 : vector<1x80xf32> to vector<8x80xf32>
    %210 = arith.addf %208, %209 : vector<8x80xf32>
    %cst_67 = arith.constant 0.000000e+00 : f32
    %211 = vector.broadcast %cst_67 : f32 to vector<8x80xf32>
    %212 = arith.maximumf %210, %211 : vector<8x80xf32>
    %c0_68 = arith.constant 0 : index
    %c0_69 = arith.constant 0 : index
    %213 = vector.load %arg14[%c0_68, %c0_69] : memref<8x400xf32, #tpu.memory_space<vmem>>, vector<8x80xf32>
    tpu.vector_store %arg14[%c0_68, %c0_69], %212 {strides = array<i32>} : memref<8x400xf32, #tpu.memory_space<vmem>>, vector<8x80xf32>,
    %c0_70 = arith.constant 0 : index
    %c168_71 = arith.constant 168 : index
    %214 = vector.load %arg13[%c0_70, %c168_71] : memref<8x1176xf32, #tpu.memory_space<vmem>>, vector<8x504xf32>
    %cst_72 = arith.constant dense<0.000000e+00> : vector<8x320xf32>
    %215 = tpu.matmul %214, %198, %cst_72 {dimension_numbers = #tpu.dot_dimension_numbers<[1], [0], [0], [1], [0, 0, 1, 1], [], []>} : vector<8x504xf32>, vector<504x320xf32>, vector<8x320xf32> -> vector<8x320xf32>
    %216 = vector.extract_strided_slice %215 {offsets = [0, 0], sizes = [8, 80], strides = [1, 1]} : vector<8x320xf32> to vector<8x80xf32>
    %217 = vector.extract_strided_slice %215 {offsets = [0, 80], sizes = [8, 80], strides = [1, 1]} : vector<8x320xf32> to vector<8x80xf32>
    %218 = arith.maximumf %216, %217 : vector<8x80xf32>
    %219 = vector.extract_strided_slice %215 {offsets = [0, 160], sizes = [8, 80], strides = [1, 1]} : vector<8x320xf32> to vector<8x80xf32>
    %220 = vector.extract_strided_slice %215 {offsets = [0, 240], sizes = [8, 80], strides = [1, 1]} : vector<8x320xf32> to vector<8x80xf32>
    %221 = arith.maximumf %219, %220 : vector<8x80xf32>
    %222 = arith.maximumf %218, %221 : vector<8x80xf32>
    %223 = vector.broadcast %199 : vector<1x80xf32> to vector<8x80xf32>
    %224 = arith.addf %222, %223 : vector<8x80xf32>
    %cst_73 = arith.constant 0.000000e+00 : f32
    %225 = vector.broadcast %cst_73 : f32 to vector<8x80xf32>
    %226 = arith.maximumf %224, %225 : vector<8x80xf32>
    %c0_74 = arith.constant 0 : index
    %c80 = arith.constant 80 : index
    %227 = vector.load %arg14[%c0_74, %c80] : memref<8x400xf32, #tpu.memory_space<vmem>>, vector<8x80xf32>
    tpu.vector_store %arg14[%c0_74, %c80], %226 {strides = array<i32>} : memref<8x400xf32, #tpu.memory_space<vmem>>, vector<8x80xf32>,
    %c0_75 = arith.constant 0 : index
    %c336_76 = arith.constant 336 : index
    %228 = vector.load %arg13[%c0_75, %c336_76] : memref<8x1176xf32, #tpu.memory_space<vmem>>, vector<8x504xf32>
    %cst_77 = arith.constant dense<0.000000e+00> : vector<8x320xf32>
    %229 = tpu.matmul %228, %198, %cst_77 {dimension_numbers = #tpu.dot_dimension_numbers<[1], [0], [0], [1], [0, 0, 1, 1], [], []>} : vector<8x504xf32>, vector<504x320xf32>, vector<8x320xf32> -> vector<8x320xf32>
    %230 = vector.extract_strided_slice %229 {offsets = [0, 0], sizes = [8, 80], strides = [1, 1]} : vector<8x320xf32> to vector<8x80xf32>
    %231 = vector.extract_strided_slice %229 {offsets = [0, 80], sizes = [8, 80], strides = [1, 1]} : vector<8x320xf32> to vector<8x80xf32>
    %232 = arith.maximumf %230, %231 : vector<8x80xf32>
    %233 = vector.extract_strided_slice %229 {offsets = [0, 160], sizes = [8, 80], strides = [1, 1]} : vector<8x320xf32> to vector<8x80xf32>
    %234 = vector.extract_strided_slice %229 {offsets = [0, 240], sizes = [8, 80], strides = [1, 1]} : vector<8x320xf32> to vector<8x80xf32>
    %235 = arith.maximumf %233, %234 : vector<8x80xf32>
    %236 = arith.maximumf %232, %235 : vector<8x80xf32>
    %237 = vector.broadcast %199 : vector<1x80xf32> to vector<8x80xf32>
    %238 = arith.addf %236, %237 : vector<8x80xf32>
    %cst_78 = arith.constant 0.000000e+00 : f32
    %239 = vector.broadcast %cst_78 : f32 to vector<8x80xf32>
    %240 = arith.maximumf %238, %239 : vector<8x80xf32>
    %c0_79 = arith.constant 0 : index
    %c160 = arith.constant 160 : index
    %241 = vector.load %arg14[%c0_79, %c160] : memref<8x400xf32, #tpu.memory_space<vmem>>, vector<8x80xf32>
    tpu.vector_store %arg14[%c0_79, %c160], %240 {strides = array<i32>} : memref<8x400xf32, #tpu.memory_space<vmem>>, vector<8x80xf32>,
    %c0_80 = arith.constant 0 : index
    %c504_81 = arith.constant 504 : index
    %242 = vector.load %arg13[%c0_80, %c504_81] : memref<8x1176xf32, #tpu.memory_space<vmem>>, vector<8x504xf32>
    %cst_82 = arith.constant dense<0.000000e+00> : vector<8x320xf32>
    %243 = tpu.matmul %242, %198, %cst_82 {dimension_numbers = #tpu.dot_dimension_numbers<[1], [0], [0], [1], [0, 0, 1, 1], [], []>} : vector<8x504xf32>, vector<504x320xf32>, vector<8x320xf32> -> vector<8x320xf32>
    %244 = vector.extract_strided_slice %243 {offsets = [0, 0], sizes = [8, 80], strides = [1, 1]} : vector<8x320xf32> to vector<8x80xf32>
    %245 = vector.extract_strided_slice %243 {offsets = [0, 80], sizes = [8, 80], strides = [1, 1]} : vector<8x320xf32> to vector<8x80xf32>
    %246 = arith.maximumf %244, %245 : vector<8x80xf32>
    %247 = vector.extract_strided_slice %243 {offsets = [0, 160], sizes = [8, 80], strides = [1, 1]} : vector<8x320xf32> to vector<8x80xf32>
    %248 = vector.extract_strided_slice %243 {offsets = [0, 240], sizes = [8, 80], strides = [1, 1]} : vector<8x320xf32> to vector<8x80xf32>
    %249 = arith.maximumf %247, %248 : vector<8x80xf32>
    %250 = arith.maximumf %246, %249 : vector<8x80xf32>
    %251 = vector.broadcast %199 : vector<1x80xf32> to vector<8x80xf32>
    %252 = arith.addf %250, %251 : vector<8x80xf32>
    %cst_83 = arith.constant 0.000000e+00 : f32
    %253 = vector.broadcast %cst_83 : f32 to vector<8x80xf32>
    %254 = arith.maximumf %252, %253 : vector<8x80xf32>
    %c0_84 = arith.constant 0 : index
    %c240 = arith.constant 240 : index
    %255 = vector.load %arg14[%c0_84, %c240] : memref<8x400xf32, #tpu.memory_space<vmem>>, vector<8x80xf32>
    tpu.vector_store %arg14[%c0_84, %c240], %254 {strides = array<i32>} : memref<8x400xf32, #tpu.memory_space<vmem>>, vector<8x80xf32>,
    %c0_85 = arith.constant 0 : index
    %c672_86 = arith.constant 672 : index
    %256 = vector.load %arg13[%c0_85, %c672_86] : memref<8x1176xf32, #tpu.memory_space<vmem>>, vector<8x504xf32>
    %cst_87 = arith.constant dense<0.000000e+00> : vector<8x320xf32>
    %257 = tpu.matmul %256, %198, %cst_87 {dimension_numbers = #tpu.dot_dimension_numbers<[1], [0], [0], [1], [0, 0, 1, 1], [], []>} : vector<8x504xf32>, vector<504x320xf32>, vector<8x320xf32> -> vector<8x320xf32>
    %258 = vector.extract_strided_slice %257 {offsets = [0, 0], sizes = [8, 80], strides = [1, 1]} : vector<8x320xf32> to vector<8x80xf32>
    %259 = vector.extract_strided_slice %257 {offsets = [0, 80], sizes = [8, 80], strides = [1, 1]} : vector<8x320xf32> to vector<8x80xf32>
    %260 = arith.maximumf %258, %259 : vector<8x80xf32>
    %261 = vector.extract_strided_slice %257 {offsets = [0, 160], sizes = [8, 80], strides = [1, 1]} : vector<8x320xf32> to vector<8x80xf32>
    %262 = vector.extract_strided_slice %257 {offsets = [0, 240], sizes = [8, 80], strides = [1, 1]} : vector<8x320xf32> to vector<8x80xf32>
    %263 = arith.maximumf %261, %262 : vector<8x80xf32>
    %264 = arith.maximumf %260, %263 : vector<8x80xf32>
    %265 = vector.broadcast %199 : vector<1x80xf32> to vector<8x80xf32>
    %266 = arith.addf %264, %265 : vector<8x80xf32>
    %cst_88 = arith.constant 0.000000e+00 : f32
    %267 = vector.broadcast %cst_88 : f32 to vector<8x80xf32>
    %268 = arith.maximumf %266, %267 : vector<8x80xf32>
    %c0_89 = arith.constant 0 : index
    %c320_90 = arith.constant 320 : index
    %269 = vector.load %arg14[%c0_89, %c320_90] : memref<8x400xf32, #tpu.memory_space<vmem>>, vector<8x80xf32>
    tpu.vector_store %arg14[%c0_89, %c320_90], %268 {strides = array<i32>} : memref<8x400xf32, #tpu.memory_space<vmem>>, vector<8x80xf32>,
    %c0_91 = arith.constant 0 : index
    %c0_92 = arith.constant 0 : index
    %270 = vector.load %arg14[%c0_91, %c0_92] : memref<8x400xf32, #tpu.memory_space<vmem>>, vector<8x400xf32>
    %c0_93 = arith.constant 0 : index
    %c0_94 = arith.constant 0 : index
    %271 = vector.load %arg6[%c0_93, %c0_94] : memref<400x128xf32, #tpu.memory_space<vmem>>, vector<400x128xf32>
    %cst_95 = arith.constant dense<0.000000e+00> : vector<8x128xf32>
    %272 = tpu.matmul %270, %271, %cst_95 {dimension_numbers = #tpu.dot_dimension_numbers<[1], [0], [0], [1], [0, 0, 1, 1], [], []>} : vector<8x400xf32>, vector<400x128xf32>, vector<8x128xf32> -> vector<8x128xf32>
    %c0_96 = arith.constant 0 : index
    %c0_97 = arith.constant 0 : index
    %273 = vector.load %arg7[%c0_96, %c0_97] : memref<1x128xf32, #tpu.memory_space<vmem>>, vector<1x128xf32>
    %274 = vector.broadcast %273 : vector<1x128xf32> to vector<8x128xf32>
    %275 = arith.addf %272, %274 : vector<8x128xf32>
    %cst_98 = arith.constant 0.000000e+00 : f32
    %276 = vector.broadcast %cst_98 : f32 to vector<8x128xf32>
    %277 = arith.maximumf %275, %276 : vector<8x128xf32>
    %c0_99 = arith.constant 0 : index
    %c0_100 = arith.constant 0 : index
    %278 = vector.load %arg8[%c0_99, %c0_100] : memref<128x128xf32, #tpu.memory_space<vmem>>, vector<128x128xf32>
    %cst_101 = arith.constant dense<0.000000e+00> : vector<8x128xf32>
    %279 = tpu.matmul %277, %278, %cst_101 {dimension_numbers = #tpu.dot_dimension_numbers<[1], [0], [0], [1], [0, 0, 1, 1], [], []>} : vector<8x128xf32>, vector<128x128xf32>, vector<8x128xf32> -> vector<8x128xf32>
    %c0_102 = arith.constant 0 : index
    %c0_103 = arith.constant 0 : index
    %280 = vector.load %arg9[%c0_102, %c0_103] : memref<1x128xf32, #tpu.memory_space<vmem>>, vector<1x128xf32>
    %281 = vector.broadcast %280 : vector<1x128xf32> to vector<8x128xf32>
    %282 = arith.addf %279, %281 : vector<8x128xf32>
    %cst_104 = arith.constant 0.000000e+00 : f32
    %283 = vector.broadcast %cst_104 : f32 to vector<8x128xf32>
    %284 = arith.maximumf %282, %283 : vector<8x128xf32>
    %c0_105 = arith.constant 0 : index
    %c0_106 = arith.constant 0 : index
    %285 = vector.load %arg10[%c0_105, %c0_106] : memref<128x128xf32, #tpu.memory_space<vmem>>, vector<128x128xf32>
    %cst_107 = arith.constant dense<0.000000e+00> : vector<8x128xf32>
    %286 = tpu.matmul %284, %285, %cst_107 {dimension_numbers = #tpu.dot_dimension_numbers<[1], [0], [0], [1], [0, 0, 1, 1], [], []>} : vector<8x128xf32>, vector<128x128xf32>, vector<8x128xf32> -> vector<8x128xf32>
    %c0_108 = arith.constant 0 : index
    %c0_109 = arith.constant 0 : index
    %287 = vector.load %arg11[%c0_108, %c0_109] : memref<1x128xf32, #tpu.memory_space<vmem>>, vector<1x128xf32>
    %288 = vector.broadcast %287 : vector<1x128xf32> to vector<8x128xf32>
    %289 = arith.addf %286, %288 : vector<8x128xf32>
    %c0_110 = arith.constant 0 : index
    %c0_111 = arith.constant 0 : index
    %290 = vector.load %arg12[%c0_110, %c0_111] : memref<8x128xf32, #tpu.memory_space<vmem>>, vector<8x128xf32>
    tpu.vector_store %arg12[%c0_110, %c0_111], %289 {strides = array<i32>} : memref<8x128xf32, #tpu.memory_space<vmem>>, vector<8x128xf32>,
    return
  }
  func.func @transform_0(%arg0: i32) -> (i32, i32) {
    %c0_i32 = arith.constant 0 : i32
    %c0_i32_0 = arith.constant 0 : i32
    return %arg0, %c0_i32 : i32, i32
  }
  func.func @transform_1(%arg0: i32) -> (i32, i32) {
    %c0_i32 = arith.constant 0 : i32
    %c0_i32_0 = arith.constant 0 : i32
    %c0_i32_1 = arith.constant 0 : i32
    return %c0_i32, %c0_i32_0 : i32, i32
  }
  func.func @transform_2(%arg0: i32) -> (i32, i32) {
    %c0_i32 = arith.constant 0 : i32
    %c0_i32_0 = arith.constant 0 : i32
    %c0_i32_1 = arith.constant 0 : i32
    return %c0_i32, %c0_i32_0 : i32, i32
  }
  func.func @transform_3(%arg0: i32) -> (i32, i32) {
    %c0_i32 = arith.constant 0 : i32
    %c0_i32_0 = arith.constant 0 : i32
    %c0_i32_1 = arith.constant 0 : i32
    return %c0_i32, %c0_i32_0 : i32, i32
  }
  func.func @transform_4(%arg0: i32) -> (i32, i32) {
    %c0_i32 = arith.constant 0 : i32
    %c0_i32_0 = arith.constant 0 : i32
    %c0_i32_1 = arith.constant 0 : i32
    return %c0_i32, %c0_i32_0 : i32, i32
  }
  func.func @transform_5(%arg0: i32) -> (i32, i32) {
    %c0_i32 = arith.constant 0 : i32
    %c0_i32_0 = arith.constant 0 : i32
    %c0_i32_1 = arith.constant 0 : i32
    return %c0_i32, %c0_i32_0 : i32, i32
  }
  func.func @transform_6(%arg0: i32) -> (i32, i32) {
    %c0_i32 = arith.constant 0 : i32
    %c0_i32_0 = arith.constant 0 : i32
    %c0_i32_1 = arith.constant 0 : i32
    return %c0_i32, %c0_i32_0 : i32, i32
  }
  func.func @transform_7(%arg0: i32) -> (i32, i32) {
    %c0_i32 = arith.constant 0 : i32
    %c0_i32_0 = arith.constant 0 : i32
    %c0_i32_1 = arith.constant 0 : i32
    return %c0_i32, %c0_i32_0 : i32, i32
  }
  func.func @transform_8(%arg0: i32) -> (i32, i32) {
    %c0_i32 = arith.constant 0 : i32
    %c0_i32_0 = arith.constant 0 : i32
    %c0_i32_1 = arith.constant 0 : i32
    return %c0_i32, %c0_i32_0 : i32, i32
  }
  func.func @transform_9(%arg0: i32) -> (i32, i32) {
    %c0_i32 = arith.constant 0 : i32
    %c0_i32_0 = arith.constant 0 : i32
    %c0_i32_1 = arith.constant 0 : i32
    return %c0_i32, %c0_i32_0 : i32, i32
  }
  func.func @transform_10(%arg0: i32) -> (i32, i32) {
    %c0_i32 = arith.constant 0 : i32
    %c0_i32_0 = arith.constant 0 : i32
    %c0_i32_1 = arith.constant 0 : i32
    return %c0_i32, %c0_i32_0 : i32, i32
  }
  func.func @transform_11(%arg0: i32) -> (i32, i32) {
    %c0_i32 = arith.constant 0 : i32
    %c0_i32_0 = arith.constant 0 : i32
    return %arg0, %c0_i32 : i32, i32
  }
}

</mosaic_0001>

<llo_original>
// kernel: lenet_forward.1
$region0: #{lenet_forward.1}
  #allocation0 [shape = 'u32[]', space=smem, size = 0x4, offset = 0x4, fixed_abs, tag = 'smem constant byte address 0x4 - core index']
  #allocation1 [shape = 'u32[144,128]{1,0:T(1,128)}', space=vmem, size = 0x12000, scoped, tag = 'internal scratch']
  #allocation2 [shape = 'f32[8,1176]{1,0:T(8,128)}', space=vmem, size = 0xa000, scoped, tag = 'scratch operand']
  #allocation3 [shape = 'f32[8,400]{1,0:T(8,128)}', space=vmem, size = 0x4000, scoped, tag = 'scratch operand']
  %s0 = inlined_call_operand.vmem [shape: f32[8,1024], index: 0, kind: input, shape index: {}]
  %s1 = inlined_call_operand.vmem [shape: f32[192,336], index: 1, kind: input, shape index: {}]
  %s2 = inlined_call_operand.vmem [shape: f32[1,84], index: 2, kind: input, shape index: {}]
  %s3 = inlined_call_operand.vmem [shape: f32[504,320], index: 3, kind: input, shape index: {}]
  %s4 = inlined_call_operand.vmem [shape: f32[1,80], index: 4, kind: input, shape index: {}]
  %s5 = inlined_call_operand.vmem [shape: f32[400,128], index: 5, kind: input, shape index: {}]
  %s6 = inlined_call_operand.vmem [shape: f32[1,128], index: 6, kind: input, shape index: {}]
  %s7 = inlined_call_operand.vmem [shape: f32[128,128], index: 7, kind: input, shape index: {}]
  %s8 = inlined_call_operand.vmem [shape: f32[1,128], index: 8, kind: input, shape index: {}]
  %s9 = inlined_call_operand.vmem [shape: f32[128,128], index: 9, kind: input, shape index: {}]
  %s10 = inlined_call_operand.vmem [shape: f32[1,128], index: 10, kind: input, shape index: {}]
  %s11 = inlined_call_operand.vmem [shape: f32[8,128], index: 11, kind: output, shape index: {}]
  %s12 = sld [smem:[#allocation0]]
  $region54: #{lenet_forward.1} parent=0
    _
  %s14 = ssub.s32 1, %s12
  %s15 = scalar_select 0, %s14, %s12
  // Predicated region
  $region2: #{lenet_forward.1} parent=0 // pred_check
    _
  $region3: #{lenet_forward.1} parent=0 // pred_check_branch
    %17 = sbr.rel (0) target = $region5
  $region4: #{lenet_forward.1} parent=0 // pred_region
    _
  $region5: #{lenet_forward.1} parent=0 // pred_fallthru
    _
  // Predicated region
  $region6: #{lenet_forward.1} parent=0 // pred_check
    _
  $region7: #{lenet_forward.1} parent=0 // pred_check_branch
    %19 = sbr.rel (0) target = $region9
  $region8: #{lenet_forward.1} parent=0 // pred_region
    _
  $region9: #{lenet_forward.1} parent=0 // pred_fallthru
    _
  // Predicated region
  $region10: #{lenet_forward.1} parent=0 // pred_check
    _
  $region11: #{lenet_forward.1} parent=0 // pred_check_branch
    %21 = sbr.rel (0) target = $region13
  $region12: #{lenet_forward.1} parent=0 // pred_region
    _
  $region13: #{lenet_forward.1} parent=0 // pred_fallthru
    _
  // Predicated region
  $region14: #{lenet_forward.1} parent=0 // pred_check
    _
  $region15: #{lenet_forward.1} parent=0 // pred_check_branch
    %23 = sbr.rel (0) target = $region17
  $region16: #{lenet_forward.1} parent=0 // pred_region
    _
  $region17: #{lenet_forward.1} parent=0 // pred_fallthru
    _
  // Predicated region
  $region18: #{lenet_forward.1} parent=0 // pred_check
    _
  $region19: #{lenet_forward.1} parent=0 // pred_check_branch
    %25 = sbr.rel (0) target = $region21
  $region20: #{lenet_forward.1} parent=0 // pred_region
    _
  $region21: #{lenet_forward.1} parent=0 // pred_fallthru
    _
  // Predicated region
  $region22: #{lenet_forward.1} parent=0 // pred_check
    _
  $region23: #{lenet_forward.1} parent=0 // pred_check_branch
    %27 = sbr.rel (0) target = $region25
  $region24: #{lenet_forward.1} parent=0 // pred_region
    _
  $region25: #{lenet_forward.1} parent=0 // pred_fallthru
    _
  // Predicated region
  $region26: #{lenet_forward.1} parent=0 // pred_check
    _
  $region27: #{lenet_forward.1} parent=0 // pred_check_branch
    %29 = sbr.rel (0) target = $region29
  $region28: #{lenet_forward.1} parent=0 // pred_region
    _
  $region29: #{lenet_forward.1} parent=0 // pred_fallthru
    _
  // Predicated region
  $region30: #{lenet_forward.1} parent=0 // pred_check
    _
  $region31: #{lenet_forward.1} parent=0 // pred_check_branch
    %31 = sbr.rel (0) target = $region33
  $region32: #{lenet_forward.1} parent=0 // pred_region
    _
  $region33: #{lenet_forward.1} parent=0 // pred_fallthru
    _
  // Predicated region
  $region34: #{lenet_forward.1} parent=0 // pred_check
    _
  $region35: #{lenet_forward.1} parent=0 // pred_check_branch
    %33 = sbr.rel (0) target = $region37
  $region36: #{lenet_forward.1} parent=0 // pred_region
    _
  $region37: #{lenet_forward.1} parent=0 // pred_fallthru
    _
  // Predicated region
  $region38: #{lenet_forward.1} parent=0 // pred_check
    _
  $region39: #{lenet_forward.1} parent=0 // pred_check_branch
    %35 = sbr.rel (0) target = $region41
  $region40: #{lenet_forward.1} parent=0 // pred_region
    _
  $region41: #{lenet_forward.1} parent=0 // pred_fallthru
    _
  // Predicated region
  $region42: #{lenet_forward.1} parent=0 // pred_check
    _
  $region43: #{lenet_forward.1} parent=0 // pred_check_branch
    %37 = sbr.rel (0) target = $region45
  $region44: #{lenet_forward.1} parent=0 // pred_region
    _
  $region45: #{lenet_forward.1} parent=0 // pred_fallthru
    _
  %v38 = vld [vmem:[%s1] sm:$0xff]
  %v39 = vld [vmem:[%s1 + $0x8] sm:$0xff]
  %v40 = vld [vmem:[%s1 + $0x10] sm:$0xff]
  %v41 = vld [vmem:[%s1 + $0x18] sm:$0xff]
  %v42 = vld [vmem:[%s1 + $0x20] sm:$0xff]
  %v43 = vld [vmem:[%s1 + $0x28] sm:$0xff]
  %v44 = vld [vmem:[%s1 + $0x30] sm:$0xff]
  %v45 = vld [vmem:[%s1 + $0x38] sm:$0xff]
  %v46 = vld [vmem:[%s1 + $0x40] sm:$0xff]
  %v47 = vld [vmem:[%s1 + $0x48] sm:$0xff]
  %v48 = vld [vmem:[%s1 + $0x50] sm:$0xff]
  %v49 = vld [vmem:[%s1 + $0x58] sm:$0xff]
  %v50 = vld [vmem:[%s1 + $0x60] sm:$0xff]
  %v51 = vld [vmem:[%s1 + $0x68] sm:$0xff]
  %v52 = vld [vmem:[%s1 + $0x70] sm:$0xff]
  %v53 = vld [vmem:[%s1 + $0x78] sm:$0xff]
  %v54 = vld [vmem:[%s1 + $0x80] sm:$0xff]
  %v55 = vld [vmem:[%s1 + $0x88] sm:$0xff]
  %v56 = vld [vmem:[%s1 + $0x90] sm:$0xff]
  %v57 = vld [vmem:[%s1 + $0x98] sm:$0xff]
  %v58 = vld [vmem:[%s1 + $0xa0] sm:$0xff]
  %v59 = vld [vmem:[%s1 + $0xa8] sm:$0xff]
  %v60 = vld [vmem:[%s1 + $0xb0] sm:$0xff]
  %v61 = vld [vmem:[%s1 + $0xb8] sm:$0xff]
  %v62 = vld [vmem:[%s1 + $0xc0] sm:$0xff]
  %v63 = vld [vmem:[%s1 + $0xc8] sm:$0xff]
  %v64 = vld [vmem:[%s1 + $0xd0] sm:$0xff]
  %v65 = vld [vmem:[%s1 + $0xd8] sm:$0xff]
  %v66 = vld [vmem:[%s1 + $0xe0] sm:$0xff]
  %v67 = vld [vmem:[%s1 + $0xe8] sm:$0xff]
  %v68 = vld [vmem:[%s1 + $0xf0] sm:$0xff]
  %v69 = vld [vmem:[%s1 + $0xf8] sm:$0xff]
  %v70 = vld [vmem:[%s1 + $0x100] sm:$0xff]
  %v71 = vld [vmem:[%s1 + $0x108] sm:$0xff]
  %v72 = vld [vmem:[%s1 + $0x110] sm:$0xff]
  %v73 = vld [vmem:[%s1 + $0x118] sm:$0xff]
  %v74 = vld [vmem:[%s1 + $0x120] sm:$0xff]
  %v75 = vld [vmem:[%s1 + $0x128] sm:$0xff]
  %v76 = vld [vmem:[%s1 + $0x130] sm:$0xff]
  %v77 = vld [vmem:[%s1 + $0x138] sm:$0xff]
  %v78 = vld [vmem:[%s1 + $0x140] sm:$0xff]
  %v79 = vld [vmem:[%s1 + $0x148] sm:$0xff]
  %v80 = vld [vmem:[%s1 + $0x150] sm:$0xff]
  %v81 = vld [vmem:[%s1 + $0x158] sm:$0xff]
  %v82 = vld [vmem:[%s1 + $0x160] sm:$0xff]
  %v83 = vld [vmem:[%s1 + $0x168] sm:$0xff]
  %v84 = vld [vmem:[%s1 + $0x170] sm:$0xff]
  %v85 = vld [vmem:[%s1 + $0x178] sm:$0xff]
  %v86 = vld [vmem:[%s1 + $0x180] sm:$0xff]
  %v87 = vld [vmem:[%s1 + $0x188] sm:$0xff]
  %v88 = vld [vmem:[%s1 + $0x190] sm:$0xff]
  %v89 = vld [vmem:[%s1 + $0x198] sm:$0xff]
  %v90 = vld [vmem:[%s1 + $0x1a0] sm:$0xff]
  %v91 = vld [vmem:[%s1 + $0x1a8] sm:$0xff]
  %v92 = vld [vmem:[%s1 + $0x1b0] sm:$0xff]
  %v93 = vld [vmem:[%s1 + $0x1b8] sm:$0xff]
  %v94 = vld [vmem:[%s1 + $0x1c0] sm:$0xff]
  %v95 = vld [vmem:[%s1 + $0x1c8] sm:$0xff]
  %v96 = vld [vmem:[%s1 + $0x1d0] sm:$0xff]
  %v97 = vld [vmem:[%s1 + $0x1d8] sm:$0xff]
  %v98 = vld [vmem:[%s1 + $0x1e0] sm:$0xff]
  %v99 = vld [vmem:[%s1 + $0x1e8] sm:$0xff]
  %v100 = vld [vmem:[%s1 + $0x1f0] sm:$0xff]
  %v101 = vld [vmem:[%s1 + $0x1f8] sm:$0xff]
  %v102 = vld [vmem:[%s1 + $0x200] sm:$0xff]
  %v103 = vld [vmem:[%s1 + $0x208] sm:$0xff]
  %v104 = vld [vmem:[%s1 + $0x210] sm:$0xff]
  %v105 = vld [vmem:[%s1 + $0x218] sm:$0xff]
  %v106 = vld [vmem:[%s1 + $0x220] sm:$0xff]
  %v107 = vld [vmem:[%s1 + $0x228] sm:$0xff]
  %v108 = vld [vmem:[%s1 + $0x230] sm:$0xff]
  %v109 = vld [vmem:[%s1 + $0x238] sm:$0xff]
  %v110 = vld [vmem:[%s2] sm:$0x1]
  %v111 = vld [vmem:[%s0] sm:$0xff]
  %v112 = vld [vmem:[%s0 + $0x8] sm:$0xff]
  %vm113 = vcmask 523264
  %v115 = vsel %vm113, %v112, 0
  %117 = vmatprep.subr.mxu0 %v39
  %118 = vmatpush1.msra.mxu0 %v38
  %119 = vmatprep.subr.mxu0 %v42
  %120 = vmatpush1.msra.mxu0 %v41
  %121 = vmatprep.subr.mxu0 %v45
  %122 = vmatpush1.msra.mxu0 %v44
  %123 = vmatprep.subr.mxu0 %v48
  %124 = vmatpush1.msra.mxu0 %v47
  %125 = vmatprep.subr.mxu0 %v51
  %126 = vmatpush1.msra.mxu0 %v50
  %127 = vmatprep.subr.mxu0 %v54
  %128 = vmatpush1.msra.mxu0 %v53
  %129 = vmatprep.subr.mxu0 %v57
  %130 = vmatpush1.msra.mxu0 %v56
  %131 = vmatprep.subr.mxu0 %v60
  %132 = vmatpush1.msra.mxu0 %v59
  %133 = vmatprep.subr.mxu0 %v63
  %134 = vmatpush1.msra.mxu0 %v62
  %135 = vmatprep.subr.mxu0 %v66
  %136 = vmatpush1.msra.mxu0 %v65
  %137 = vmatprep.subr.mxu0 %v69
  %138 = vmatpush1.msra.mxu0 %v68
  %139 = vmatprep.subr.mxu0 %v72
  %140 = vmatpush1.msra.mxu0 %v71
  %141 = vmatprep.subr.mxu0 %v75
  %142 = vmatpush1.msra.mxu0 %v74
  %143 = vmatprep.subr.mxu0 %v78
  %144 = vmatpush1.msra.mxu0 %v77
  %145 = vmatprep.subr.mxu0 %v81
  %146 = vmatpush1.msra.mxu0 %v80
  %147 = vmatprep.subr.mxu0 %v84
  %148 = vmatpush1.msra.mxu0 %v83
  %149 = vmatprep.subr.mxu0 %v87
  %150 = vmatpush1.msra.mxu0 %v86
  %151 = vmatprep.subr.mxu0 %v90
  %152 = vmatpush1.msra.mxu0 %v89
  %153 = vmatprep.subr.mxu0 %v93
  %154 = vmatpush1.msra.mxu0 %v92
  %155 = vmatprep.subr.mxu0 %v96
  %156 = vmatpush1.msra.mxu0 %v95
  %157 = vmatprep.subr.mxu0 %v99
  %158 = vmatpush1.msra.mxu0 %v98
  %159 = vmatprep.subr.mxu0 %v102
  %160 = vmatpush1.msra.mxu0 %v101
  %161 = vmatprep.subr.mxu0 %v105
  %162 = vmatpush1.msra.mxu0 %v104
  %163 = vmatprep.subr.mxu0 %v108
  %164 = vmatpush1.msra.mxu0 %v107
  %165 = vmatprep.subr.mxu0 0.0
  %166 = vmatpush1.msra.mxu0 0.0
  %167 = vmatprep.subr.mxu0 0.0
  %168 = vmatpush1.msra.mxu0 0.0
  %169 = vmatprep.subr.mxu0 0.0
  %170 = vmatpush1.msra.mxu0 0.0
  %171 = vmatprep.subr.mxu0 0.0
  %172 = vmatpush1.msra.mxu0 0.0
  %173 = vmatprep.subr.mxu0 0.0
  %174 = vmatpush1.msra.mxu0 0.0
  %175 = vmatprep.subr.mxu0 0.0
  %176 = vmatpush1.msra.mxu0 0.0
  %177 = vmatprep.subr.mxu0 0.0
  %178 = vmatpush1.msra.mxu0 0.0
  %179 = vmatprep.subr.mxu0 0.0
  %180 = vmatpush1.msra.mxu0 0.0
  %181 = vmatprep.mubr.f32.mxu0 %v115
  %182 = vmatmul.mubr.f32.gmra.mrb[0].mxu0 %v111
  %v183 = vpop.f32.mrb[0].mxu0
  %v184 = vadd.f32 0.0, %v183
  %v185 = vpop.f32.mrb[0].mxu0
  %v186 = vadd.f32 0.0, %v185
  %187 = vdwg.mxu0
  %188 = vmatprep.subr.mxu0 0.0
  %189 = vmatpush1.msra.mxu0 %v40
  %190 = vmatprep.subr.mxu0 0.0
  %191 = vmatpush1.msra.mxu0 %v43
  %192 = vmatprep.subr.mxu0 0.0
  %193 = vmatpush1.msra.mxu0 %v46
  %194 = vmatprep.subr.mxu0 0.0
  %195 = vmatpush1.msra.mxu0 %v49
  %196 = vmatprep.subr.mxu0 0.0
  %197 = vmatpush1.msra.mxu0 %v52
  %198 = vmatprep.subr.mxu0 0.0
  %199 = vmatpush1.msra.mxu0 %v55
  %200 = vmatprep.subr.mxu0 0.0
  %201 = vmatpush1.msra.mxu0 %v58
  %202 = vmatprep.subr.mxu0 0.0
  %203 = vmatpush1.msra.mxu0 %v61
  %204 = vmatprep.subr.mxu0 0.0
  %205 = vmatpush1.msra.mxu0 %v64
  %206 = vmatprep.subr.mxu0 0.0
  %207 = vmatpush1.msra.mxu0 %v67
  %208 = vmatprep.subr.mxu0 0.0
  %209 = vmatpush1.msra.mxu0 %v70
  %210 = vmatprep.subr.mxu0 0.0
  %211 = vmatpush1.msra.mxu0 %v73
  %212 = vmatprep.subr.mxu0 0.0
  %213 = vmatpush1.msra.mxu0 %v76
  %214 = vmatprep.subr.mxu0 0.0
  %215 = vmatpush1.msra.mxu0 %v79
  %216 = vmatprep.subr.mxu0 0.0
  %217 = vmatpush1.msra.mxu0 %v82
  %218 = vmatprep.subr.mxu0 0.0
  %219 = vmatpush1.msra.mxu0 %v85
  %220 = vmatprep.subr.mxu0 0.0
  %221 = vmatpush1.msra.mxu0 %v88
  %222 = vmatprep.subr.mxu0 0.0
  %223 = vmatpush1.msra.mxu0 %v91
  %224 = vmatprep.subr.mxu0 0.0
  %225 = vmatpush1.msra.mxu0 %v94
  %226 = vmatprep.subr.mxu0 0.0
  %227 = vmatpush1.msra.mxu0 %v97
  %228 = vmatprep.subr.mxu0 0.0
  %229 = vmatpush1.msra.mxu0 %v100
  %230 = vmatprep.subr.mxu0 0.0
  %231 = vmatpush1.msra.mxu0 %v103
  %232 = vmatprep.subr.mxu0 0.0
  %233 = vmatpush1.msra.mxu0 %v106
  %234 = vmatprep.subr.mxu0 0.0
  %235 = vmatpush1.msra.mxu0 %v109
  %236 = vmatprep.subr.mxu0 0.0
  %237 = vmatpush1.msra.mxu0 0.0
  %238 = vmatprep.subr.mxu0 0.0
  %239 = vmatpush1.msra.mxu0 0.0
  %240 = vmatprep.subr.mxu0 0.0
  %241 = vmatpush1.msra.mxu0 0.0
  %242 = vmatprep.subr.mxu0 0.0
  %243 = vmatpush1.msra.mxu0 0.0
  %244 = vmatprep.subr.mxu0 0.0
  %245 = vmatpush1.msra.mxu0 0.0
  %246 = vmatprep.subr.mxu0 0.0
  %247 = vmatpush1.msra.mxu0 0.0
  %248 = vmatprep.subr.mxu0 0.0
  %249 = vmatpush1.msra.mxu0 0.0
  %250 = vmatprep.subr.mxu0 0.0
  %251 = vmatpush1.msra.mxu0 0.0
  %252 = vmatprep.mubr.f32.mxu0 %v115
  %253 = vmatmul.mubr.f32.gmra.mrb[0].mxu0 %v111
  %v254 = vpop.f32.mrb[0].mxu0
  %v255 = vadd.f32 0.0, %v254
  %v256 = vpop.f32.mrb[0].mxu0
  %257 = vdwg.mxu0
  %260 = vrot.lane.b32.xlu0 %v184, 44
  %v261 = vpop.permute.xlu0 %260
  %262 = vrot.lane.b32.xlu0 %v186, 44
  %v263 = vpop.permute.xlu0 %262
  %vm264 = vcmask 359424
  %v265 = vsel %vm264, %v261, %v263
  %v267 = vmax.f32 %v184, %v265
  %269 = vrot.lane.b32.xlu0 %v255, 44
  %v270 = vpop.permute.xlu0 %269
  %v271 = vsel %vm264, %v263, %v270
  %v273 = vmax.f32 %v186, %v271
  %275 = vrot.lane.b32.xlu0 %v273, 88
  %v276 = vpop.permute.xlu0 %275
  %v278 = vmax.f32 %v267, %v276
  %v280 = vlaneseq
  %v281 = vshrl.u32 %v280, 7
  %v282 = vsub.s32 0, %v281
  %v283 = vrot.slane %v110, %v282
  %v285 = vadd.f32 %v278, %v283
  %v286 = vmax.f32 %v285, 0.0
  %vm287 = vcmask 687104
  %288 = vst.msk [vmem:[#allocation2] sm:$0xff] %vm287, %v286
  %v289 = vld [vmem:[%s0] sm:$0xff]
  %v290 = vld [vmem:[%s0 + $0x8] sm:$0xff]
  %293 = vrot.lane.b32.xlu0 %v289, 64
  %v294 = vpop.permute.xlu0 %293
  %295 = vrot.lane.b32.xlu0 %v290, 64
  %v296 = vpop.permute.xlu0 %295
  %v297 = vsel %vm113, %v294, %v296
  %v299 = vsel %vm113, %v296, 0
  %301 = vmatprep.subr.mxu0 %v39
  %302 = vmatpush1.msra.mxu0 %v38
  %303 = vmatprep.subr.mxu0 %v42
  %304 = vmatpush1.msra.mxu0 %v41
  %305 = vmatprep.subr.mxu0 %v45
  %306 = vmatpush1.msra.mxu0 %v44
  %307 = vmatprep.subr.mxu0 %v48
  %308 = vmatpush1.msra.mxu0 %v47
  %309 = vmatprep.subr.mxu0 %v51
  %310 = vmatpush1.msra.mxu0 %v50
  %311 = vmatprep.subr.mxu0 %v54
  %312 = vmatpush1.msra.mxu0 %v53
  %313 = vmatprep.subr.mxu0 %v57
  %314 = vmatpush1.msra.mxu0 %v56
  %315 = vmatprep.subr.mxu0 %v60
  %316 = vmatpush1.msra.mxu0 %v59
  %317 = vmatprep.subr.mxu0 %v63
  %318 = vmatpush1.msra.mxu0 %v62
  %319 = vmatprep.subr.mxu0 %v66
  %320 = vmatpush1.msra.mxu0 %v65
  %321 = vmatprep.subr.mxu0 %v69
  %322 = vmatpush1.msra.mxu0 %v68
  %323 = vmatprep.subr.mxu0 %v72
  %324 = vmatpush1.msra.mxu0 %v71
  %325 = vmatprep.subr.mxu0 %v75
  %326 = vmatpush1.msra.mxu0 %v74
  %327 = vmatprep.subr.mxu0 %v78
  %328 = vmatpush1.msra.mxu0 %v77
  %329 = vmatprep.subr.mxu0 %v81
  %330 = vmatpush1.msra.mxu0 %v80
  %331 = vmatprep.subr.mxu0 %v84
  %332 = vmatpush1.msra.mxu0 %v83
  %333 = vmatprep.subr.mxu0 %v87
  %334 = vmatpush1.msra.mxu0 %v86
  %335 = vmatprep.subr.mxu0 %v90
  %336 = vmatpush1.msra.mxu0 %v89
  %337 = vmatprep.subr.mxu0 %v93
  %338 = vmatpush1.msra.mxu0 %v92
  %339 = vmatprep.subr.mxu0 %v96
  %340 = vmatpush1.msra.mxu0 %v95
  %341 = vmatprep.subr.mxu0 %v99
  %342 = vmatpush1.msra.mxu0 %v98
  %343 = vmatprep.subr.mxu0 %v102
  %344 = vmatpush1.msra.mxu0 %v101
  %345 = vmatprep.subr.mxu0 %v105
  %346 = vmatpush1.msra.mxu0 %v104
  %347 = vmatprep.subr.mxu0 %v108
  %348 = vmatpush1.msra.mxu0 %v107
  %349 = vmatprep.subr.mxu0 0.0
  %350 = vmatpush1.msra.mxu0 0.0
  %351 = vmatprep.subr.mxu0 0.0
  %352 = vmatpush1.msra.mxu0 0.0
  %353 = vmatprep.subr.mxu0 0.0
  %354 = vmatpush1.msra.mxu0 0.0
  %355 = vmatprep.subr.mxu0 0.0
  %356 = vmatpush1.msra.mxu0 0.0
  %357 = vmatprep.subr.mxu0 0.0
  %358 = vmatpush1.msra.mxu0 0.0
  %359 = vmatprep.subr.mxu0 0.0
  %360 = vmatpush1.msra.mxu0 0.0
  %361 = vmatprep.subr.mxu0 0.0
  %362 = vmatpush1.msra.mxu0 0.0
  %363 = vmatprep.subr.mxu0 0.0
  %364 = vmatpush1.msra.mxu0 0.0
  %365 = vmatprep.mubr.f32.mxu0 %v299
  %366 = vmatmul.mubr.f32.gmra.mrb[0].mxu0 %v297
  %v367 = vpop.f32.mrb[0].mxu0
  %v368 = vadd.f32 0.0, %v367
  %v369 = vpop.f32.mrb[0].mxu0
  %v370 = vadd.f32 0.0, %v369
  %371 = vdwg.mxu0
  %372 = vmatprep.subr.mxu0 0.0
  %373 = vmatpush1.msra.mxu0 %v40
  %374 = vmatprep.subr.mxu0 0.0
  %375 = vmatpush1.msra.mxu0 %v43
  %376 = vmatprep.subr.mxu0 0.0
  %377 = vmatpush1.msra.mxu0 %v46
  %378 = vmatprep.subr.mxu0 0.0
  %379 = vmatpush1.msra.mxu0 %v49
  %380 = vmatprep.subr.mxu0 0.0
  %381 = vmatpush1.msra.mxu0 %v52
  %382 = vmatprep.subr.mxu0 0.0
  %383 = vmatpush1.msra.mxu0 %v55
  %384 = vmatprep.subr.mxu0 0.0
  %385 = vmatpush1.msra.mxu0 %v58
  %386 = vmatprep.subr.mxu0 0.0
  %387 = vmatpush1.msra.mxu0 %v61
  %388 = vmatprep.subr.mxu0 0.0
  %389 = vmatpush1.msra.mxu0 %v64
  %390 = vmatprep.subr.mxu0 0.0
  %391 = vmatpush1.msra.mxu0 %v67
  %392 = vmatprep.subr.mxu0 0.0
  %393 = vmatpush1.msra.mxu0 %v70
  %394 = vmatprep.subr.mxu0 0.0
  %395 = vmatpush1.msra.mxu0 %v73
  %396 = vmatprep.subr.mxu0 0.0
  %397 = vmatpush1.msra.mxu0 %v76
  %398 = vmatprep.subr.mxu0 0.0
  %399 = vmatpush1.msra.mxu0 %v79
  %400 = vmatprep.subr.mxu0 0.0
  %401 = vmatpush1.msra.mxu0 %v82
  %402 = vmatprep.subr.mxu0 0.0
  %403 = vmatpush1.msra.mxu0 %v85
  %404 = vmatprep.subr.mxu0 0.0
  %405 = vmatpush1.msra.mxu0 %v88
  %406 = vmatprep.subr.mxu0 0.0
  %407 = vmatpush1.msra.mxu0 %v91
  %408 = vmatprep.subr.mxu0 0.0
  %409 = vmatpush1.msra.mxu0 %v94
  %410 = vmatprep.subr.mxu0 0.0
  %411 = vmatpush1.msra.mxu0 %v97
  %412 = vmatprep.subr.mxu0 0.0
  %413 = vmatpush1.msra.mxu0 %v100
  %414 = vmatprep.subr.mxu0 0.0
  %415 = vmatpush1.msra.mxu0 %v103
  %416 = vmatprep.subr.mxu0 0.0
  %417 = vmatpush1.msra.mxu0 %v106
  %418 = vmatprep.subr.mxu0 0.0
  %419 = vmatpush1.msra.mxu0 %v109
  %420 = vmatprep.subr.mxu0 0.0
  %421 = vmatpush1.msra.mxu0 0.0
  %422 = vmatprep.subr.mxu0 0.0
  %423 = vmatpush1.msra.mxu0 0.0
  %424 = vmatprep.subr.mxu0 0.0
  %425 = vmatpush1.msra.mxu0 0.0
  %426 = vmatprep.subr.mxu0 0.0
  %427 = vmatpush1.msra.mxu0 0.0
  %428 = vmatprep.subr.mxu0 0.0
  %429 = vmatpush1.msra.mxu0 0.0
  %430 = vmatprep.subr.mxu0 0.0
  %431 = vmatpush1.msra.mxu0 0.0
  %432 = vmatprep.subr.mxu0 0.0
  %433 = vmatpush1.msra.mxu0 0.0
  %434 = vmatprep.subr.mxu0 0.0
  %435 = vmatpush1.msra.mxu0 0.0
  %436 = vmatprep.mubr.f32.mxu0 %v299
  %437 = vmatmul.mubr.f32.gmra.mrb[0].mxu0 %v297
  %v438 = vpop.f32.mrb[0].mxu0
  %v439 = vadd.f32 0.0, %v438
  %v440 = vpop.f32.mrb[0].mxu0
  %441 = vdwg.mxu0
  %444 = vrot.lane.b32.xlu0 %v368, 44
  %v445 = vpop.permute.xlu0 %444
  %446 = vrot.lane.b32.xlu0 %v370, 44
  %v447 = vpop.permute.xlu0 %446
  %v448 = vsel %vm264, %v445, %v447
  %v450 = vmax.f32 %v368, %v448
  %452 = vrot.lane.b32.xlu0 %v439, 44
  %v453 = vpop.permute.xlu0 %452
  %v454 = vsel %vm264, %v447, %v453
  %v456 = vmax.f32 %v370, %v454
  %458 = vrot.lane.b32.xlu0 %v456, 88
  %v459 = vpop.permute.xlu0 %458
  %v461 = vmax.f32 %v450, %v459
  %v462 = vadd.f32 %v461, %v283
  %v463 = vmax.f32 %v462, 0.0
  %465 = vrot.lane.b32.xlu0 %v463, 84
  %v466 = vpop.permute.xlu0 %465
  %vm468 = vcmask 1048224
  %469 = vst.msk [vmem:[#allocation2] sm:$0xff] %vm468, %v466
  %vm470 = vcmask 326656
  %471 = vst.msk [vmem:[#allocation2 + $0x8] sm:$0xff] %vm470, %v466
  %v472 = vld [vmem:[%s0 + $0x8] sm:$0xff]
  %v473 = vld [vmem:[%s0 + $0x10] sm:$0xff]
  %v475 = vsel %vm113, %v473, 0
  %477 = vmatprep.subr.mxu0 %v39
  %478 = vmatpush1.msra.mxu0 %v38
  %479 = vmatprep.subr.mxu0 %v42
  %480 = vmatpush1.msra.mxu0 %v41
  %481 = vmatprep.subr.mxu0 %v45
  %482 = vmatpush1.msra.mxu0 %v44
  %483 = vmatprep.subr.mxu0 %v48
  %484 = vmatpush1.msra.mxu0 %v47
  %485 = vmatprep.subr.mxu0 %v51
  %486 = vmatpush1.msra.mxu0 %v50
  %487 = vmatprep.subr.mxu0 %v54
  %488 = vmatpush1.msra.mxu0 %v53
  %489 = vmatprep.subr.mxu0 %v57
  %490 = vmatpush1.msra.mxu0 %v56
  %491 = vmatprep.subr.mxu0 %v60
  %492 = vmatpush1.msra.mxu0 %v59
  %493 = vmatprep.subr.mxu0 %v63
  %494 = vmatpush1.msra.mxu0 %v62
  %495 = vmatprep.subr.mxu0 %v66
  %496 = vmatpush1.msra.mxu0 %v65
  %497 = vmatprep.subr.mxu0 %v69
  %498 = vmatpush1.msra.mxu0 %v68
  %499 = vmatprep.subr.mxu0 %v72
  %500 = vmatpush1.msra.mxu0 %v71
  %501 = vmatprep.subr.mxu0 %v75
  %502 = vmatpush1.msra.mxu0 %v74
  %503 = vmatprep.subr.mxu0 %v78
  %504 = vmatpush1.msra.mxu0 %v77
  %505 = vmatprep.subr.mxu0 %v81
  %506 = vmatpush1.msra.mxu0 %v80
  %507 = vmatprep.subr.mxu0 %v84
  %508 = vmatpush1.msra.mxu0 %v83
  %509 = vmatprep.subr.mxu0 %v87
  %510 = vmatpush1.msra.mxu0 %v86
  %511 = vmatprep.subr.mxu0 %v90
  %512 = vmatpush1.msra.mxu0 %v89
  %513 = vmatprep.subr.mxu0 %v93
  %514 = vmatpush1.msra.mxu0 %v92
  %515 = vmatprep.subr.mxu0 %v96
  %516 = vmatpush1.msra.mxu0 %v95
  %517 = vmatprep.subr.mxu0 %v99
  %518 = vmatpush1.msra.mxu0 %v98
  %519 = vmatprep.subr.mxu0 %v102
  %520 = vmatpush1.msra.mxu0 %v101
  %521 = vmatprep.subr.mxu0 %v105
  %522 = vmatpush1.msra.mxu0 %v104
  %523 = vmatprep.subr.mxu0 %v108
  %524 = vmatpush1.msra.mxu0 %v107
  %525 = vmatprep.subr.mxu0 0.0
  %526 = vmatpush1.msra.mxu0 0.0
  %527 = vmatprep.subr.mxu0 0.0
  %528 = vmatpush1.msra.mxu0 0.0
  %529 = vmatprep.subr.mxu0 0.0
  %530 = vmatpush1.msra.mxu0 0.0
  %531 = vmatprep.subr.mxu0 0.0
  %532 = vmatpush1.msra.mxu0 0.0
  %533 = vmatprep.subr.mxu0 0.0
  %534 = vmatpush1.msra.mxu0 0.0
  %535 = vmatprep.subr.mxu0 0.0
  %536 = vmatpush1.msra.mxu0 0.0
  %537 = vmatprep.subr.mxu0 0.0
  %538 = vmatpush1.msra.mxu0 0.0
  %539 = vmatprep.subr.mxu0 0.0
  %540 = vmatpush1.msra.mxu0 0.0
  %541 = vmatprep.mubr.f32.mxu0 %v475
  %542 = vmatmul.mubr.f32.gmra.mrb[0].mxu0 %v472
  %v543 = vpop.f32.mrb[0].mxu0
  %v544 = vadd.f32 0.0, %v543
  %v545 = vpop.f32.mrb[0].mxu0
  %v546 = vadd.f32 0.0, %v545
  %547 = vdwg.mxu0
  %548 = vmatprep.subr.mxu0 0.0
  %549 = vmatpush1.msra.mxu0 %v40
  %550 = vmatprep.subr.mxu0 0.0
  %551 = vmatpush1.msra.mxu0 %v43
  %552 = vmatprep.subr.mxu0 0.0
  %553 = vmatpush1.msra.mxu0 %v46
  %554 = vmatprep.subr.mxu0 0.0
  %555 = vmatpush1.msra.mxu0 %v49
  %556 = vmatprep.subr.mxu0 0.0
  %557 = vmatpush1.msra.mxu0 %v52
  %558 = vmatprep.subr.mxu0 0.0
  %559 = vmatpush1.msra.mxu0 %v55
  %560 = vmatprep.subr.mxu0 0.0
  %561 = vmatpush1.msra.mxu0 %v58
  %562 = vmatprep.subr.mxu0 0.0
  %563 = vmatpush1.msra.mxu0 %v61
  %564 = vmatprep.subr.mxu0 0.0
  %565 = vmatpush1.msra.mxu0 %v64
  %566 = vmatprep.subr.mxu0 0.0
  %567 = vmatpush1.msra.mxu0 %v67
  %568 = vmatprep.subr.mxu0 0.0
  %569 = vmatpush1.msra.mxu0 %v70
  %570 = vmatprep.subr.mxu0 0.0
  %571 = vmatpush1.msra.mxu0 %v73
  %572 = vmatprep.subr.mxu0 0.0
  %573 = vmatpush1.msra.mxu0 %v76
  %574 = vmatprep.subr.mxu0 0.0
  %575 = vmatpush1.msra.mxu0 %v79
  %576 = vmatprep.subr.mxu0 0.0
  %577 = vmatpush1.msra.mxu0 %v82
  %578 = vmatprep.subr.mxu0 0.0
  %579 = vmatpush1.msra.mxu0 %v85
  %580 = vmatprep.subr.mxu0 0.0
  %581 = vmatpush1.msra.mxu0 %v88
  %582 = vmatprep.subr.mxu0 0.0
  %583 = vmatpush1.msra.mxu0 %v91
  %584 = vmatprep.subr.mxu0 0.0
  %585 = vmatpush1.msra.mxu0 %v94
  %586 = vmatprep.subr.mxu0 0.0
  %587 = vmatpush1.msra.mxu0 %v97
  %588 = vmatprep.subr.mxu0 0.0
  %589 = vmatpush1.msra.mxu0 %v100
  %590 = vmatprep.subr.mxu0 0.0
  %591 = vmatpush1.msra.mxu0 %v103
  %592 = vmatprep.subr.mxu0 0.0
  %593 = vmatpush1.msra.mxu0 %v106
  %594 = vmatprep.subr.mxu0 0.0
  %595 = vmatpush1.msra.mxu0 %v109
  %596 = vmatprep.subr.mxu0 0.0
  %597 = vmatpush1.msra.mxu0 0.0
  %598 = vmatprep.subr.mxu0 0.0
  %599 = vmatpush1.msra.mxu0 0.0
  %600 = vmatprep.subr.mxu0 0.0
  %601 = vmatpush1.msra.mxu0 0.0
  %602 = vmatprep.subr.mxu0 0.0
  %603 = vmatpush1.msra.mxu0 0.0
  %604 = vmatprep.subr.mxu0 0.0
  %605 = vmatpush1.msra.mxu0 0.0
  %606 = vmatprep.subr.mxu0 0.0
  %607 = vmatpush1.msra.mxu0 0.0
  %608 = vmatprep.subr.mxu0 0.0
  %609 = vmatpush1.msra.mxu0 0.0
  %610 = vmatprep.subr.mxu0 0.0
  %611 = vmatpush1.msra.mxu0 0.0
  %612 = vmatprep.mubr.f32.mxu0 %v475
  %613 = vmatmul.mubr.f32.gmra.mrb[0].mxu0 %v472
  %v614 = vpop.f32.mrb[0].mxu0
  %v615 = vadd.f32 0.0, %v614
  %v616 = vpop.f32.mrb[0].mxu0
  %617 = vdwg.mxu0
  %620 = vrot.lane.b32.xlu0 %v544, 44
  %v621 = vpop.permute.xlu0 %620
  %622 = vrot.lane.b32.xlu0 %v546, 44
  %v623 = vpop.permute.xlu0 %622
  %v624 = vsel %vm264, %v621, %v623
  %v626 = vmax.f32 %v544, %v624
  %628 = vrot.lane.b32.xlu0 %v615, 44
  %v629 = vpop.permute.xlu0 %628
  %v630 = vsel %vm264, %v623, %v629
  %v632 = vmax.f32 %v546, %v630
  %634 = vrot.lane.b32.xlu0 %v632, 88
  %v635 = vpop.permute.xlu0 %634
  %v637 = vmax.f32 %v626, %v635
  %v638 = vadd.f32 %v637, %v283
  %v639 = vmax.f32 %v638, 0.0
  %641 = vrot.lane.b32.xlu0 %v639, 40
  %v642 = vpop.permute.xlu0 %641
  %vm644 = vcmask 1015104
  %645 = vst.msk [vmem:[#allocation2 + $0x8] sm:$0xff] %vm644, %v642
  %v646 = vld [vmem:[%s0 + $0x8] sm:$0xff]
  %v647 = vld [vmem:[%s0 + $0x10] sm:$0xff]
  %650 = vrot.lane.b32.xlu0 %v646, 64
  %v651 = vpop.permute.xlu0 %650
  %652 = vrot.lane.b32.xlu0 %v647, 64
  %v653 = vpop.permute.xlu0 %652
  %v654 = vsel %vm113, %v651, %v653
  %v656 = vsel %vm113, %v653, 0
  %658 = vmatprep.subr.mxu0 %v39
  %659 = vmatpush1.msra.mxu0 %v38
  %660 = vmatprep.subr.mxu0 %v42
  %661 = vmatpush1.msra.mxu0 %v41
  %662 = vmatprep.subr.mxu0 %v45
  %663 = vmatpush1.msra.mxu0 %v44
  %664 = vmatprep.subr.mxu0 %v48
  %665 = vmatpush1.msra.mxu0 %v47
  %666 = vmatprep.subr.mxu0 %v51
  %667 = vmatpush1.msra.mxu0 %v50
  %668 = vmatprep.subr.mxu0 %v54
  %669 = vmatpush1.msra.mxu0 %v53
  %670 = vmatprep.subr.mxu0 %v57
  %671 = vmatpush1.msra.mxu0 %v56
  %672 = vmatprep.subr.mxu0 %v60
  %673 = vmatpush1.msra.mxu0 %v59
  %674 = vmatprep.subr.mxu0 %v63
  %675 = vmatpush1.msra.mxu0 %v62
  %676 = vmatprep.subr.mxu0 %v66
  %677 = vmatpush1.msra.mxu0 %v65
  %678 = vmatprep.subr.mxu0 %v69
  %679 = vmatpush1.msra.mxu0 %v68
  %680 = vmatprep.subr.mxu0 %v72
  %681 = vmatpush1.msra.mxu0 %v71
  %682 = vmatprep.subr.mxu0 %v75
  %683 = vmatpush1.msra.mxu0 %v74
  %684 = vmatprep.subr.mxu0 %v78
  %685 = vmatpush1.msra.mxu0 %v77
  %686 = vmatprep.subr.mxu0 %v81
  %687 = vmatpush1.msra.mxu0 %v80
  %688 = vmatprep.subr.mxu0 %v84
  %689 = vmatpush1.msra.mxu0 %v83
  %690 = vmatprep.subr.mxu0 %v87
  %691 = vmatpush1.msra.mxu0 %v86
  %692 = vmatprep.subr.mxu0 %v90
  %693 = vmatpush1.msra.mxu0 %v89
  %694 = vmatprep.subr.mxu0 %v93
  %695 = vmatpush1.msra.mxu0 %v92
  %696 = vmatprep.subr.mxu0 %v96
  %697 = vmatpush1.msra.mxu0 %v95
  %698 = vmatprep.subr.mxu0 %v99
  %699 = vmatpush1.msra.mxu0 %v98
  %700 = vmatprep.subr.mxu0 %v102
  %701 = vmatpush1.msra.mxu0 %v101
  %702 = vmatprep.subr.mxu0 %v105
  %703 = vmatpush1.msra.mxu0 %v104
  %704 = vmatprep.subr.mxu0 %v108
  %705 = vmatpush1.msra.mxu0 %v107
  %706 = vmatprep.subr.mxu0 0.0
  %707 = vmatpush1.msra.mxu0 0.0
  %708 = vmatprep.subr.mxu0 0.0
  %709 = vmatpush1.msra.mxu0 0.0
  %710 = vmatprep.subr.mxu0 0.0
  %711 = vmatpush1.msra.mxu0 0.0
  %712 = vmatprep.subr.mxu0 0.0
  %713 = vmatpush1.msra.mxu0 0.0
  %714 = vmatprep.subr.mxu0 0.0
  %715 = vmatpush1.msra.mxu0 0.0
  %716 = vmatprep.subr.mxu0 0.0
  %717 = vmatpush1.msra.mxu0 0.0
  %718 = vmatprep.subr.mxu0 0.0
  %719 = vmatpush1.msra.mxu0 0.0
  %720 = vmatprep.subr.mxu0 0.0
  %721 = vmatpush1.msra.mxu0 0.0
  %722 = vmatprep.mubr.f32.mxu0 %v656
  %723 = vmatmul.mubr.f32.gmra.mrb[0].mxu0 %v654
  %v724 = vpop.f32.mrb[0].mxu0
  %v725 = vadd.f32 0.0, %v724
  %v726 = vpop.f32.mrb[0].mxu0
  %v727 = vadd.f32 0.0, %v726
  %728 = vdwg.mxu0
  %729 = vmatprep.subr.mxu0 0.0
  %730 = vmatpush1.msra.mxu0 %v40
  %731 = vmatprep.subr.mxu0 0.0
  %732 = vmatpush1.msra.mxu0 %v43
  %733 = vmatprep.subr.mxu0 0.0
  %734 = vmatpush1.msra.mxu0 %v46
  %735 = vmatprep.subr.mxu0 0.0
  %736 = vmatpush1.msra.mxu0 %v49
  %737 = vmatprep.subr.mxu0 0.0
  %738 = vmatpush1.msra.mxu0 %v52
  %739 = vmatprep.subr.mxu0 0.0
  %740 = vmatpush1.msra.mxu0 %v55
  %741 = vmatprep.subr.mxu0 0.0
  %742 = vmatpush1.msra.mxu0 %v58
  %743 = vmatprep.subr.mxu0 0.0
  %744 = vmatpush1.msra.mxu0 %v61
  %745 = vmatprep.subr.mxu0 0.0
  %746 = vmatpush1.msra.mxu0 %v64
  %747 = vmatprep.subr.mxu0 0.0
  %748 = vmatpush1.msra.mxu0 %v67
  %749 = vmatprep.subr.mxu0 0.0
  %750 = vmatpush1.msra.mxu0 %v70
  %751 = vmatprep.subr.mxu0 0.0
  %752 = vmatpush1.msra.mxu0 %v73
  %753 = vmatprep.subr.mxu0 0.0
  %754 = vmatpush1.msra.mxu0 %v76
  %755 = vmatprep.subr.mxu0 0.0
  %756 = vmatpush1.msra.mxu0 %v79
  %757 = vmatprep.subr.mxu0 0.0
  %758 = vmatpush1.msra.mxu0 %v82
  %759 = vmatprep.subr.mxu0 0.0
  %760 = vmatpush1.msra.mxu0 %v85
  %761 = vmatprep.subr.mxu0 0.0
  %762 = vmatpush1.msra.mxu0 %v88
  %763 = vmatprep.subr.mxu0 0.0
  %764 = vmatpush1.msra.mxu0 %v91
  %765 = vmatprep.subr.mxu0 0.0
  %766 = vmatpush1.msra.mxu0 %v94
  %767 = vmatprep.subr.mxu0 0.0
  %768 = vmatpush1.msra.mxu0 %v97
  %769 = vmatprep.subr.mxu0 0.0
  %770 = vmatpush1.msra.mxu0 %v100
  %771 = vmatprep.subr.mxu0 0.0
  %772 = vmatpush1.msra.mxu0 %v103
  %773 = vmatprep.subr.mxu0 0.0
  %774 = vmatpush1.msra.mxu0 %v106
  %775 = vmatprep.subr.mxu0 0.0
  %776 = vmatpush1.msra.mxu0 %v109
  %777 = vmatprep.subr.mxu0 0.0
  %778 = vmatpush1.msra.mxu0 0.0
  %779 = vmatprep.subr.mxu0 0.0
  %780 = vmatpush1.msra.mxu0 0.0
  %781 = vmatprep.subr.mxu0 0.0
  %782 = vmatpush1.msra.mxu0 0.0
  %783 = vmatprep.subr.mxu0 0.0
  %784 = vmatpush1.msra.mxu0 0.0
  %785 = vmatprep.subr.mxu0 0.0
  %786 = vmatpush1.msra.mxu0 0.0
  %787 = vmatprep.subr.mxu0 0.0
  %788 = vmatpush1.msra.mxu0 0.0
  %789 = vmatprep.subr.mxu0 0.0
  %790 = vmatpush1.msra.mxu0 0.0
  %791 = vmatprep.subr.mxu0 0.0
  %792 = vmatpush1.msra.mxu0 0.0
  %793 = vmatprep.mubr.f32.mxu0 %v656
  %794 = vmatmul.mubr.f32.gmra.mrb[0].mxu0 %v654
  %v795 = vpop.f32.mrb[0].mxu0
  %v796 = vadd.f32 0.0, %v795
  %v797 = vpop.f32.mrb[0].mxu0
  %798 = vdwg.mxu0
  %801 = vrot.lane.b32.xlu0 %v725, 44
  %v802 = vpop.permute.xlu0 %801
  %803 = vrot.lane.b32.xlu0 %v727, 44
  %v804 = vpop.permute.xlu0 %803
  %v805 = vsel %vm264, %v802, %v804
  %v807 = vmax.f32 %v725, %v805
  %809 = vrot.lane.b32.xlu0 %v796, 44
  %v810 = vpop.permute.xlu0 %809
  %v811 = vsel %vm264, %v804, %v810
  %v813 = vmax.f32 %v727, %v811
  %815 = vrot.lane.b32.xlu0 %v813, 88
  %v816 = vpop.permute.xlu0 %815
  %v818 = vmax.f32 %v807, %v816
  %v819 = vadd.f32 %v818, %v283
  %v820 = vmax.f32 %v819, 0.0
  %822 = vrot.lane.b32.xlu0 %v820, 124
  %v823 = vpop.permute.xlu0 %822
  %vm825 = vcmask 1048544
  %826 = vst.msk [vmem:[#allocation2 + $0x8] sm:$0xff] %vm825, %v823
  %vm827 = vcmask 654336
  %828 = vst.msk [vmem:[#allocation2 + $0x10] sm:$0xff] %vm827, %v823
  %v829 = vld [vmem:[%s0 + $0x10] sm:$0xff]
  %v830 = vld [vmem:[%s0 + $0x18] sm:$0xff]
  %v832 = vsel %vm113, %v830, 0
  %834 = vmatprep.subr.mxu0 %v39
  %835 = vmatpush1.msra.mxu0 %v38
  %836 = vmatprep.subr.mxu0 %v42
  %837 = vmatpush1.msra.mxu0 %v41
  %838 = vmatprep.subr.mxu0 %v45
  %839 = vmatpush1.msra.mxu0 %v44
  %840 = vmatprep.subr.mxu0 %v48
  %841 = vmatpush1.msra.mxu0 %v47
  %842 = vmatprep.subr.mxu0 %v51
  %843 = vmatpush1.msra.mxu0 %v50
  %844 = vmatprep.subr.mxu0 %v54
  %845 = vmatpush1.msra.mxu0 %v53
  %846 = vmatprep.subr.mxu0 %v57
  %847 = vmatpush1.msra.mxu0 %v56
  %848 = vmatprep.subr.mxu0 %v60
  %849 = vmatpush1.msra.mxu0 %v59
  %850 = vmatprep.subr.mxu0 %v63
  %851 = vmatpush1.msra.mxu0 %v62
  %852 = vmatprep.subr.mxu0 %v66
  %853 = vmatpush1.msra.mxu0 %v65
  %854 = vmatprep.subr.mxu0 %v69
  %855 = vmatpush1.msra.mxu0 %v68
  %856 = vmatprep.subr.mxu0 %v72
  %857 = vmatpush1.msra.mxu0 %v71
  %858 = vmatprep.subr.mxu0 %v75
  %859 = vmatpush1.msra.mxu0 %v74
  %860 = vmatprep.subr.mxu0 %v78
  %861 = vmatpush1.msra.mxu0 %v77
  %862 = vmatprep.subr.mxu0 %v81
  %863 = vmatpush1.msra.mxu0 %v80
  %864 = vmatprep.subr.mxu0 %v84
  %865 = vmatpush1.msra.mxu0 %v83
  %866 = vmatprep.subr.mxu0 %v87
  %867 = vmatpush1.msra.mxu0 %v86
  %868 = vmatprep.subr.mxu0 %v90
  %869 = vmatpush1.msra.mxu0 %v89
  %870 = vmatprep.subr.mxu0 %v93
  %871 = vmatpush1.msra.mxu0 %v92
  %872 = vmatprep.subr.mxu0 %v96
  %873 = vmatpush1.msra.mxu0 %v95
  %874 = vmatprep.subr.mxu0 %v99
  %875 = vmatpush1.msra.mxu0 %v98
  %876 = vmatprep.subr.mxu0 %v102
  %877 = vmatpush1.msra.mxu0 %v101
  %878 = vmatprep.subr.mxu0 %v105
  %879 = vmatpush1.msra.mxu0 %v104
  %880 = vmatprep.subr.mxu0 %v108
  %881 = vmatpush1.msra.mxu0 %v107
  %882 = vmatprep.subr.mxu0 0.0
  %883 = vmatpush1.msra.mxu0 0.0
  %884 = vmatprep.subr.mxu0 0.0
  %885 = vmatpush1.msra.mxu0 0.0
  %886 = vmatprep.subr.mxu0 0.0
  %887 = vmatpush1.msra.mxu0 0.0
  %888 = vmatprep.subr.mxu0 0.0
  %889 = vmatpush1.msra.mxu0 0.0
  %890 = vmatprep.subr.mxu0 0.0
  %891 = vmatpush1.msra.mxu0 0.0
  %892 = vmatprep.subr.mxu0 0.0
  %893 = vmatpush1.msra.mxu0 0.0
  %894 = vmatprep.subr.mxu0 0.0
  %895 = vmatpush1.msra.mxu0 0.0
  %896 = vmatprep.subr.mxu0 0.0
  %897 = vmatpush1.msra.mxu0 0.0
  %898 = vmatprep.mubr.f32.mxu0 %v832
  %899 = vmatmul.mubr.f32.gmra.mrb[0].mxu0 %v829
  %v900 = vpop.f32.mrb[0].mxu0
  %v901 = vadd.f32 0.0, %v900
  %v902 = vpop.f32.mrb[0].mxu0
  %v903 = vadd.f32 0.0, %v902
  %904 = vdwg.mxu0
  %905 = vmatprep.subr.mxu0 0.0
  %906 = vmatpush1.msra.mxu0 %v40
  %907 = vmatprep.subr.mxu0 0.0
  %908 = vmatpush1.msra.mxu0 %v43
  %909 = vmatprep.subr.mxu0 0.0
  %910 = vmatpush1.msra.mxu0 %v46
  %911 = vmatprep.subr.mxu0 0.0
  %912 = vmatpush1.msra.mxu0 %v49
  %913 = vmatprep.subr.mxu0 0.0
  %914 = vmatpush1.msra.mxu0 %v52
  %915 = vmatprep.subr.mxu0 0.0
  %916 = vmatpush1.msra.mxu0 %v55
  %917 = vmatprep.subr.mxu0 0.0
  %918 = vmatpush1.msra.mxu0 %v58
  %919 = vmatprep.subr.mxu0 0.0
  %920 = vmatpush1.msra.mxu0 %v61
  %921 = vmatprep.subr.mxu0 0.0
  %922 = vmatpush1.msra.mxu0 %v64
  %923 = vmatprep.subr.mxu0 0.0
  %924 = vmatpush1.msra.mxu0 %v67
  %925 = vmatprep.subr.mxu0 0.0
  %926 = vmatpush1.msra.mxu0 %v70
  %927 = vmatprep.subr.mxu0 0.0
  %928 = vmatpush1.msra.mxu0 %v73
  %929 = vmatprep.subr.mxu0 0.0
  %930 = vmatpush1.msra.mxu0 %v76
  %931 = vmatprep.subr.mxu0 0.0
  %932 = vmatpush1.msra.mxu0 %v79
  %933 = vmatprep.subr.mxu0 0.0
  %934 = vmatpush1.msra.mxu0 %v82
  %935 = vmatprep.subr.mxu0 0.0
  %936 = vmatpush1.msra.mxu0 %v85
  %937 = vmatprep.subr.mxu0 0.0
  %938 = vmatpush1.msra.mxu0 %v88
  %939 = vmatprep.subr.mxu0 0.0
  %940 = vmatpush1.msra.mxu0 %v91
  %941 = vmatprep.subr.mxu0 0.0
  %942 = vmatpush1.msra.mxu0 %v94
  %943 = vmatprep.subr.mxu0 0.0
  %944 = vmatpush1.msra.mxu0 %v97
  %945 = vmatprep.subr.mxu0 0.0
  %946 = vmatpush1.msra.mxu0 %v100
  %947 = vmatprep.subr.mxu0 0.0
  %948 = vmatpush1.msra.mxu0 %v103
  %949 = vmatprep.subr.mxu0 0.0
  %950 = vmatpush1.msra.mxu0 %v106
  %951 = vmatprep.subr.mxu0 0.0
  %952 = vmatpush1.msra.mxu0 %v109
  %953 = vmatprep.subr.mxu0 0.0
  %954 = vmatpush1.msra.mxu0 0.0
  %955 = vmatprep.subr.mxu0 0.0
  %956 = vmatpush1.msra.mxu0 0.0
  %957 = vmatprep.subr.mxu0 0.0
  %958 = vmatpush1.msra.mxu0 0.0
  %959 = vmatprep.subr.mxu0 0.0
  %960 = vmatpush1.msra.mxu0 0.0
  %961 = vmatprep.subr.mxu0 0.0
  %962 = vmatpush1.msra.mxu0 0.0
  %963 = vmatprep.subr.mxu0 0.0
  %964 = vmatpush1.msra.mxu0 0.0
  %965 = vmatprep.subr.mxu0 0.0
  %966 = vmatpush1.msra.mxu0 0.0
  %967 = vmatprep.subr.mxu0 0.0
  %968 = vmatpush1.msra.mxu0 0.0
  %969 = vmatprep.mubr.f32.mxu0 %v832
  %970 = vmatmul.mubr.f32.gmra.mrb[0].mxu0 %v829
  %v971 = vpop.f32.mrb[0].mxu0
  %v972 = vadd.f32 0.0, %v971
  %v973 = vpop.f32.mrb[0].mxu0
  %974 = vdwg.mxu0
  %977 = vrot.lane.b32.xlu0 %v901, 44
  %v978 = vpop.permute.xlu0 %977
  %979 = vrot.lane.b32.xlu0 %v903, 44
  %v980 = vpop.permute.xlu0 %979
  %v981 = vsel %vm264, %v978, %v980
  %v983 = vmax.f32 %v901, %v981
  %985 = vrot.lane.b32.xlu0 %v972, 44
  %v986 = vpop.permute.xlu0 %985
  %v987 = vsel %vm264, %v980, %v986
  %v989 = vmax.f32 %v903, %v987
  %991 = vrot.lane.b32.xlu0 %v989, 88
  %v992 = vpop.permute.xlu0 %991
  %v994 = vmax.f32 %v983, %v992
  %v995 = vadd.f32 %v994, %v283
  %v996 = vmax.f32 %v995, 0.0
  %998 = vrot.lane.b32.xlu0 %v996, 80
  %v999 = vpop.permute.xlu0 %998
  %vm1001 = vcmask 1048192
  %1002 = vst.msk [vmem:[#allocation2 + $0x10] sm:$0xff] %vm1001, %v999
  %vm1003 = vcmask 293888
  %1004 = vst.msk [vmem:[#allocation2 + $0x18] sm:$0xff] %vm1003, %v999
  %v1005 = vld [vmem:[%s0 + $0x10] sm:$0xff]
  %v1006 = vld [vmem:[%s0 + $0x18] sm:$0xff]
  %1009 = vrot.lane.b32.xlu0 %v1005, 64
  %v1010 = vpop.permute.xlu0 %1009
  %1011 = vrot.lane.b32.xlu0 %v1006, 64
  %v1012 = vpop.permute.xlu0 %1011
  %v1013 = vsel %vm113, %v1010, %v1012
  %v1015 = vsel %vm113, %v1012, 0
  %1017 = vmatprep.subr.mxu0 %v39
  %1018 = vmatpush1.msra.mxu0 %v38
  %1019 = vmatprep.subr.mxu0 %v42
  %1020 = vmatpush1.msra.mxu0 %v41
  %1021 = vmatprep.subr.mxu0 %v45
  %1022 = vmatpush1.msra.mxu0 %v44
  %1023 = vmatprep.subr.mxu0 %v48
  %1024 = vmatpush1.msra.mxu0 %v47
  %1025 = vmatprep.subr.mxu0 %v51
  %1026 = vmatpush1.msra.mxu0 %v50
  %1027 = vmatprep.subr.mxu0 %v54
  %1028 = vmatpush1.msra.mxu0 %v53
  %1029 = vmatprep.subr.mxu0 %v57
  %1030 = vmatpush1.msra.mxu0 %v56
  %1031 = vmatprep.subr.mxu0 %v60
  %1032 = vmatpush1.msra.mxu0 %v59
  %1033 = vmatprep.subr.mxu0 %v63
  %1034 = vmatpush1.msra.mxu0 %v62
  %1035 = vmatprep.subr.mxu0 %v66
  %1036 = vmatpush1.msra.mxu0 %v65
  %1037 = vmatprep.subr.mxu0 %v69
  %1038 = vmatpush1.msra.mxu0 %v68
  %1039 = vmatprep.subr.mxu0 %v72
  %1040 = vmatpush1.msra.mxu0 %v71
  %1041 = vmatprep.subr.mxu0 %v75
  %1042 = vmatpush1.msra.mxu0 %v74
  %1043 = vmatprep.subr.mxu0 %v78
  %1044 = vmatpush1.msra.mxu0 %v77
  %1045 = vmatprep.subr.mxu0 %v81
  %1046 = vmatpush1.msra.mxu0 %v80
  %1047 = vmatprep.subr.mxu0 %v84
  %1048 = vmatpush1.msra.mxu0 %v83
  %1049 = vmatprep.subr.mxu0 %v87
  %1050 = vmatpush1.msra.mxu0 %v86
  %1051 = vmatprep.subr.mxu0 %v90
  %1052 = vmatpush1.msra.mxu0 %v89
  %1053 = vmatprep.subr.mxu0 %v93
  %1054 = vmatpush1.msra.mxu0 %v92
  %1055 = vmatprep.subr.mxu0 %v96
  %1056 = vmatpush1.msra.mxu0 %v95
  %1057 = vmatprep.subr.mxu0 %v99
  %1058 = vmatpush1.msra.mxu0 %v98
  %1059 = vmatprep.subr.mxu0 %v102
  %1060 = vmatpush1.msra.mxu0 %v101
  %1061 = vmatprep.subr.mxu0 %v105
  %1062 = vmatpush1.msra.mxu0 %v104
  %1063 = vmatprep.subr.mxu0 %v108
  %1064 = vmatpush1.msra.mxu0 %v107
  %1065 = vmatprep.subr.mxu0 0.0
  %1066 = vmatpush1.msra.mxu0 0.0
  %1067 = vmatprep.subr.mxu0 0.0
  %1068 = vmatpush1.msra.mxu0 0.0
  %1069 = vmatprep.subr.mxu0 0.0
  %1070 = vmatpush1.msra.mxu0 0.0
  %1071 = vmatprep.subr.mxu0 0.0
  %1072 = vmatpush1.msra.mxu0 0.0
  %1073 = vmatprep.subr.mxu0 0.0
  %1074 = vmatpush1.msra.mxu0 0.0
  %1075 = vmatprep.subr.mxu0 0.0
  %1076 = vmatpush1.msra.mxu0 0.0
  %1077 = vmatprep.subr.mxu0 0.0
  %1078 = vmatpush1.msra.mxu0 0.0
  %1079 = vmatprep.subr.mxu0 0.0
  %1080 = vmatpush1.msra.mxu0 0.0
  %1081 = vmatprep.mubr.f32.mxu0 %v1015
  %1082 = vmatmul.mubr.f32.gmra.mrb[0].mxu0 %v1013
  %v1083 = vpop.f32.mrb[0].mxu0
  %v1084 = vadd.f32 0.0, %v1083
  %v1085 = vpop.f32.mrb[0].mxu0
  %v1086 = vadd.f32 0.0, %v1085
  %1087 = vdwg.mxu0
  %1088 = vmatprep.subr.mxu0 0.0
  %1089 = vmatpush1.msra.mxu0 %v40
  %1090 = vmatprep.subr.mxu0 0.0
  %1091 = vmatpush1.msra.mxu0 %v43
  %1092 = vmatprep.subr.mxu0 0.0
  %1093 = vmatpush1.msra.mxu0 %v46
  %1094 = vmatprep.subr.mxu0 0.0
  %1095 = vmatpush1.msra.mxu0 %v49
  %1096 = vmatprep.subr.mxu0 0.0
  %1097 = vmatpush1.msra.mxu0 %v52
  %1098 = vmatprep.subr.mxu0 0.0
  %1099 = vmatpush1.msra.mxu0 %v55
  %1100 = vmatprep.subr.mxu0 0.0
  %1101 = vmatpush1.msra.mxu0 %v58
  %1102 = vmatprep.subr.mxu0 0.0
  %1103 = vmatpush1.msra.mxu0 %v61
  %1104 = vmatprep.subr.mxu0 0.0
  %1105 = vmatpush1.msra.mxu0 %v64
  %1106 = vmatprep.subr.mxu0 0.0
  %1107 = vmatpush1.msra.mxu0 %v67
  %1108 = vmatprep.subr.mxu0 0.0
  %1109 = vmatpush1.msra.mxu0 %v70
  %1110 = vmatprep.subr.mxu0 0.0
  %1111 = vmatpush1.msra.mxu0 %v73
  %1112 = vmatprep.subr.mxu0 0.0
  %1113 = vmatpush1.msra.mxu0 %v76
  %1114 = vmatprep.subr.mxu0 0.0
  %1115 = vmatpush1.msra.mxu0 %v79
  %1116 = vmatprep.subr.mxu0 0.0
  %1117 = vmatpush1.msra.mxu0 %v82
  %1118 = vmatprep.subr.mxu0 0.0
  %1119 = vmatpush1.msra.mxu0 %v85
  %1120 = vmatprep.subr.mxu0 0.0
  %1121 = vmatpush1.msra.mxu0 %v88
  %1122 = vmatprep.subr.mxu0 0.0
  %1123 = vmatpush1.msra.mxu0 %v91
  %1124 = vmatprep.subr.mxu0 0.0
  %1125 = vmatpush1.msra.mxu0 %v94
  %1126 = vmatprep.subr.mxu0 0.0
  %1127 = vmatpush1.msra.mxu0 %v97
  %1128 = vmatprep.subr.mxu0 0.0
  %1129 = vmatpush1.msra.mxu0 %v100
  %1130 = vmatprep.subr.mxu0 0.0
  %1131 = vmatpush1.msra.mxu0 %v103
  %1132 = vmatprep.subr.mxu0 0.0
  %1133 = vmatpush1.msra.mxu0 %v106
  %1134 = vmatprep.subr.mxu0 0.0
  %1135 = vmatpush1.msra.mxu0 %v109
  %1136 = vmatprep.subr.mxu0 0.0
  %1137 = vmatpush1.msra.mxu0 0.0
  %1138 = vmatprep.subr.mxu0 0.0
  %1139 = vmatpush1.msra.mxu0 0.0
  %1140 = vmatprep.subr.mxu0 0.0
  %1141 = vmatpush1.msra.mxu0 0.0
  %1142 = vmatprep.subr.mxu0 0.0
  %1143 = vmatpush1.msra.mxu0 0.0
  %1144 = vmatprep.subr.mxu0 0.0
  %1145 = vmatpush1.msra.mxu0 0.0
  %1146 = vmatprep.subr.mxu0 0.0
  %1147 = vmatpush1.msra.mxu0 0.0
  %1148 = vmatprep.subr.mxu0 0.0
  %1149 = vmatpush1.msra.mxu0 0.0
  %1150 = vmatprep.subr.mxu0 0.0
  %1151 = vmatpush1.msra.mxu0 0.0
  %1152 = vmatprep.mubr.f32.mxu0 %v1015
  %1153 = vmatmul.mubr.f32.gmra.mrb[0].mxu0 %v1013
  %v1154 = vpop.f32.mrb[0].mxu0
  %v1155 = vadd.f32 0.0, %v1154
  %v1156 = vpop.f32.mrb[0].mxu0
  %1157 = vdwg.mxu0
  %1160 = vrot.lane.b32.xlu0 %v1084, 44
  %v1161 = vpop.permute.xlu0 %1160
  %1162 = vrot.lane.b32.xlu0 %v1086, 44
  %v1163 = vpop.permute.xlu0 %1162
  %v1164 = vsel %vm264, %v1161, %v1163
  %v1166 = vmax.f32 %v1084, %v1164
  %1168 = vrot.lane.b32.xlu0 %v1155, 44
  %v1169 = vpop.permute.xlu0 %1168
  %v1170 = vsel %vm264, %v1163, %v1169
  %v1172 = vmax.f32 %v1086, %v1170
  %1174 = vrot.lane.b32.xlu0 %v1172, 88
  %v1175 = vpop.permute.xlu0 %1174
  %v1177 = vmax.f32 %v1166, %v1175
  %v1178 = vadd.f32 %v1177, %v283
  %v1179 = vmax.f32 %v1178, 0.0
  %1181 = vrot.lane.b32.xlu0 %v1179, 36
  %v1182 = vpop.permute.xlu0 %1181
  %vm1184 = vcmask 982304
  %1185 = vst.msk [vmem:[#allocation2 + $0x18] sm:$0xff] %vm1184, %v1182
  %v1186 = vld [vmem:[%s0 + $0x18] sm:$0xff]
  %v1187 = vld [vmem:[%s0 + $0x20] sm:$0xff]
  %v1189 = vsel %vm113, %v1187, 0
  %1191 = vmatprep.subr.mxu0 %v39
  %1192 = vmatpush1.msra.mxu0 %v38
  %1193 = vmatprep.subr.mxu0 %v42
  %1194 = vmatpush1.msra.mxu0 %v41
  %1195 = vmatprep.subr.mxu0 %v45
  %1196 = vmatpush1.msra.mxu0 %v44
  %1197 = vmatprep.subr.mxu0 %v48
  %1198 = vmatpush1.msra.mxu0 %v47
  %1199 = vmatprep.subr.mxu0 %v51
  %1200 = vmatpush1.msra.mxu0 %v50
  %1201 = vmatprep.subr.mxu0 %v54
  %1202 = vmatpush1.msra.mxu0 %v53
  %1203 = vmatprep.subr.mxu0 %v57
  %1204 = vmatpush1.msra.mxu0 %v56
  %1205 = vmatprep.subr.mxu0 %v60
  %1206 = vmatpush1.msra.mxu0 %v59
  %1207 = vmatprep.subr.mxu0 %v63
  %1208 = vmatpush1.msra.mxu0 %v62
  %1209 = vmatprep.subr.mxu0 %v66
  %1210 = vmatpush1.msra.mxu0 %v65
  %1211 = vmatprep.subr.mxu0 %v69
  %1212 = vmatpush1.msra.mxu0 %v68
  %1213 = vmatprep.subr.mxu0 %v72
  %1214 = vmatpush1.msra.mxu0 %v71
  %1215 = vmatprep.subr.mxu0 %v75
  %1216 = vmatpush1.msra.mxu0 %v74
  %1217 = vmatprep.subr.mxu0 %v78
  %1218 = vmatpush1.msra.mxu0 %v77
  %1219 = vmatprep.subr.mxu0 %v81
  %1220 = vmatpush1.msra.mxu0 %v80
  %1221 = vmatprep.subr.mxu0 %v84
  %1222 = vmatpush1.msra.mxu0 %v83
  %1223 = vmatprep.subr.mxu0 %v87
  %1224 = vmatpush1.msra.mxu0 %v86
  %1225 = vmatprep.subr.mxu0 %v90
  %1226 = vmatpush1.msra.mxu0 %v89
  %1227 = vmatprep.subr.mxu0 %v93
  %1228 = vmatpush1.msra.mxu0 %v92
  %1229 = vmatprep.subr.mxu0 %v96
  %1230 = vmatpush1.msra.mxu0 %v95
  %1231 = vmatprep.subr.mxu0 %v99
  %1232 = vmatpush1.msra.mxu0 %v98
  %1233 = vmatprep.subr.mxu0 %v102
  %1234 = vmatpush1.msra.mxu0 %v101
  %1235 = vmatprep.subr.mxu0 %v105
  %1236 = vmatpush1.msra.mxu0 %v104
  %1237 = vmatprep.subr.mxu0 %v108
  %1238 = vmatpush1.msra.mxu0 %v107
  %1239 = vmatprep.subr.mxu0 0.0
  %1240 = vmatpush1.msra.mxu0 0.0
  %1241 = vmatprep.subr.mxu0 0.0
  %1242 = vmatpush1.msra.mxu0 0.0
  %1243 = vmatprep.subr.mxu0 0.0
  %1244 = vmatpush1.msra.mxu0 0.0
  %1245 = vmatprep.subr.mxu0 0.0
  %1246 = vmatpush1.msra.mxu0 0.0
  %1247 = vmatprep.subr.mxu0 0.0
  %1248 = vmatpush1.msra.mxu0 0.0
  %1249 = vmatprep.subr.mxu0 0.0
  %1250 = vmatpush1.msra.mxu0 0.0
  %1251 = vmatprep.subr.mxu0 0.0
  %1252 = vmatpush1.msra.mxu0 0.0
  %1253 = vmatprep.subr.mxu0 0.0
  %1254 = vmatpush1.msra.mxu0 0.0
  %1255 = vmatprep.mubr.f32.mxu0 %v1189
  %1256 = vmatmul.mubr.f32.gmra.mrb[0].mxu0 %v1186
  %v1257 = vpop.f32.mrb[0].mxu0
  %v1258 = vadd.f32 0.0, %v1257
  %v1259 = vpop.f32.mrb[0].mxu0
  %v1260 = vadd.f32 0.0, %v1259
  %1261 = vdwg.mxu0
  %1262 = vmatprep.subr.mxu0 0.0
  %1263 = vmatpush1.msra.mxu0 %v40
  %1264 = vmatprep.subr.mxu0 0.0
  %1265 = vmatpush1.msra.mxu0 %v43
  %1266 = vmatprep.subr.mxu0 0.0
  %1267 = vmatpush1.msra.mxu0 %v46
  %1268 = vmatprep.subr.mxu0 0.0
  %1269 = vmatpush1.msra.mxu0 %v49
  %1270 = vmatprep.subr.mxu0 0.0
  %1271 = vmatpush1.msra.mxu0 %v52
  %1272 = vmatprep.subr.mxu0 0.0
  %1273 = vmatpush1.msra.mxu0 %v55
  %1274 = vmatprep.subr.mxu0 0.0
  %1275 = vmatpush1.msra.mxu0 %v58
  %1276 = vmatprep.subr.mxu0 0.0
  %1277 = vmatpush1.msra.mxu0 %v61
  %1278 = vmatprep.subr.mxu0 0.0
  %1279 = vmatpush1.msra.mxu0 %v64
  %1280 = vmatprep.subr.mxu0 0.0
  %1281 = vmatpush1.msra.mxu0 %v67
  %1282 = vmatprep.subr.mxu0 0.0
  %1283 = vmatpush1.msra.mxu0 %v70
  %1284 = vmatprep.subr.mxu0 0.0
  %1285 = vmatpush1.msra.mxu0 %v73
  %1286 = vmatprep.subr.mxu0 0.0
  %1287 = vmatpush1.msra.mxu0 %v76
  %1288 = vmatprep.subr.mxu0 0.0
  %1289 = vmatpush1.msra.mxu0 %v79
  %1290 = vmatprep.subr.mxu0 0.0
  %1291 = vmatpush1.msra.mxu0 %v82
  %1292 = vmatprep.subr.mxu0 0.0
  %1293 = vmatpush1.msra.mxu0 %v85
  %1294 = vmatprep.subr.mxu0 0.0
  %1295 = vmatpush1.msra.mxu0 %v88
  %1296 = vmatprep.subr.mxu0 0.0
  %1297 = vmatpush1.msra.mxu0 %v91
  %1298 = vmatprep.subr.mxu0 0.0
  %1299 = vmatpush1.msra.mxu0 %v94
  %1300 = vmatprep.subr.mxu0 0.0
  %1301 = vmatpush1.msra.mxu0 %v97
  %1302 = vmatprep.subr.mxu0 0.0
  %1303 = vmatpush1.msra.mxu0 %v100
  %1304 = vmatprep.subr.mxu0 0.0
  %1305 = vmatpush1.msra.mxu0 %v103
  %1306 = vmatprep.subr.mxu0 0.0
  %1307 = vmatpush1.msra.mxu0 %v106
  %1308 = vmatprep.subr.mxu0 0.0
  %1309 = vmatpush1.msra.mxu0 %v109
  %1310 = vmatprep.subr.mxu0 0.0
  %1311 = vmatpush1.msra.mxu0 0.0
  %1312 = vmatprep.subr.mxu0 0.0
  %1313 = vmatpush1.msra.mxu0 0.0
  %1314 = vmatprep.subr.mxu0 0.0
  %1315 = vmatpush1.msra.mxu0 0.0
  %1316 = vmatprep.subr.mxu0 0.0
  %1317 = vmatpush1.msra.mxu0 0.0
  %1318 = vmatprep.subr.mxu0 0.0
  %1319 = vmatpush1.msra.mxu0 0.0
  %1320 = vmatprep.subr.mxu0 0.0
  %1321 = vmatpush1.msra.mxu0 0.0
  %1322 = vmatprep.subr.mxu0 0.0
  %1323 = vmatpush1.msra.mxu0 0.0
  %1324 = vmatprep.subr.mxu0 0.0
  %1325 = vmatpush1.msra.mxu0 0.0
  %1326 = vmatprep.mubr.f32.mxu0 %v1189
  %1327 = vmatmul.mubr.f32.gmra.mrb[0].mxu0 %v1186
  %v1328 = vpop.f32.mrb[0].mxu0
  %v1329 = vadd.f32 0.0, %v1328
  %v1330 = vpop.f32.mrb[0].mxu0
  %1331 = vdwg.mxu0
  %1334 = vrot.lane.b32.xlu0 %v1258, 44
  %v1335 = vpop.permute.xlu0 %1334
  %1336 = vrot.lane.b32.xlu0 %v1260, 44
  %v1337 = vpop.permute.xlu0 %1336
  %v1338 = vsel %vm264, %v1335, %v1337
  %v1340 = vmax.f32 %v1258, %v1338
  %1342 = vrot.lane.b32.xlu0 %v1329, 44
  %v1343 = vpop.permute.xlu0 %1342
  %v1344 = vsel %vm264, %v1337, %v1343
  %v1346 = vmax.f32 %v1260, %v1344
  %1348 = vrot.lane.b32.xlu0 %v1346, 88
  %v1349 = vpop.permute.xlu0 %1348
  %v1351 = vmax.f32 %v1340, %v1349
  %v1352 = vadd.f32 %v1351, %v283
  %v1353 = vmax.f32 %v1352, 0.0
  %1355 = vrot.lane.b32.xlu0 %v1353, 120
  %v1356 = vpop.permute.xlu0 %1355
  %vm1358 = vcmask 1048512
  %1359 = vst.msk [vmem:[#allocation2 + $0x18] sm:$0xff] %vm1358, %v1356
  %vm1360 = vcmask 621568
  %1361 = vst.msk [vmem:[#allocation2 + $0x20] sm:$0xff] %vm1360, %v1356
  %v1362 = vld [vmem:[%s0 + $0x18] sm:$0xff]
  %v1363 = vld [vmem:[%s0 + $0x20] sm:$0xff]
  %1366 = vrot.lane.b32.xlu0 %v1362, 64
  %v1367 = vpop.permute.xlu0 %1366
  %1368 = vrot.lane.b32.xlu0 %v1363, 64
  %v1369 = vpop.permute.xlu0 %1368
  %v1370 = vsel %vm113, %v1367, %v1369
  %v1372 = vsel %vm113, %v1369, 0
  %1374 = vmatprep.subr.mxu0 %v39
  %1375 = vmatpush1.msra.mxu0 %v38
  %1376 = vmatprep.subr.mxu0 %v42
  %1377 = vmatpush1.msra.mxu0 %v41
  %1378 = vmatprep.subr.mxu0 %v45
  %1379 = vmatpush1.msra.mxu0 %v44
  %1380 = vmatprep.subr.mxu0 %v48
  %1381 = vmatpush1.msra.mxu0 %v47
  %1382 = vmatprep.subr.mxu0 %v51
  %1383 = vmatpush1.msra.mxu0 %v50
  %1384 = vmatprep.subr.mxu0 %v54
  %1385 = vmatpush1.msra.mxu0 %v53
  %1386 = vmatprep.subr.mxu0 %v57
  %1387 = vmatpush1.msra.mxu0 %v56
  %1388 = vmatprep.subr.mxu0 %v60
  %1389 = vmatpush1.msra.mxu0 %v59
  %1390 = vmatprep.subr.mxu0 %v63
  %1391 = vmatpush1.msra.mxu0 %v62
  %1392 = vmatprep.subr.mxu0 %v66
  %1393 = vmatpush1.msra.mxu0 %v65
  %1394 = vmatprep.subr.mxu0 %v69
  %1395 = vmatpush1.msra.mxu0 %v68
  %1396 = vmatprep.subr.mxu0 %v72
  %1397 = vmatpush1.msra.mxu0 %v71
  %1398 = vmatprep.subr.mxu0 %v75
  %1399 = vmatpush1.msra.mxu0 %v74
  %1400 = vmatprep.subr.mxu0 %v78
  %1401 = vmatpush1.msra.mxu0 %v77
  %1402 = vmatprep.subr.mxu0 %v81
  %1403 = vmatpush1.msra.mxu0 %v80
  %1404 = vmatprep.subr.mxu0 %v84
  %1405 = vmatpush1.msra.mxu0 %v83
  %1406 = vmatprep.subr.mxu0 %v87
  %1407 = vmatpush1.msra.mxu0 %v86
  %1408 = vmatprep.subr.mxu0 %v90
  %1409 = vmatpush1.msra.mxu0 %v89
  %1410 = vmatprep.subr.mxu0 %v93
  %1411 = vmatpush1.msra.mxu0 %v92
  %1412 = vmatprep.subr.mxu0 %v96
  %1413 = vmatpush1.msra.mxu0 %v95
  %1414 = vmatprep.subr.mxu0 %v99
  %1415 = vmatpush1.msra.mxu0 %v98
  %1416 = vmatprep.subr.mxu0 %v102
  %1417 = vmatpush1.msra.mxu0 %v101
  %1418 = vmatprep.subr.mxu0 %v105
  %1419 = vmatpush1.msra.mxu0 %v104
  %1420 = vmatprep.subr.mxu0 %v108
  %1421 = vmatpush1.msra.mxu0 %v107
  %1422 = vmatprep.subr.mxu0 0.0
  %1423 = vmatpush1.msra.mxu0 0.0
  %1424 = vmatprep.subr.mxu0 0.0
  %1425 = vmatpush1.msra.mxu0 0.0
  %1426 = vmatprep.subr.mxu0 0.0
  %1427 = vmatpush1.msra.mxu0 0.0
  %1428 = vmatprep.subr.mxu0 0.0
  %1429 = vmatpush1.msra.mxu0 0.0
  %1430 = vmatprep.subr.mxu0 0.0
  %1431 = vmatpush1.msra.mxu0 0.0
  %1432 = vmatprep.subr.mxu0 0.0
  %1433 = vmatpush1.msra.mxu0 0.0
  %1434 = vmatprep.subr.mxu0 0.0
  %1435 = vmatpush1.msra.mxu0 0.0
  %1436 = vmatprep.subr.mxu0 0.0
  %1437 = vmatpush1.msra.mxu0 0.0
  %1438 = vmatprep.mubr.f32.mxu0 %v1372
  %1439 = vmatmul.mubr.f32.gmra.mrb[0].mxu0 %v1370
  %v1440 = vpop.f32.mrb[0].mxu0
  %v1441 = vadd.f32 0.0, %v1440
  %v1442 = vpop.f32.mrb[0].mxu0
  %v1443 = vadd.f32 0.0, %v1442
  %1444 = vdwg.mxu0
  %1445 = vmatprep.subr.mxu0 0.0
  %1446 = vmatpush1.msra.mxu0 %v40
  %1447 = vmatprep.subr.mxu0 0.0
  %1448 = vmatpush1.msra.mxu0 %v43
  %1449 = vmatprep.subr.mxu0 0.0
  %1450 = vmatpush1.msra.mxu0 %v46
  %1451 = vmatprep.subr.mxu0 0.0
  %1452 = vmatpush1.msra.mxu0 %v49
  %1453 = vmatprep.subr.mxu0 0.0
  %1454 = vmatpush1.msra.mxu0 %v52
  %1455 = vmatprep.subr.mxu0 0.0
  %1456 = vmatpush1.msra.mxu0 %v55
  %1457 = vmatprep.subr.mxu0 0.0
  %1458 = vmatpush1.msra.mxu0 %v58
  %1459 = vmatprep.subr.mxu0 0.0
  %1460 = vmatpush1.msra.mxu0 %v61
  %1461 = vmatprep.subr.mxu0 0.0
  %1462 = vmatpush1.msra.mxu0 %v64
  %1463 = vmatprep.subr.mxu0 0.0
  %1464 = vmatpush1.msra.mxu0 %v67
  %1465 = vmatprep.subr.mxu0 0.0
  %1466 = vmatpush1.msra.mxu0 %v70
  %1467 = vmatprep.subr.mxu0 0.0
  %1468 = vmatpush1.msra.mxu0 %v73
  %1469 = vmatprep.subr.mxu0 0.0
  %1470 = vmatpush1.msra.mxu0 %v76
  %1471 = vmatprep.subr.mxu0 0.0
  %1472 = vmatpush1.msra.mxu0 %v79
  %1473 = vmatprep.subr.mxu0 0.0
  %1474 = vmatpush1.msra.mxu0 %v82
  %1475 = vmatprep.subr.mxu0 0.0
  %1476 = vmatpush1.msra.mxu0 %v85
  %1477 = vmatprep.subr.mxu0 0.0
  %1478 = vmatpush1.msra.mxu0 %v88
  %1479 = vmatprep.subr.mxu0 0.0
  %1480 = vmatpush1.msra.mxu0 %v91
  %1481 = vmatprep.subr.mxu0 0.0
  %1482 = vmatpush1.msra.mxu0 %v94
  %1483 = vmatprep.subr.mxu0 0.0
  %1484 = vmatpush1.msra.mxu0 %v97
  %1485 = vmatprep.subr.mxu0 0.0
  %1486 = vmatpush1.msra.mxu0 %v100
  %1487 = vmatprep.subr.mxu0 0.0
  %1488 = vmatpush1.msra.mxu0 %v103
  %1489 = vmatprep.subr.mxu0 0.0
  %1490 = vmatpush1.msra.mxu0 %v106
  %1491 = vmatprep.subr.mxu0 0.0
  %1492 = vmatpush1.msra.mxu0 %v109
  %1493 = vmatprep.subr.mxu0 0.0
  %1494 = vmatpush1.msra.mxu0 0.0
  %1495 = vmatprep.subr.mxu0 0.0
  %1496 = vmatpush1.msra.mxu0 0.0
  %1497 = vmatprep.subr.mxu0 0.0
  %1498 = vmatpush1.msra.mxu0 0.0
  %1499 = vmatprep.subr.mxu0 0.0
  %1500 = vmatpush1.msra.mxu0 0.0
  %1501 = vmatprep.subr.mxu0 0.0
  %1502 = vmatpush1.msra.mxu0 0.0
  %1503 = vmatprep.subr.mxu0 0.0
  %1504 = vmatpush1.msra.mxu0 0.0
  %1505 = vmatprep.subr.mxu0 0.0
  %1506 = vmatpush1.msra.mxu0 0.0
  %1507 = vmatprep.subr.mxu0 0.0
  %1508 = vmatpush1.msra.mxu0 0.0
  %1509 = vmatprep.mubr.f32.mxu0 %v1372
  %1510 = vmatmul.mubr.f32.gmra.mrb[0].mxu0 %v1370
  %v1511 = vpop.f32.mrb[0].mxu0
  %v1512 = vadd.f32 0.0, %v1511
  %v1513 = vpop.f32.mrb[0].mxu0
  %1514 = vdwg.mxu0
  %1517 = vrot.lane.b32.xlu0 %v1441, 44
  %v1518 = vpop.permute.xlu0 %1517
  %1519 = vrot.lane.b32.xlu0 %v1443, 44
  %v1520 = vpop.permute.xlu0 %1519
  %v1521 = vsel %vm264, %v1518, %v1520
  %v1523 = vmax.f32 %v1441, %v1521
  %1525 = vrot.lane.b32.xlu0 %v1512, 44
  %v1526 = vpop.permute.xlu0 %1525
  %v1527 = vsel %vm264, %v1520, %v1526
  %v1529 = vmax.f32 %v1443, %v1527
  %1531 = vrot.lane.b32.xlu0 %v1529, 88
  %v1532 = vpop.permute.xlu0 %1531
  %v1534 = vmax.f32 %v1523, %v1532
  %v1535 = vadd.f32 %v1534, %v283
  %v1536 = vmax.f32 %v1535, 0.0
  %1538 = vrot.lane.b32.xlu0 %v1536, 76
  %v1539 = vpop.permute.xlu0 %1538
  %vm1541 = vcmask 1048160
  %1542 = vst.msk [vmem:[#allocation2 + $0x20] sm:$0xff] %vm1541, %v1539
  %vm1543 = vcmask 261120
  %1544 = vst.msk [vmem:[#allocation2 + $0x28] sm:$0xff] %vm1543, %v1539
  %v1545 = vld [vmem:[%s0 + $0x20] sm:$0xff]
  %v1546 = vld [vmem:[%s0 + $0x28] sm:$0xff]
  %v1548 = vsel %vm113, %v1546, 0
  %1550 = vmatprep.subr.mxu0 %v39
  %1551 = vmatpush1.msra.mxu0 %v38
  %1552 = vmatprep.subr.mxu0 %v42
  %1553 = vmatpush1.msra.mxu0 %v41
  %1554 = vmatprep.subr.mxu0 %v45
  %1555 = vmatpush1.msra.mxu0 %v44
  %1556 = vmatprep.subr.mxu0 %v48
  %1557 = vmatpush1.msra.mxu0 %v47
  %1558 = vmatprep.subr.mxu0 %v51
  %1559 = vmatpush1.msra.mxu0 %v50
  %1560 = vmatprep.subr.mxu0 %v54
  %1561 = vmatpush1.msra.mxu0 %v53
  %1562 = vmatprep.subr.mxu0 %v57
  %1563 = vmatpush1.msra.mxu0 %v56
  %1564 = vmatprep.subr.mxu0 %v60
  %1565 = vmatpush1.msra.mxu0 %v59
  %1566 = vmatprep.subr.mxu0 %v63
  %1567 = vmatpush1.msra.mxu0 %v62
  %1568 = vmatprep.subr.mxu0 %v66
  %1569 = vmatpush1.msra.mxu0 %v65
  %1570 = vmatprep.subr.mxu0 %v69
  %1571 = vmatpush1.msra.mxu0 %v68
  %1572 = vmatprep.subr.mxu0 %v72
  %1573 = vmatpush1.msra.mxu0 %v71
  %1574 = vmatprep.subr.mxu0 %v75
  %1575 = vmatpush1.msra.mxu0 %v74
  %1576 = vmatprep.subr.mxu0 %v78
  %1577 = vmatpush1.msra.mxu0 %v77
  %1578 = vmatprep.subr.mxu0 %v81
  %1579 = vmatpush1.msra.mxu0 %v80
  %1580 = vmatprep.subr.mxu0 %v84
  %1581 = vmatpush1.msra.mxu0 %v83
  %1582 = vmatprep.subr.mxu0 %v87
  %1583 = vmatpush1.msra.mxu0 %v86
  %1584 = vmatprep.subr.mxu0 %v90
  %1585 = vmatpush1.msra.mxu0 %v89
  %1586 = vmatprep.subr.mxu0 %v93
  %1587 = vmatpush1.msra.mxu0 %v92
  %1588 = vmatprep.subr.mxu0 %v96
  %1589 = vmatpush1.msra.mxu0 %v95
  %1590 = vmatprep.subr.mxu0 %v99
  %1591 = vmatpush1.msra.mxu0 %v98
  %1592 = vmatprep.subr.mxu0 %v102
  %1593 = vmatpush1.msra.mxu0 %v101
  %1594 = vmatprep.subr.mxu0 %v105
  %1595 = vmatpush1.msra.mxu0 %v104
  %1596 = vmatprep.subr.mxu0 %v108
  %1597 = vmatpush1.msra.mxu0 %v107
  %1598 = vmatprep.subr.mxu0 0.0
  %1599 = vmatpush1.msra.mxu0 0.0
  %1600 = vmatprep.subr.mxu0 0.0
  %1601 = vmatpush1.msra.mxu0 0.0
  %1602 = vmatprep.subr.mxu0 0.0
  %1603 = vmatpush1.msra.mxu0 0.0
  %1604 = vmatprep.subr.mxu0 0.0
  %1605 = vmatpush1.msra.mxu0 0.0
  %1606 = vmatprep.subr.mxu0 0.0
  %1607 = vmatpush1.msra.mxu0 0.0
  %1608 = vmatprep.subr.mxu0 0.0
  %1609 = vmatpush1.msra.mxu0 0.0
  %1610 = vmatprep.subr.mxu0 0.0
  %1611 = vmatpush1.msra.mxu0 0.0
  %1612 = vmatprep.subr.mxu0 0.0
  %1613 = vmatpush1.msra.mxu0 0.0
  %1614 = vmatprep.mubr.f32.mxu0 %v1548
  %1615 = vmatmul.mubr.f32.gmra.mrb[0].mxu0 %v1545
  %v1616 = vpop.f32.mrb[0].mxu0
  %v1617 = vadd.f32 0.0, %v1616
  %v1618 = vpop.f32.mrb[0].mxu0
  %v1619 = vadd.f32 0.0, %v1618
  %1620 = vdwg.mxu0
  %1621 = vmatprep.subr.mxu0 0.0
  %1622 = vmatpush1.msra.mxu0 %v40
  %1623 = vmatprep.subr.mxu0 0.0
  %1624 = vmatpush1.msra.mxu0 %v43
  %1625 = vmatprep.subr.mxu0 0.0
  %1626 = vmatpush1.msra.mxu0 %v46
  %1627 = vmatprep.subr.mxu0 0.0
  %1628 = vmatpush1.msra.mxu0 %v49
  %1629 = vmatprep.subr.mxu0 0.0
  %1630 = vmatpush1.msra.mxu0 %v52
  %1631 = vmatprep.subr.mxu0 0.0
  %1632 = vmatpush1.msra.mxu0 %v55
  %1633 = vmatprep.subr.mxu0 0.0
  %1634 = vmatpush1.msra.mxu0 %v58
  %1635 = vmatprep.subr.mxu0 0.0
  %1636 = vmatpush1.msra.mxu0 %v61
  %1637 = vmatprep.subr.mxu0 0.0
  %1638 = vmatpush1.msra.mxu0 %v64
  %1639 = vmatprep.subr.mxu0 0.0
  %1640 = vmatpush1.msra.mxu0 %v67
  %1641 = vmatprep.subr.mxu0 0.0
  %1642 = vmatpush1.msra.mxu0 %v70
  %1643 = vmatprep.subr.mxu0 0.0
  %1644 = vmatpush1.msra.mxu0 %v73
  %1645 = vmatprep.subr.mxu0 0.0
  %1646 = vmatpush1.msra.mxu0 %v76
  %1647 = vmatprep.subr.mxu0 0.0
  %1648 = vmatpush1.msra.mxu0 %v79
  %1649 = vmatprep.subr.mxu0 0.0
  %1650 = vmatpush1.msra.mxu0 %v82
  %1651 = vmatprep.subr.mxu0 0.0
  %1652 = vmatpush1.msra.mxu0 %v85
  %1653 = vmatprep.subr.mxu0 0.0
  %1654 = vmatpush1.msra.mxu0 %v88
  %1655 = vmatprep.subr.mxu0 0.0
  %1656 = vmatpush1.msra.mxu0 %v91
  %1657 = vmatprep.subr.mxu0 0.0
  %1658 = vmatpush1.msra.mxu0 %v94
  %1659 = vmatprep.subr.mxu0 0.0
  %1660 = vmatpush1.msra.mxu0 %v97
  %1661 = vmatprep.subr.mxu0 0.0
  %1662 = vmatpush1.msra.mxu0 %v100
  %1663 = vmatprep.subr.mxu0 0.0
  %1664 = vmatpush1.msra.mxu0 %v103
  %1665 = vmatprep.subr.mxu0 0.0
  %1666 = vmatpush1.msra.mxu0 %v106
  %1667 = vmatprep.subr.mxu0 0.0
  %1668 = vmatpush1.msra.mxu0 %v109
  %1669 = vmatprep.subr.mxu0 0.0
  %1670 = vmatpush1.msra.mxu0 0.0
  %1671 = vmatprep.subr.mxu0 0.0
  %1672 = vmatpush1.msra.mxu0 0.0
  %1673 = vmatprep.subr.mxu0 0.0
  %1674 = vmatpush1.msra.mxu0 0.0
  %1675 = vmatprep.subr.mxu0 0.0
  %1676 = vmatpush1.msra.mxu0 0.0
  %1677 = vmatprep.subr.mxu0 0.0
  %1678 = vmatpush1.msra.mxu0 0.0
  %1679 = vmatprep.subr.mxu0 0.0
  %1680 = vmatpush1.msra.mxu0 0.0
  %1681 = vmatprep.subr.mxu0 0.0
  %1682 = vmatpush1.msra.mxu0 0.0
  %1683 = vmatprep.subr.mxu0 0.0
  %1684 = vmatpush1.msra.mxu0 0.0
  %1685 = vmatprep.mubr.f32.mxu0 %v1548
  %1686 = vmatmul.mubr.f32.gmra.mrb[0].mxu0 %v1545
  %v1687 = vpop.f32.mrb[0].mxu0
  %v1688 = vadd.f32 0.0, %v1687
  %v1689 = vpop.f32.mrb[0].mxu0
  %1690 = vdwg.mxu0
  %1693 = vrot.lane.b32.xlu0 %v1617, 44
  %v1694 = vpop.permute.xlu0 %1693
  %1695 = vrot.lane.b32.xlu0 %v1619, 44
  %v1696 = vpop.permute.xlu0 %1695
  %v1697 = vsel %vm264, %v1694, %v1696
  %v1699 = vmax.f32 %v1617, %v1697
  %1701 = vrot.lane.b32.xlu0 %v1688, 44
  %v1702 = vpop.permute.xlu0 %1701
  %v1703 = vsel %vm264, %v1696, %v1702
  %v1705 = vmax.f32 %v1619, %v1703
  %1707 = vrot.lane.b32.xlu0 %v1705, 88
  %v1708 = vpop.permute.xlu0 %1707
  %v1710 = vmax.f32 %v1699, %v1708
  %v1711 = vadd.f32 %v1710, %v283
  %v1712 = vmax.f32 %v1711, 0.0
  %1714 = vrot.lane.b32.xlu0 %v1712, 32
  %v1715 = vpop.permute.xlu0 %1714
  %vm1717 = vcmask 949504
  %1718 = vst.msk [vmem:[#allocation2 + $0x28] sm:$0xff] %vm1717, %v1715
  %v1719 = vld [vmem:[%s0 + $0x20] sm:$0xff]
  %v1720 = vld [vmem:[%s0 + $0x28] sm:$0xff]
  %1723 = vrot.lane.b32.xlu0 %v1719, 64
  %v1724 = vpop.permute.xlu0 %1723
  %1725 = vrot.lane.b32.xlu0 %v1720, 64
  %v1726 = vpop.permute.xlu0 %1725
  %v1727 = vsel %vm113, %v1724, %v1726
  %v1729 = vsel %vm113, %v1726, 0
  %1731 = vmatprep.subr.mxu0 %v39
  %1732 = vmatpush1.msra.mxu0 %v38
  %1733 = vmatprep.subr.mxu0 %v42
  %1734 = vmatpush1.msra.mxu0 %v41
  %1735 = vmatprep.subr.mxu0 %v45
  %1736 = vmatpush1.msra.mxu0 %v44
  %1737 = vmatprep.subr.mxu0 %v48
  %1738 = vmatpush1.msra.mxu0 %v47
  %1739 = vmatprep.subr.mxu0 %v51
  %1740 = vmatpush1.msra.mxu0 %v50
  %1741 = vmatprep.subr.mxu0 %v54
  %1742 = vmatpush1.msra.mxu0 %v53
  %1743 = vmatprep.subr.mxu0 %v57
  %1744 = vmatpush1.msra.mxu0 %v56
  %1745 = vmatprep.subr.mxu0 %v60
  %1746 = vmatpush1.msra.mxu0 %v59
  %1747 = vmatprep.subr.mxu0 %v63
  %1748 = vmatpush1.msra.mxu0 %v62
  %1749 = vmatprep.subr.mxu0 %v66
  %1750 = vmatpush1.msra.mxu0 %v65
  %1751 = vmatprep.subr.mxu0 %v69
  %1752 = vmatpush1.msra.mxu0 %v68
  %1753 = vmatprep.subr.mxu0 %v72
  %1754 = vmatpush1.msra.mxu0 %v71
  %1755 = vmatprep.subr.mxu0 %v75
  %1756 = vmatpush1.msra.mxu0 %v74
  %1757 = vmatprep.subr.mxu0 %v78
  %1758 = vmatpush1.msra.mxu0 %v77
  %1759 = vmatprep.subr.mxu0 %v81
  %1760 = vmatpush1.msra.mxu0 %v80
  %1761 = vmatprep.subr.mxu0 %v84
  %1762 = vmatpush1.msra.mxu0 %v83
  %1763 = vmatprep.subr.mxu0 %v87
  %1764 = vmatpush1.msra.mxu0 %v86
  %1765 = vmatprep.subr.mxu0 %v90
  %1766 = vmatpush1.msra.mxu0 %v89
  %1767 = vmatprep.subr.mxu0 %v93
  %1768 = vmatpush1.msra.mxu0 %v92
  %1769 = vmatprep.subr.mxu0 %v96
  %1770 = vmatpush1.msra.mxu0 %v95
  %1771 = vmatprep.subr.mxu0 %v99
  %1772 = vmatpush1.msra.mxu0 %v98
  %1773 = vmatprep.subr.mxu0 %v102
  %1774 = vmatpush1.msra.mxu0 %v101
  %1775 = vmatprep.subr.mxu0 %v105
  %1776 = vmatpush1.msra.mxu0 %v104
  %1777 = vmatprep.subr.mxu0 %v108
  %1778 = vmatpush1.msra.mxu0 %v107
  %1779 = vmatprep.subr.mxu0 0.0
  %1780 = vmatpush1.msra.mxu0 0.0
  %1781 = vmatprep.subr.mxu0 0.0
  %1782 = vmatpush1.msra.mxu0 0.0
  %1783 = vmatprep.subr.mxu0 0.0
  %1784 = vmatpush1.msra.mxu0 0.0
  %1785 = vmatprep.subr.mxu0 0.0
  %1786 = vmatpush1.msra.mxu0 0.0
  %1787 = vmatprep.subr.mxu0 0.0
  %1788 = vmatpush1.msra.mxu0 0.0
  %1789 = vmatprep.subr.mxu0 0.0
  %1790 = vmatpush1.msra.mxu0 0.0
  %1791 = vmatprep.subr.mxu0 0.0
  %1792 = vmatpush1.msra.mxu0 0.0
  %1793 = vmatprep.subr.mxu0 0.0
  %1794 = vmatpush1.msra.mxu0 0.0
  %1795 = vmatprep.mubr.f32.mxu0 %v1729
  %1796 = vmatmul.mubr.f32.gmra.mrb[0].mxu0 %v1727
  %v1797 = vpop.f32.mrb[0].mxu0
  %v1798 = vadd.f32 0.0, %v1797
  %v1799 = vpop.f32.mrb[0].mxu0
  %v1800 = vadd.f32 0.0, %v1799
  %1801 = vdwg.mxu0
  %1802 = vmatprep.subr.mxu0 0.0
  %1803 = vmatpush1.msra.mxu0 %v40
  %1804 = vmatprep.subr.mxu0 0.0
  %1805 = vmatpush1.msra.mxu0 %v43
  %1806 = vmatprep.subr.mxu0 0.0
  %1807 = vmatpush1.msra.mxu0 %v46
  %1808 = vmatprep.subr.mxu0 0.0
  %1809 = vmatpush1.msra.mxu0 %v49
  %1810 = vmatprep.subr.mxu0 0.0
  %1811 = vmatpush1.msra.mxu0 %v52
  %1812 = vmatprep.subr.mxu0 0.0
  %1813 = vmatpush1.msra.mxu0 %v55
  %1814 = vmatprep.subr.mxu0 0.0
  %1815 = vmatpush1.msra.mxu0 %v58
  %1816 = vmatprep.subr.mxu0 0.0
  %1817 = vmatpush1.msra.mxu0 %v61
  %1818 = vmatprep.subr.mxu0 0.0
  %1819 = vmatpush1.msra.mxu0 %v64
  %1820 = vmatprep.subr.mxu0 0.0
  %1821 = vmatpush1.msra.mxu0 %v67
  %1822 = vmatprep.subr.mxu0 0.0
  %1823 = vmatpush1.msra.mxu0 %v70
  %1824 = vmatprep.subr.mxu0 0.0
  %1825 = vmatpush1.msra.mxu0 %v73
  %1826 = vmatprep.subr.mxu0 0.0
  %1827 = vmatpush1.msra.mxu0 %v76
  %1828 = vmatprep.subr.mxu0 0.0
  %1829 = vmatpush1.msra.mxu0 %v79
  %1830 = vmatprep.subr.mxu0 0.0
  %1831 = vmatpush1.msra.mxu0 %v82
  %1832 = vmatprep.subr.mxu0 0.0
  %1833 = vmatpush1.msra.mxu0 %v85
  %1834 = vmatprep.subr.mxu0 0.0
  %1835 = vmatpush1.msra.mxu0 %v88
  %1836 = vmatprep.subr.mxu0 0.0
  %1837 = vmatpush1.msra.mxu0 %v91
  %1838 = vmatprep.subr.mxu0 0.0
  %1839 = vmatpush1.msra.mxu0 %v94
  %1840 = vmatprep.subr.mxu0 0.0
  %1841 = vmatpush1.msra.mxu0 %v97
  %1842 = vmatprep.subr.mxu0 0.0
  %1843 = vmatpush1.msra.mxu0 %v100
  %1844 = vmatprep.subr.mxu0 0.0
  %1845 = vmatpush1.msra.mxu0 %v103
  %1846 = vmatprep.subr.mxu0 0.0
  %1847 = vmatpush1.msra.mxu0 %v106
  %1848 = vmatprep.subr.mxu0 0.0
  %1849 = vmatpush1.msra.mxu0 %v109
  %1850 = vmatprep.subr.mxu0 0.0
  %1851 = vmatpush1.msra.mxu0 0.0
  %1852 = vmatprep.subr.mxu0 0.0
  %1853 = vmatpush1.msra.mxu0 0.0
  %1854 = vmatprep.subr.mxu0 0.0
  %1855 = vmatpush1.msra.mxu0 0.0
  %1856 = vmatprep.subr.mxu0 0.0
  %1857 = vmatpush1.msra.mxu0 0.0
  %1858 = vmatprep.subr.mxu0 0.0
  %1859 = vmatpush1.msra.mxu0 0.0
  %1860 = vmatprep.subr.mxu0 0.0
  %1861 = vmatpush1.msra.mxu0 0.0
  %1862 = vmatprep.subr.mxu0 0.0
  %1863 = vmatpush1.msra.mxu0 0.0
  %1864 = vmatprep.subr.mxu0 0.0
  %1865 = vmatpush1.msra.mxu0 0.0
  %1866 = vmatprep.mubr.f32.mxu0 %v1729
  %1867 = vmatmul.mubr.f32.gmra.mrb[0].mxu0 %v1727
  %v1868 = vpop.f32.mrb[0].mxu0
  %v1869 = vadd.f32 0.0, %v1868
  %v1870 = vpop.f32.mrb[0].mxu0
  %1871 = vdwg.mxu0
  %1874 = vrot.lane.b32.xlu0 %v1798, 44
  %v1875 = vpop.permute.xlu0 %1874
  %1876 = vrot.lane.b32.xlu0 %v1800, 44
  %v1877 = vpop.permute.xlu0 %1876
  %v1878 = vsel %vm264, %v1875, %v1877
  %v1880 = vmax.f32 %v1798, %v1878
  %1882 = vrot.lane.b32.xlu0 %v1869, 44
  %v1883 = vpop.permute.xlu0 %1882
  %v1884 = vsel %vm264, %v1877, %v1883
  %v1886 = vmax.f32 %v1800, %v1884
  %1888 = vrot.lane.b32.xlu0 %v1886, 88
  %v1889 = vpop.permute.xlu0 %1888
  %v1891 = vmax.f32 %v1880, %v1889
  %v1892 = vadd.f32 %v1891, %v283
  %v1893 = vmax.f32 %v1892, 0.0
  %1895 = vrot.lane.b32.xlu0 %v1893, 116
  %v1896 = vpop.permute.xlu0 %1895
  %vm1898 = vcmask 1048480
  %1899 = vst.msk [vmem:[#allocation2 + $0x28] sm:$0xff] %vm1898, %v1896
  %vm1900 = vcmask 588800
  %1901 = vst.msk [vmem:[#allocation2 + $0x30] sm:$0xff] %vm1900, %v1896
  %v1902 = vld [vmem:[%s0 + $0x28] sm:$0xff]
  %v1903 = vld [vmem:[%s0 + $0x30] sm:$0xff]
  %v1905 = vsel %vm113, %v1903, 0
  %1907 = vmatprep.subr.mxu0 %v39
  %1908 = vmatpush1.msra.mxu0 %v38
  %1909 = vmatprep.subr.mxu0 %v42
  %1910 = vmatpush1.msra.mxu0 %v41
  %1911 = vmatprep.subr.mxu0 %v45
  %1912 = vmatpush1.msra.mxu0 %v44
  %1913 = vmatprep.subr.mxu0 %v48
  %1914 = vmatpush1.msra.mxu0 %v47
  %1915 = vmatprep.subr.mxu0 %v51
  %1916 = vmatpush1.msra.mxu0 %v50
  %1917 = vmatprep.subr.mxu0 %v54
  %1918 = vmatpush1.msra.mxu0 %v53
  %1919 = vmatprep.subr.mxu0 %v57
  %1920 = vmatpush1.msra.mxu0 %v56
  %1921 = vmatprep.subr.mxu0 %v60
  %1922 = vmatpush1.msra.mxu0 %v59
  %1923 = vmatprep.subr.mxu0 %v63
  %1924 = vmatpush1.msra.mxu0 %v62
  %1925 = vmatprep.subr.mxu0 %v66
  %1926 = vmatpush1.msra.mxu0 %v65
  %1927 = vmatprep.subr.mxu0 %v69
  %1928 = vmatpush1.msra.mxu0 %v68
  %1929 = vmatprep.subr.mxu0 %v72
  %1930 = vmatpush1.msra.mxu0 %v71
  %1931 = vmatprep.subr.mxu0 %v75
  %1932 = vmatpush1.msra.mxu0 %v74
  %1933 = vmatprep.subr.mxu0 %v78
  %1934 = vmatpush1.msra.mxu0 %v77
  %1935 = vmatprep.subr.mxu0 %v81
  %1936 = vmatpush1.msra.mxu0 %v80
  %1937 = vmatprep.subr.mxu0 %v84
  %1938 = vmatpush1.msra.mxu0 %v83
  %1939 = vmatprep.subr.mxu0 %v87
  %1940 = vmatpush1.msra.mxu0 %v86
  %1941 = vmatprep.subr.mxu0 %v90
  %1942 = vmatpush1.msra.mxu0 %v89
  %1943 = vmatprep.subr.mxu0 %v93
  %1944 = vmatpush1.msra.mxu0 %v92
  %1945 = vmatprep.subr.mxu0 %v96
  %1946 = vmatpush1.msra.mxu0 %v95
  %1947 = vmatprep.subr.mxu0 %v99
  %1948 = vmatpush1.msra.mxu0 %v98
  %1949 = vmatprep.subr.mxu0 %v102
  %1950 = vmatpush1.msra.mxu0 %v101
  %1951 = vmatprep.subr.mxu0 %v105
  %1952 = vmatpush1.msra.mxu0 %v104
  %1953 = vmatprep.subr.mxu0 %v108
  %1954 = vmatpush1.msra.mxu0 %v107
  %1955 = vmatprep.subr.mxu0 0.0
  %1956 = vmatpush1.msra.mxu0 0.0
  %1957 = vmatprep.subr.mxu0 0.0
  %1958 = vmatpush1.msra.mxu0 0.0
  %1959 = vmatprep.subr.mxu0 0.0
  %1960 = vmatpush1.msra.mxu0 0.0
  %1961 = vmatprep.subr.mxu0 0.0
  %1962 = vmatpush1.msra.mxu0 0.0
  %1963 = vmatprep.subr.mxu0 0.0
  %1964 = vmatpush1.msra.mxu0 0.0
  %1965 = vmatprep.subr.mxu0 0.0
  %1966 = vmatpush1.msra.mxu0 0.0
  %1967 = vmatprep.subr.mxu0 0.0
  %1968 = vmatpush1.msra.mxu0 0.0
  %1969 = vmatprep.subr.mxu0 0.0
  %1970 = vmatpush1.msra.mxu0 0.0
  %1971 = vmatprep.mubr.f32.mxu0 %v1905
  %1972 = vmatmul.mubr.f32.gmra.mrb[0].mxu0 %v1902
  %v1973 = vpop.f32.mrb[0].mxu0
  %v1974 = vadd.f32 0.0, %v1973
  %v1975 = vpop.f32.mrb[0].mxu0
  %v1976 = vadd.f32 0.0, %v1975
  %1977 = vdwg.mxu0
  %1978 = vmatprep.subr.mxu0 0.0
  %1979 = vmatpush1.msra.mxu0 %v40
  %1980 = vmatprep.subr.mxu0 0.0
  %1981 = vmatpush1.msra.mxu0 %v43
  %1982 = vmatprep.subr.mxu0 0.0
  %1983 = vmatpush1.msra.mxu0 %v46
  %1984 = vmatprep.subr.mxu0 0.0
  %1985 = vmatpush1.msra.mxu0 %v49
  %1986 = vmatprep.subr.mxu0 0.0
  %1987 = vmatpush1.msra.mxu0 %v52
  %1988 = vmatprep.subr.mxu0 0.0
  %1989 = vmatpush1.msra.mxu0 %v55
  %1990 = vmatprep.subr.mxu0 0.0
  %1991 = vmatpush1.msra.mxu0 %v58
  %1992 = vmatprep.subr.mxu0 0.0
  %1993 = vmatpush1.msra.mxu0 %v61
  %1994 = vmatprep.subr.mxu0 0.0
  %1995 = vmatpush1.msra.mxu0 %v64
  %1996 = vmatprep.subr.mxu0 0.0
  %1997 = vmatpush1.msra.mxu0 %v67
  %1998 = vmatprep.subr.mxu0 0.0
  %1999 = vmatpush1.msra.mxu0 %v70
  %2000 = vmatprep.subr.mxu0 0.0
  %2001 = vmatpush1.msra.mxu0 %v73
  %2002 = vmatprep.subr.mxu0 0.0
  %2003 = vmatpush1.msra.mxu0 %v76
  %2004 = vmatprep.subr.mxu0 0.0
  %2005 = vmatpush1.msra.mxu0 %v79
  %2006 = vmatprep.subr.mxu0 0.0
  %2007 = vmatpush1.msra.mxu0 %v82
  %2008 = vmatprep.subr.mxu0 0.0
  %2009 = vmatpush1.msra.mxu0 %v85
  %2010 = vmatprep.subr.mxu0 0.0
  %2011 = vmatpush1.msra.mxu0 %v88
  %2012 = vmatprep.subr.mxu0 0.0
  %2013 = vmatpush1.msra.mxu0 %v91
  %2014 = vmatprep.subr.mxu0 0.0
  %2015 = vmatpush1.msra.mxu0 %v94
  %2016 = vmatprep.subr.mxu0 0.0
  %2017 = vmatpush1.msra.mxu0 %v97
  %2018 = vmatprep.subr.mxu0 0.0
  %2019 = vmatpush1.msra.mxu0 %v100
  %2020 = vmatprep.subr.mxu0 0.0
  %2021 = vmatpush1.msra.mxu0 %v103
  %2022 = vmatprep.subr.mxu0 0.0
  %2023 = vmatpush1.msra.mxu0 %v106
  %2024 = vmatprep.subr.mxu0 0.0
  %2025 = vmatpush1.msra.mxu0 %v109
  %2026 = vmatprep.subr.mxu0 0.0
  %2027 = vmatpush1.msra.mxu0 0.0
  %2028 = vmatprep.subr.mxu0 0.0
  %2029 = vmatpush1.msra.mxu0 0.0
  %2030 = vmatprep.subr.mxu0 0.0
  %2031 = vmatpush1.msra.mxu0 0.0
  %2032 = vmatprep.subr.mxu0 0.0
  %2033 = vmatpush1.msra.mxu0 0.0
  %2034 = vmatprep.subr.mxu0 0.0
  %2035 = vmatpush1.msra.mxu0 0.0
  %2036 = vmatprep.subr.mxu0 0.0
  %2037 = vmatpush1.msra.mxu0 0.0
  %2038 = vmatprep.subr.mxu0 0.0
  %2039 = vmatpush1.msra.mxu0 0.0
  %2040 = vmatprep.subr.mxu0 0.0
  %2041 = vmatpush1.msra.mxu0 0.0
  %2042 = vmatprep.mubr.f32.mxu0 %v1905
  %2043 = vmatmul.mubr.f32.gmra.mrb[0].mxu0 %v1902
  %v2044 = vpop.f32.mrb[0].mxu0
  %v2045 = vadd.f32 0.0, %v2044
  %v2046 = vpop.f32.mrb[0].mxu0
  %2047 = vdwg.mxu0
  %2050 = vrot.lane.b32.xlu0 %v1974, 44
  %v2051 = vpop.permute.xlu0 %2050
  %2052 = vrot.lane.b32.xlu0 %v1976, 44
  %v2053 = vpop.permute.xlu0 %2052
  %v2054 = vsel %vm264, %v2051, %v2053
  %v2056 = vmax.f32 %v1974, %v2054
  %2058 = vrot.lane.b32.xlu0 %v2045, 44
  %v2059 = vpop.permute.xlu0 %2058
  %v2060 = vsel %vm264, %v2053, %v2059
  %v2062 = vmax.f32 %v1976, %v2060
  %2064 = vrot.lane.b32.xlu0 %v2062, 88
  %v2065 = vpop.permute.xlu0 %2064
  %v2067 = vmax.f32 %v2056, %v2065
  %v2068 = vadd.f32 %v2067, %v283
  %v2069 = vmax.f32 %v2068, 0.0
  %2071 = vrot.lane.b32.xlu0 %v2069, 72
  %v2072 = vpop.permute.xlu0 %2071
  %vm2074 = vcmask 1048128
  %2075 = vst.msk [vmem:[#allocation2 + $0x30] sm:$0xff] %vm2074, %v2072
  %vm2076 = vcmask 228352
  %2077 = vst.msk [vmem:[#allocation2 + $0x38] sm:$0xff] %vm2076, %v2072
  %v2078 = vld [vmem:[%s0 + $0x28] sm:$0xff]
  %v2079 = vld [vmem:[%s0 + $0x30] sm:$0xff]
  %2082 = vrot.lane.b32.xlu0 %v2078, 64
  %v2083 = vpop.permute.xlu0 %2082
  %2084 = vrot.lane.b32.xlu0 %v2079, 64
  %v2085 = vpop.permute.xlu0 %2084
  %v2086 = vsel %vm113, %v2083, %v2085
  %v2088 = vsel %vm113, %v2085, 0
  %2090 = vmatprep.subr.mxu0 %v39
  %2091 = vmatpush1.msra.mxu0 %v38
  %2092 = vmatprep.subr.mxu0 %v42
  %2093 = vmatpush1.msra.mxu0 %v41
  %2094 = vmatprep.subr.mxu0 %v45
  %2095 = vmatpush1.msra.mxu0 %v44
  %2096 = vmatprep.subr.mxu0 %v48
  %2097 = vmatpush1.msra.mxu0 %v47
  %2098 = vmatprep.subr.mxu0 %v51
  %2099 = vmatpush1.msra.mxu0 %v50
  %2100 = vmatprep.subr.mxu0 %v54
  %2101 = vmatpush1.msra.mxu0 %v53
  %2102 = vmatprep.subr.mxu0 %v57
  %2103 = vmatpush1.msra.mxu0 %v56
  %2104 = vmatprep.subr.mxu0 %v60
  %2105 = vmatpush1.msra.mxu0 %v59
  %2106 = vmatprep.subr.mxu0 %v63
  %2107 = vmatpush1.msra.mxu0 %v62
  %2108 = vmatprep.subr.mxu0 %v66
  %2109 = vmatpush1.msra.mxu0 %v65
  %2110 = vmatprep.subr.mxu0 %v69
  %2111 = vmatpush1.msra.mxu0 %v68
  %2112 = vmatprep.subr.mxu0 %v72
  %2113 = vmatpush1.msra.mxu0 %v71
  %2114 = vmatprep.subr.mxu0 %v75
  %2115 = vmatpush1.msra.mxu0 %v74
  %2116 = vmatprep.subr.mxu0 %v78
  %2117 = vmatpush1.msra.mxu0 %v77
  %2118 = vmatprep.subr.mxu0 %v81
  %2119 = vmatpush1.msra.mxu0 %v80
  %2120 = vmatprep.subr.mxu0 %v84
  %2121 = vmatpush1.msra.mxu0 %v83
  %2122 = vmatprep.subr.mxu0 %v87
  %2123 = vmatpush1.msra.mxu0 %v86
  %2124 = vmatprep.subr.mxu0 %v90
  %2125 = vmatpush1.msra.mxu0 %v89
  %2126 = vmatprep.subr.mxu0 %v93
  %2127 = vmatpush1.msra.mxu0 %v92
  %2128 = vmatprep.subr.mxu0 %v96
  %2129 = vmatpush1.msra.mxu0 %v95
  %2130 = vmatprep.subr.mxu0 %v99
  %2131 = vmatpush1.msra.mxu0 %v98
  %2132 = vmatprep.subr.mxu0 %v102
  %2133 = vmatpush1.msra.mxu0 %v101
  %2134 = vmatprep.subr.mxu0 %v105
  %2135 = vmatpush1.msra.mxu0 %v104
  %2136 = vmatprep.subr.mxu0 %v108
  %2137 = vmatpush1.msra.mxu0 %v107
  %2138 = vmatprep.subr.mxu0 0.0
  %2139 = vmatpush1.msra.mxu0 0.0
  %2140 = vmatprep.subr.mxu0 0.0
  %2141 = vmatpush1.msra.mxu0 0.0
  %2142 = vmatprep.subr.mxu0 0.0
  %2143 = vmatpush1.msra.mxu0 0.0
  %2144 = vmatprep.subr.mxu0 0.0
  %2145 = vmatpush1.msra.mxu0 0.0
  %2146 = vmatprep.subr.mxu0 0.0
  %2147 = vmatpush1.msra.mxu0 0.0
  %2148 = vmatprep.subr.mxu0 0.0
  %2149 = vmatpush1.msra.mxu0 0.0
  %2150 = vmatprep.subr.mxu0 0.0
  %2151 = vmatpush1.msra.mxu0 0.0
  %2152 = vmatprep.subr.mxu0 0.0
  %2153 = vmatpush1.msra.mxu0 0.0
  %2154 = vmatprep.mubr.f32.mxu0 %v2088
  %2155 = vmatmul.mubr.f32.gmra.mrb[0].mxu0 %v2086
  %v2156 = vpop.f32.mrb[0].mxu0
  %v2157 = vadd.f32 0.0, %v2156
  %v2158 = vpop.f32.mrb[0].mxu0
  %v2159 = vadd.f32 0.0, %v2158
  %2160 = vdwg.mxu0
  %2161 = vmatprep.subr.mxu0 0.0
  %2162 = vmatpush1.msra.mxu0 %v40
  %2163 = vmatprep.subr.mxu0 0.0
  %2164 = vmatpush1.msra.mxu0 %v43
  %2165 = vmatprep.subr.mxu0 0.0
  %2166 = vmatpush1.msra.mxu0 %v46
  %2167 = vmatprep.subr.mxu0 0.0
  %2168 = vmatpush1.msra.mxu0 %v49
  %2169 = vmatprep.subr.mxu0 0.0
  %2170 = vmatpush1.msra.mxu0 %v52
  %2171 = vmatprep.subr.mxu0 0.0
  %2172 = vmatpush1.msra.mxu0 %v55
  %2173 = vmatprep.subr.mxu0 0.0
  %2174 = vmatpush1.msra.mxu0 %v58
  %2175 = vmatprep.subr.mxu0 0.0
  %2176 = vmatpush1.msra.mxu0 %v61
  %2177 = vmatprep.subr.mxu0 0.0
  %2178 = vmatpush1.msra.mxu0 %v64
  %2179 = vmatprep.subr.mxu0 0.0
  %2180 = vmatpush1.msra.mxu0 %v67
  %2181 = vmatprep.subr.mxu0 0.0
  %2182 = vmatpush1.msra.mxu0 %v70
  %2183 = vmatprep.subr.mxu0 0.0
  %2184 = vmatpush1.msra.mxu0 %v73
  %2185 = vmatprep.subr.mxu0 0.0
  %2186 = vmatpush1.msra.mxu0 %v76
  %2187 = vmatprep.subr.mxu0 0.0
  %2188 = vmatpush1.msra.mxu0 %v79
  %2189 = vmatprep.subr.mxu0 0.0
  %2190 = vmatpush1.msra.mxu0 %v82
  %2191 = vmatprep.subr.mxu0 0.0
  %2192 = vmatpush1.msra.mxu0 %v85
  %2193 = vmatprep.subr.mxu0 0.0
  %2194 = vmatpush1.msra.mxu0 %v88
  %2195 = vmatprep.subr.mxu0 0.0
  %2196 = vmatpush1.msra.mxu0 %v91
  %2197 = vmatprep.subr.mxu0 0.0
  %2198 = vmatpush1.msra.mxu0 %v94
  %2199 = vmatprep.subr.mxu0 0.0
  %2200 = vmatpush1.msra.mxu0 %v97
  %2201 = vmatprep.subr.mxu0 0.0
  %2202 = vmatpush1.msra.mxu0 %v100
  %2203 = vmatprep.subr.mxu0 0.0
  %2204 = vmatpush1.msra.mxu0 %v103
  %2205 = vmatprep.subr.mxu0 0.0
  %2206 = vmatpush1.msra.mxu0 %v106
  %2207 = vmatprep.subr.mxu0 0.0
  %2208 = vmatpush1.msra.mxu0 %v109
  %2209 = vmatprep.subr.mxu0 0.0
  %2210 = vmatpush1.msra.mxu0 0.0
  %2211 = vmatprep.subr.mxu0 0.0
  %2212 = vmatpush1.msra.mxu0 0.0
  %2213 = vmatprep.subr.mxu0 0.0
  %2214 = vmatpush1.msra.mxu0 0.0
  %2215 = vmatprep.subr.mxu0 0.0
  %2216 = vmatpush1.msra.mxu0 0.0
  %2217 = vmatprep.subr.mxu0 0.0
  %2218 = vmatpush1.msra.mxu0 0.0
  %2219 = vmatprep.subr.mxu0 0.0
  %2220 = vmatpush1.msra.mxu0 0.0
  %2221 = vmatprep.subr.mxu0 0.0
  %2222 = vmatpush1.msra.mxu0 0.0
  %2223 = vmatprep.subr.mxu0 0.0
  %2224 = vmatpush1.msra.mxu0 0.0
  %2225 = vmatprep.mubr.f32.mxu0 %v2088
  %2226 = vmatmul.mubr.f32.gmra.mrb[0].mxu0 %v2086
  %v2227 = vpop.f32.mrb[0].mxu0
  %v2228 = vadd.f32 0.0, %v2227
  %v2229 = vpop.f32.mrb[0].mxu0
  %2230 = vdwg.mxu0
  %2233 = vrot.lane.b32.xlu0 %v2157, 44
  %v2234 = vpop.permute.xlu0 %2233
  %2235 = vrot.lane.b32.xlu0 %v2159, 44
  %v2236 = vpop.permute.xlu0 %2235
  %v2237 = vsel %vm264, %v2234, %v2236
  %v2239 = vmax.f32 %v2157, %v2237
  %2241 = vrot.lane.b32.xlu0 %v2228, 44
  %v2242 = vpop.permute.xlu0 %2241
  %v2243 = vsel %vm264, %v2236, %v2242
  %v2245 = vmax.f32 %v2159, %v2243
  %2247 = vrot.lane.b32.xlu0 %v2245, 88
  %v2248 = vpop.permute.xlu0 %2247
  %v2250 = vmax.f32 %v2239, %v2248
  %v2251 = vadd.f32 %v2250, %v283
  %v2252 = vmax.f32 %v2251, 0.0
  %2254 = vrot.lane.b32.xlu0 %v2252, 28
  %v2255 = vpop.permute.xlu0 %2254
  %vm2257 = vcmask 916704
  %2258 = vst.msk [vmem:[#allocation2 + $0x38] sm:$0xff] %vm2257, %v2255
  %v2259 = vld [vmem:[%s0 + $0x30] sm:$0xff]
  %v2260 = vld [vmem:[%s0 + $0x38] sm:$0xff]
  %v2262 = vsel %vm113, %v2260, 0
  %2264 = vmatprep.subr.mxu0 %v39
  %2265 = vmatpush1.msra.mxu0 %v38
  %2266 = vmatprep.subr.mxu0 %v42
  %2267 = vmatpush1.msra.mxu0 %v41
  %2268 = vmatprep.subr.mxu0 %v45
  %2269 = vmatpush1.msra.mxu0 %v44
  %2270 = vmatprep.subr.mxu0 %v48
  %2271 = vmatpush1.msra.mxu0 %v47
  %2272 = vmatprep.subr.mxu0 %v51
  %2273 = vmatpush1.msra.mxu0 %v50
  %2274 = vmatprep.subr.mxu0 %v54
  %2275 = vmatpush1.msra.mxu0 %v53
  %2276 = vmatprep.subr.mxu0 %v57
  %2277 = vmatpush1.msra.mxu0 %v56
  %2278 = vmatprep.subr.mxu0 %v60
  %2279 = vmatpush1.msra.mxu0 %v59
  %2280 = vmatprep.subr.mxu0 %v63
  %2281 = vmatpush1.msra.mxu0 %v62
  %2282 = vmatprep.subr.mxu0 %v66
  %2283 = vmatpush1.msra.mxu0 %v65
  %2284 = vmatprep.subr.mxu0 %v69
  %2285 = vmatpush1.msra.mxu0 %v68
  %2286 = vmatprep.subr.mxu0 %v72
  %2287 = vmatpush1.msra.mxu0 %v71
  %2288 = vmatprep.subr.mxu0 %v75
  %2289 = vmatpush1.msra.mxu0 %v74
  %2290 = vmatprep.subr.mxu0 %v78
  %2291 = vmatpush1.msra.mxu0 %v77
  %2292 = vmatprep.subr.mxu0 %v81
  %2293 = vmatpush1.msra.mxu0 %v80
  %2294 = vmatprep.subr.mxu0 %v84
  %2295 = vmatpush1.msra.mxu0 %v83
  %2296 = vmatprep.subr.mxu0 %v87
  %2297 = vmatpush1.msra.mxu0 %v86
  %2298 = vmatprep.subr.mxu0 %v90
  %2299 = vmatpush1.msra.mxu0 %v89
  %2300 = vmatprep.subr.mxu0 %v93
  %2301 = vmatpush1.msra.mxu0 %v92
  %2302 = vmatprep.subr.mxu0 %v96
  %2303 = vmatpush1.msra.mxu0 %v95
  %2304 = vmatprep.subr.mxu0 %v99
  %2305 = vmatpush1.msra.mxu0 %v98
  %2306 = vmatprep.subr.mxu0 %v102
  %2307 = vmatpush1.msra.mxu0 %v101
  %2308 = vmatprep.subr.mxu0 %v105
  %2309 = vmatpush1.msra.mxu0 %v104
  %2310 = vmatprep.subr.mxu0 %v108
  %2311 = vmatpush1.msra.mxu0 %v107
  %2312 = vmatprep.subr.mxu0 0.0
  %2313 = vmatpush1.msra.mxu0 0.0
  %2314 = vmatprep.subr.mxu0 0.0
  %2315 = vmatpush1.msra.mxu0 0.0
  %2316 = vmatprep.subr.mxu0 0.0
  %2317 = vmatpush1.msra.mxu0 0.0
  %2318 = vmatprep.subr.mxu0 0.0
  %2319 = vmatpush1.msra.mxu0 0.0
  %2320 = vmatprep.subr.mxu0 0.0
  %2321 = vmatpush1.msra.mxu0 0.0
  %2322 = vmatprep.subr.mxu0 0.0
  %2323 = vmatpush1.msra.mxu0 0.0
  %2324 = vmatprep.subr.mxu0 0.0
  %2325 = vmatpush1.msra.mxu0 0.0
  %2326 = vmatprep.subr.mxu0 0.0
  %2327 = vmatpush1.msra.mxu0 0.0
  %2328 = vmatprep.mubr.f32.mxu0 %v2262
  %2329 = vmatmul.mubr.f32.gmra.mrb[0].mxu0 %v2259
  %v2330 = vpop.f32.mrb[0].mxu0
  %v2331 = vadd.f32 0.0, %v2330
  %v2332 = vpop.f32.mrb[0].mxu0
  %v2333 = vadd.f32 0.0, %v2332
  %2334 = vdwg.mxu0
  %2335 = vmatprep.subr.mxu0 0.0
  %2336 = vmatpush1.msra.mxu0 %v40
  %2337 = vmatprep.subr.mxu0 0.0
  %2338 = vmatpush1.msra.mxu0 %v43
  %2339 = vmatprep.subr.mxu0 0.0
  %2340 = vmatpush1.msra.mxu0 %v46
  %2341 = vmatprep.subr.mxu0 0.0
  %2342 = vmatpush1.msra.mxu0 %v49
  %2343 = vmatprep.subr.mxu0 0.0
  %2344 = vmatpush1.msra.mxu0 %v52
  %2345 = vmatprep.subr.mxu0 0.0
  %2346 = vmatpush1.msra.mxu0 %v55
  %2347 = vmatprep.subr.mxu0 0.0
  %2348 = vmatpush1.msra.mxu0 %v58
  %2349 = vmatprep.subr.mxu0 0.0
  %2350 = vmatpush1.msra.mxu0 %v61
  %2351 = vmatprep.subr.mxu0 0.0
  %2352 = vmatpush1.msra.mxu0 %v64
  %2353 = vmatprep.subr.mxu0 0.0
  %2354 = vmatpush1.msra.mxu0 %v67
  %2355 = vmatprep.subr.mxu0 0.0
  %2356 = vmatpush1.msra.mxu0 %v70
  %2357 = vmatprep.subr.mxu0 0.0
  %2358 = vmatpush1.msra.mxu0 %v73
  %2359 = vmatprep.subr.mxu0 0.0
  %2360 = vmatpush1.msra.mxu0 %v76
  %2361 = vmatprep.subr.mxu0 0.0
  %2362 = vmatpush1.msra.mxu0 %v79
  %2363 = vmatprep.subr.mxu0 0.0
  %2364 = vmatpush1.msra.mxu0 %v82
  %2365 = vmatprep.subr.mxu0 0.0
  %2366 = vmatpush1.msra.mxu0 %v85
  %2367 = vmatprep.subr.mxu0 0.0
  %2368 = vmatpush1.msra.mxu0 %v88
  %2369 = vmatprep.subr.mxu0 0.0
  %2370 = vmatpush1.msra.mxu0 %v91
  %2371 = vmatprep.subr.mxu0 0.0
  %2372 = vmatpush1.msra.mxu0 %v94
  %2373 = vmatprep.subr.mxu0 0.0
  %2374 = vmatpush1.msra.mxu0 %v97
  %2375 = vmatprep.subr.mxu0 0.0
  %2376 = vmatpush1.msra.mxu0 %v100
  %2377 = vmatprep.subr.mxu0 0.0
  %2378 = vmatpush1.msra.mxu0 %v103
  %2379 = vmatprep.subr.mxu0 0.0
  %2380 = vmatpush1.msra.mxu0 %v106
  %2381 = vmatprep.subr.mxu0 0.0
  %2382 = vmatpush1.msra.mxu0 %v109
  %2383 = vmatprep.subr.mxu0 0.0
  %2384 = vmatpush1.msra.mxu0 0.0
  %2385 = vmatprep.subr.mxu0 0.0
  %2386 = vmatpush1.msra.mxu0 0.0
  %2387 = vmatprep.subr.mxu0 0.0
  %2388 = vmatpush1.msra.mxu0 0.0
  %2389 = vmatprep.subr.mxu0 0.0
  %2390 = vmatpush1.msra.mxu0 0.0
  %2391 = vmatprep.subr.mxu0 0.0
  %2392 = vmatpush1.msra.mxu0 0.0
  %2393 = vmatprep.subr.mxu0 0.0
  %2394 = vmatpush1.msra.mxu0 0.0
  %2395 = vmatprep.subr.mxu0 0.0
  %2396 = vmatpush1.msra.mxu0 0.0
  %2397 = vmatprep.subr.mxu0 0.0
  %2398 = vmatpush1.msra.mxu0 0.0
  %2399 = vmatprep.mubr.f32.mxu0 %v2262
  %2400 = vmatmul.mubr.f32.gmra.mrb[0].mxu0 %v2259
  %v2401 = vpop.f32.mrb[0].mxu0
  %v2402 = vadd.f32 0.0, %v2401
  %v2403 = vpop.f32.mrb[0].mxu0
  %2404 = vdwg.mxu0
  %2407 = vrot.lane.b32.xlu0 %v2331, 44
  %v2408 = vpop.permute.xlu0 %2407
  %2409 = vrot.lane.b32.xlu0 %v2333, 44
  %v2410 = vpop.permute.xlu0 %2409
  %v2411 = vsel %vm264, %v2408, %v2410
  %v2413 = vmax.f32 %v2331, %v2411
  %2415 = vrot.lane.b32.xlu0 %v2402, 44
  %v2416 = vpop.permute.xlu0 %2415
  %v2417 = vsel %vm264, %v2410, %v2416
  %v2419 = vmax.f32 %v2333, %v2417
  %2421 = vrot.lane.b32.xlu0 %v2419, 88
  %v2422 = vpop.permute.xlu0 %2421
  %v2424 = vmax.f32 %v2413, %v2422
  %v2425 = vadd.f32 %v2424, %v283
  %v2426 = vmax.f32 %v2425, 0.0
  %2428 = vrot.lane.b32.xlu0 %v2426, 112
  %v2429 = vpop.permute.xlu0 %2428
  %vm2431 = vcmask 1048448
  %2432 = vst.msk [vmem:[#allocation2 + $0x38] sm:$0xff] %vm2431, %v2429
  %vm2433 = vcmask 556032
  %2434 = vst.msk [vmem:[#allocation2 + $0x40] sm:$0xff] %vm2433, %v2429
  %v2435 = vld [vmem:[%s0 + $0x30] sm:$0xff]
  %v2436 = vld [vmem:[%s0 + $0x38] sm:$0xff]
  %2439 = vrot.lane.b32.xlu0 %v2435, 64
  %v2440 = vpop.permute.xlu0 %2439
  %2441 = vrot.lane.b32.xlu0 %v2436, 64
  %v2442 = vpop.permute.xlu0 %2441
  %v2443 = vsel %vm113, %v2440, %v2442
  %v2445 = vsel %vm113, %v2442, 0
  %2447 = vmatprep.subr.mxu0 %v39
  %2448 = vmatpush1.msra.mxu0 %v38
  %2449 = vmatprep.subr.mxu0 %v42
  %2450 = vmatpush1.msra.mxu0 %v41
  %2451 = vmatprep.subr.mxu0 %v45
  %2452 = vmatpush1.msra.mxu0 %v44
  %2453 = vmatprep.subr.mxu0 %v48
  %2454 = vmatpush1.msra.mxu0 %v47
  %2455 = vmatprep.subr.mxu0 %v51
  %2456 = vmatpush1.msra.mxu0 %v50
  %2457 = vmatprep.subr.mxu0 %v54
  %2458 = vmatpush1.msra.mxu0 %v53
  %2459 = vmatprep.subr.mxu0 %v57
  %2460 = vmatpush1.msra.mxu0 %v56
  %2461 = vmatprep.subr.mxu0 %v60
  %2462 = vmatpush1.msra.mxu0 %v59
  %2463 = vmatprep.subr.mxu0 %v63
  %2464 = vmatpush1.msra.mxu0 %v62
  %2465 = vmatprep.subr.mxu0 %v66
  %2466 = vmatpush1.msra.mxu0 %v65
  %2467 = vmatprep.subr.mxu0 %v69
  %2468 = vmatpush1.msra.mxu0 %v68
  %2469 = vmatprep.subr.mxu0 %v72
  %2470 = vmatpush1.msra.mxu0 %v71
  %2471 = vmatprep.subr.mxu0 %v75
  %2472 = vmatpush1.msra.mxu0 %v74
  %2473 = vmatprep.subr.mxu0 %v78
  %2474 = vmatpush1.msra.mxu0 %v77
  %2475 = vmatprep.subr.mxu0 %v81
  %2476 = vmatpush1.msra.mxu0 %v80
  %2477 = vmatprep.subr.mxu0 %v84
  %2478 = vmatpush1.msra.mxu0 %v83
  %2479 = vmatprep.subr.mxu0 %v87
  %2480 = vmatpush1.msra.mxu0 %v86
  %2481 = vmatprep.subr.mxu0 %v90
  %2482 = vmatpush1.msra.mxu0 %v89
  %2483 = vmatprep.subr.mxu0 %v93
  %2484 = vmatpush1.msra.mxu0 %v92
  %2485 = vmatprep.subr.mxu0 %v96
  %2486 = vmatpush1.msra.mxu0 %v95
  %2487 = vmatprep.subr.mxu0 %v99
  %2488 = vmatpush1.msra.mxu0 %v98
  %2489 = vmatprep.subr.mxu0 %v102
  %2490 = vmatpush1.msra.mxu0 %v101
  %2491 = vmatprep.subr.mxu0 %v105
  %2492 = vmatpush1.msra.mxu0 %v104
  %2493 = vmatprep.subr.mxu0 %v108
  %2494 = vmatpush1.msra.mxu0 %v107
  %2495 = vmatprep.subr.mxu0 0.0
  %2496 = vmatpush1.msra.mxu0 0.0
  %2497 = vmatprep.subr.mxu0 0.0
  %2498 = vmatpush1.msra.mxu0 0.0
  %2499 = vmatprep.subr.mxu0 0.0
  %2500 = vmatpush1.msra.mxu0 0.0
  %2501 = vmatprep.subr.mxu0 0.0
  %2502 = vmatpush1.msra.mxu0 0.0
  %2503 = vmatprep.subr.mxu0 0.0
  %2504 = vmatpush1.msra.mxu0 0.0
  %2505 = vmatprep.subr.mxu0 0.0
  %2506 = vmatpush1.msra.mxu0 0.0
  %2507 = vmatprep.subr.mxu0 0.0
  %2508 = vmatpush1.msra.mxu0 0.0
  %2509 = vmatprep.subr.mxu0 0.0
  %2510 = vmatpush1.msra.mxu0 0.0
  %2511 = vmatprep.mubr.f32.mxu0 %v2445
  %2512 = vmatmul.mubr.f32.gmra.mrb[0].mxu0 %v2443
  %v2513 = vpop.f32.mrb[0].mxu0
  %v2514 = vadd.f32 0.0, %v2513
  %v2515 = vpop.f32.mrb[0].mxu0
  %v2516 = vadd.f32 0.0, %v2515
  %2517 = vdwg.mxu0
  %2518 = vmatprep.subr.mxu0 0.0
  %2519 = vmatpush1.msra.mxu0 %v40
  %2520 = vmatprep.subr.mxu0 0.0
  %2521 = vmatpush1.msra.mxu0 %v43
  %2522 = vmatprep.subr.mxu0 0.0
  %2523 = vmatpush1.msra.mxu0 %v46
  %2524 = vmatprep.subr.mxu0 0.0
  %2525 = vmatpush1.msra.mxu0 %v49
  %2526 = vmatprep.subr.mxu0 0.0
  %2527 = vmatpush1.msra.mxu0 %v52
  %2528 = vmatprep.subr.mxu0 0.0
  %2529 = vmatpush1.msra.mxu0 %v55
  %2530 = vmatprep.subr.mxu0 0.0
  %2531 = vmatpush1.msra.mxu0 %v58
  %2532 = vmatprep.subr.mxu0 0.0
  %2533 = vmatpush1.msra.mxu0 %v61
  %2534 = vmatprep.subr.mxu0 0.0
  %2535 = vmatpush1.msra.mxu0 %v64
  %2536 = vmatprep.subr.mxu0 0.0
  %2537 = vmatpush1.msra.mxu0 %v67
  %2538 = vmatprep.subr.mxu0 0.0
  %2539 = vmatpush1.msra.mxu0 %v70
  %2540 = vmatprep.subr.mxu0 0.0
  %2541 = vmatpush1.msra.mxu0 %v73
  %2542 = vmatprep.subr.mxu0 0.0
  %2543 = vmatpush1.msra.mxu0 %v76
  %2544 = vmatprep.subr.mxu0 0.0
  %2545 = vmatpush1.msra.mxu0 %v79
  %2546 = vmatprep.subr.mxu0 0.0
  %2547 = vmatpush1.msra.mxu0 %v82
  %2548 = vmatprep.subr.mxu0 0.0
  %2549 = vmatpush1.msra.mxu0 %v85
  %2550 = vmatprep.subr.mxu0 0.0
  %2551 = vmatpush1.msra.mxu0 %v88
  %2552 = vmatprep.subr.mxu0 0.0
  %2553 = vmatpush1.msra.mxu0 %v91
  %2554 = vmatprep.subr.mxu0 0.0
  %2555 = vmatpush1.msra.mxu0 %v94
  %2556 = vmatprep.subr.mxu0 0.0
  %2557 = vmatpush1.msra.mxu0 %v97
  %2558 = vmatprep.subr.mxu0 0.0
  %2559 = vmatpush1.msra.mxu0 %v100
  %2560 = vmatprep.subr.mxu0 0.0
  %2561 = vmatpush1.msra.mxu0 %v103
  %2562 = vmatprep.subr.mxu0 0.0
  %2563 = vmatpush1.msra.mxu0 %v106
  %2564 = vmatprep.subr.mxu0 0.0
  %2565 = vmatpush1.msra.mxu0 %v109
  %2566 = vmatprep.subr.mxu0 0.0
  %2567 = vmatpush1.msra.mxu0 0.0
  %2568 = vmatprep.subr.mxu0 0.0
  %2569 = vmatpush1.msra.mxu0 0.0
  %2570 = vmatprep.subr.mxu0 0.0
  %2571 = vmatpush1.msra.mxu0 0.0
  %2572 = vmatprep.subr.mxu0 0.0
  %2573 = vmatpush1.msra.mxu0 0.0
  %2574 = vmatprep.subr.mxu0 0.0
  %2575 = vmatpush1.msra.mxu0 0.0
  %2576 = vmatprep.subr.mxu0 0.0
  %2577 = vmatpush1.msra.mxu0 0.0
  %2578 = vmatprep.subr.mxu0 0.0
  %2579 = vmatpush1.msra.mxu0 0.0
  %2580 = vmatprep.subr.mxu0 0.0
  %2581 = vmatpush1.msra.mxu0 0.0
  %2582 = vmatprep.mubr.f32.mxu0 %v2445
  %2583 = vmatmul.mubr.f32.gmra.mrb[0].mxu0 %v2443
  %v2584 = vpop.f32.mrb[0].mxu0
  %v2585 = vadd.f32 0.0, %v2584
  %v2586 = vpop.f32.mrb[0].mxu0
  %2587 = vdwg.mxu0
  %2590 = vrot.lane.b32.xlu0 %v2514, 44
  %v2591 = vpop.permute.xlu0 %2590
  %2592 = vrot.lane.b32.xlu0 %v2516, 44
  %v2593 = vpop.permute.xlu0 %2592
  %v2594 = vsel %vm264, %v2591, %v2593
  %v2596 = vmax.f32 %v2514, %v2594
  %2598 = vrot.lane.b32.xlu0 %v2585, 44
  %v2599 = vpop.permute.xlu0 %2598
  %v2600 = vsel %vm264, %v2593, %v2599
  %v2602 = vmax.f32 %v2516, %v2600
  %2604 = vrot.lane.b32.xlu0 %v2602, 88
  %v2605 = vpop.permute.xlu0 %2604
  %v2607 = vmax.f32 %v2596, %v2605
  %v2608 = vadd.f32 %v2607, %v283
  %v2609 = vmax.f32 %v2608, 0.0
  %2611 = vrot.lane.b32.xlu0 %v2609, 68
  %v2612 = vpop.permute.xlu0 %2611
  %vm2614 = vcmask 1048096
  %2615 = vst.msk [vmem:[#allocation2 + $0x40] sm:$0xff] %vm2614, %v2612
  %vm2616 = vcmask 195584
  %2617 = vst.msk [vmem:[#allocation2 + $0x48] sm:$0xff] %vm2616, %v2612
  %v2618 = vld [vmem:[%s3] sm:$0xff]
  %v2619 = vld [vmem:[%s3 + $0x8] sm:$0xff]
  %v2620 = vld [vmem:[%s3 + $0x10] sm:$0xff]
  %v2621 = vld [vmem:[%s3 + $0x18] sm:$0xff]
  %v2622 = vld [vmem:[%s3 + $0x20] sm:$0xff]
  %v2623 = vld [vmem:[%s3 + $0x28] sm:$0xff]
  %v2624 = vld [vmem:[%s3 + $0x30] sm:$0xff]
  %v2625 = vld [vmem:[%s3 + $0x38] sm:$0xff]
  %v2626 = vld [vmem:[%s3 + $0x40] sm:$0xff]
  %v2627 = vld [vmem:[%s3 + $0x48] sm:$0xff]
  %v2628 = vld [vmem:[%s3 + $0x50] sm:$0xff]
  %v2629 = vld [vmem:[%s3 + $0x58] sm:$0xff]
  %v2630 = vld [vmem:[%s3 + $0x60] sm:$0xff]
  %v2631 = vld [vmem:[%s3 + $0x68] sm:$0xff]
  %v2632 = vld [vmem:[%s3 + $0x70] sm:$0xff]
  %v2633 = vld [vmem:[%s3 + $0x78] sm:$0xff]
  %v2634 = vld [vmem:[%s3 + $0x80] sm:$0xff]
  %v2635 = vld [vmem:[%s3 + $0x88] sm:$0xff]
  %v2636 = vld [vmem:[%s3 + $0x90] sm:$0xff]
  %v2637 = vld [vmem:[%s3 + $0x98] sm:$0xff]
  %v2638 = vld [vmem:[%s3 + $0xa0] sm:$0xff]
  %v2639 = vld [vmem:[%s3 + $0xa8] sm:$0xff]
  %v2640 = vld [vmem:[%s3 + $0xb0] sm:$0xff]
  %v2641 = vld [vmem:[%s3 + $0xb8] sm:$0xff]
  %v2642 = vld [vmem:[%s3 + $0xc0] sm:$0xff]
  %v2643 = vld [vmem:[%s3 + $0xc8] sm:$0xff]
  %v2644 = vld [vmem:[%s3 + $0xd0] sm:$0xff]
  %v2645 = vld [vmem:[%s3 + $0xd8] sm:$0xff]
  %v2646 = vld [vmem:[%s3 + $0xe0] sm:$0xff]
  %v2647 = vld [vmem:[%s3 + $0xe8] sm:$0xff]
  %v2648 = vld [vmem:[%s3 + $0xf0] sm:$0xff]
  %v2649 = vld [vmem:[%s3 + $0xf8] sm:$0xff]
  %v2650 = vld [vmem:[%s3 + $0x100] sm:$0xff]
  %v2651 = vld [vmem:[%s3 + $0x108] sm:$0xff]
  %v2652 = vld [vmem:[%s3 + $0x110] sm:$0xff]
  %v2653 = vld [vmem:[%s3 + $0x118] sm:$0xff]
  %v2654 = vld [vmem:[%s3 + $0x120] sm:$0xff]
  %v2655 = vld [vmem:[%s3 + $0x128] sm:$0xff]
  %v2656 = vld [vmem:[%s3 + $0x130] sm:$0xff]
  %v2657 = vld [vmem:[%s3 + $0x138] sm:$0xff]
  %v2658 = vld [vmem:[%s3 + $0x140] sm:$0xff]
  %v2659 = vld [vmem:[%s3 + $0x148] sm:$0xff]
  %v2660 = vld [vmem:[%s3 + $0x150] sm:$0xff]
  %v2661 = vld [vmem:[%s3 + $0x158] sm:$0xff]
  %v2662 = vld [vmem:[%s3 + $0x160] sm:$0xff]
  %v2663 = vld [vmem:[%s3 + $0x168] sm:$0xff]
  %v2664 = vld [vmem:[%s3 + $0x170] sm:$0xff]
  %v2665 = vld [vmem:[%s3 + $0x178] sm:$0xff]
  %v2666 = vld [vmem:[%s3 + $0x180] sm:$0xff]
  %v2667 = vld [vmem:[%s3 + $0x188] sm:$0xff]
  %v2668 = vld [vmem:[%s3 + $0x190] sm:$0xff]
  %v2669 = vld [vmem:[%s3 + $0x198] sm:$0xff]
  %v2670 = vld [vmem:[%s3 + $0x1a0] sm:$0xff]
  %v2671 = vld [vmem:[%s3 + $0x1a8] sm:$0xff]
  %v2672 = vld [vmem:[%s3 + $0x1b0] sm:$0xff]
  %v2673 = vld [vmem:[%s3 + $0x1b8] sm:$0xff]
  %v2674 = vld [vmem:[%s3 + $0x1c0] sm:$0xff]
  %v2675 = vld [vmem:[%s3 + $0x1c8] sm:$0xff]
  %v2676 = vld [vmem:[%s3 + $0x1d0] sm:$0xff]
  %v2677 = vld [vmem:[%s3 + $0x1d8] sm:$0xff]
  %v2678 = vld [vmem:[%s3 + $0x1e0] sm:$0xff]
  %v2679 = vld [vmem:[%s3 + $0x1e8] sm:$0xff]
  %v2680 = vld [vmem:[%s3 + $0x1f0] sm:$0xff]
  %v2681 = vld [vmem:[%s3 + $0x1f8] sm:$0xff]
  %v2682 = vld [vmem:[%s3 + $0x200] sm:$0xff]
  %v2683 = vld [vmem:[%s3 + $0x208] sm:$0xff]
  %v2684 = vld [vmem:[%s3 + $0x210] sm:$0xff]
  %v2685 = vld [vmem:[%s3 + $0x218] sm:$0xff]
  %v2686 = vld [vmem:[%s3 + $0x220] sm:$0xff]
  %v2687 = vld [vmem:[%s3 + $0x228] sm:$0xff]
  %v2688 = vld [vmem:[%s3 + $0x230] sm:$0xff]
  %v2689 = vld [vmem:[%s3 + $0x238] sm:$0xff]
  %v2690 = vld [vmem:[%s3 + $0x240] sm:$0xff]
  %v2691 = vld [vmem:[%s3 + $0x248] sm:$0xff]
  %v2692 = vld [vmem:[%s3 + $0x250] sm:$0xff]
  %v2693 = vld [vmem:[%s3 + $0x258] sm:$0xff]
  %v2694 = vld [vmem:[%s3 + $0x260] sm:$0xff]
  %v2695 = vld [vmem:[%s3 + $0x268] sm:$0xff]
  %v2696 = vld [vmem:[%s3 + $0x270] sm:$0xff]
  %v2697 = vld [vmem:[%s3 + $0x278] sm:$0xff]
  %v2698 = vld [vmem:[%s3 + $0x280] sm:$0xff]
  %v2699 = vld [vmem:[%s3 + $0x288] sm:$0xff]
  %v2700 = vld [vmem:[%s3 + $0x290] sm:$0xff]
  %v2701 = vld [vmem:[%s3 + $0x298] sm:$0xff]
  %v2702 = vld [vmem:[%s3 + $0x2a0] sm:$0xff]
  %v2703 = vld [vmem:[%s3 + $0x2a8] sm:$0xff]
  %v2704 = vld [vmem:[%s3 + $0x2b0] sm:$0xff]
  %v2705 = vld [vmem:[%s3 + $0x2b8] sm:$0xff]
  %v2706 = vld [vmem:[%s3 + $0x2c0] sm:$0xff]
  %v2707 = vld [vmem:[%s3 + $0x2c8] sm:$0xff]
  %v2708 = vld [vmem:[%s3 + $0x2d0] sm:$0xff]
  %v2709 = vld [vmem:[%s3 + $0x2d8] sm:$0xff]
  %v2710 = vld [vmem:[%s3 + $0x2e0] sm:$0xff]
  %v2711 = vld [vmem:[%s3 + $0x2e8] sm:$0xff]
  %v2712 = vld [vmem:[%s3 + $0x2f0] sm:$0xff]
  %v2713 = vld [vmem:[%s3 + $0x2f8] sm:$0xff]
  %v2714 = vld [vmem:[%s3 + $0x300] sm:$0xff]
  %v2715 = vld [vmem:[%s3 + $0x308] sm:$0xff]
  %v2716 = vld [vmem:[%s3 + $0x310] sm:$0xff]
  %v2717 = vld [vmem:[%s3 + $0x318] sm:$0xff]
  %v2718 = vld [vmem:[%s3 + $0x320] sm:$0xff]
  %v2719 = vld [vmem:[%s3 + $0x328] sm:$0xff]
  %v2720 = vld [vmem:[%s3 + $0x330] sm:$0xff]
  %v2721 = vld [vmem:[%s3 + $0x338] sm:$0xff]
  %v2722 = vld [vmem:[%s3 + $0x340] sm:$0xff]
  %v2723 = vld [vmem:[%s3 + $0x348] sm:$0xff]
  %v2724 = vld [vmem:[%s3 + $0x350] sm:$0xff]
  %v2725 = vld [vmem:[%s3 + $0x358] sm:$0xff]
  %v2726 = vld [vmem:[%s3 + $0x360] sm:$0xff]
  %v2727 = vld [vmem:[%s3 + $0x368] sm:$0xff]
  %v2728 = vld [vmem:[%s3 + $0x370] sm:$0xff]
  %v2729 = vld [vmem:[%s3 + $0x378] sm:$0xff]
  %v2730 = vld [vmem:[%s3 + $0x380] sm:$0xff]
  %v2731 = vld [vmem:[%s3 + $0x388] sm:$0xff]
  %v2732 = vld [vmem:[%s3 + $0x390] sm:$0xff]
  %v2733 = vld [vmem:[%s3 + $0x398] sm:$0xff]
  %v2734 = vld [vmem:[%s3 + $0x3a0] sm:$0xff]
  %v2735 = vld [vmem:[%s3 + $0x3a8] sm:$0xff]
  %v2736 = vld [vmem:[%s3 + $0x3b0] sm:$0xff]
  %v2737 = vld [vmem:[%s3 + $0x3b8] sm:$0xff]
  %v2738 = vld [vmem:[%s3 + $0x3c0] sm:$0xff]
  %v2739 = vld [vmem:[%s3 + $0x3c8] sm:$0xff]
  %v2740 = vld [vmem:[%s3 + $0x3d0] sm:$0xff]
  %v2741 = vld [vmem:[%s3 + $0x3d8] sm:$0xff]
  %v2742 = vld [vmem:[%s3 + $0x3e0] sm:$0xff]
  %v2743 = vld [vmem:[%s3 + $0x3e8] sm:$0xff]
  %v2744 = vld [vmem:[%s3 + $0x3f0] sm:$0xff]
  %v2745 = vld [vmem:[%s3 + $0x3f8] sm:$0xff]
  %v2746 = vld [vmem:[%s3 + $0x400] sm:$0xff]
  %v2747 = vld [vmem:[%s3 + $0x408] sm:$0xff]
  %v2748 = vld [vmem:[%s3 + $0x410] sm:$0xff]
  %v2749 = vld [vmem:[%s3 + $0x418] sm:$0xff]
  %v2750 = vld [vmem:[%s3 + $0x420] sm:$0xff]
  %v2751 = vld [vmem:[%s3 + $0x428] sm:$0xff]
  %v2752 = vld [vmem:[%s3 + $0x430] sm:$0xff]
  %v2753 = vld [vmem:[%s3 + $0x438] sm:$0xff]
  %v2754 = vld [vmem:[%s3 + $0x440] sm:$0xff]
  %v2755 = vld [vmem:[%s3 + $0x448] sm:$0xff]
  %v2756 = vld [vmem:[%s3 + $0x450] sm:$0xff]
  %v2757 = vld [vmem:[%s3 + $0x458] sm:$0xff]
  %v2758 = vld [vmem:[%s3 + $0x460] sm:$0xff]
  %v2759 = vld [vmem:[%s3 + $0x468] sm:$0xff]
  %v2760 = vld [vmem:[%s3 + $0x470] sm:$0xff]
  %v2761 = vld [vmem:[%s3 + $0x478] sm:$0xff]
  %v2762 = vld [vmem:[%s3 + $0x480] sm:$0xff]
  %v2763 = vld [vmem:[%s3 + $0x488] sm:$0xff]
  %v2764 = vld [vmem:[%s3 + $0x490] sm:$0xff]
  %v2765 = vld [vmem:[%s3 + $0x498] sm:$0xff]
  %v2766 = vld [vmem:[%s3 + $0x4a0] sm:$0xff]
  %v2767 = vld [vmem:[%s3 + $0x4a8] sm:$0xff]
  %v2768 = vld [vmem:[%s3 + $0x4b0] sm:$0xff]
  %v2769 = vld [vmem:[%s3 + $0x4b8] sm:$0xff]
  %v2770 = vld [vmem:[%s3 + $0x4c0] sm:$0xff]
  %v2771 = vld [vmem:[%s3 + $0x4c8] sm:$0xff]
  %v2772 = vld [vmem:[%s3 + $0x4d0] sm:$0xff]
  %v2773 = vld [vmem:[%s3 + $0x4d8] sm:$0xff]
  %v2774 = vld [vmem:[%s3 + $0x4e0] sm:$0xff]
  %v2775 = vld [vmem:[%s3 + $0x4e8] sm:$0xff]
  %v2776 = vld [vmem:[%s3 + $0x4f0] sm:$0xff]
  %v2777 = vld [vmem:[%s3 + $0x4f8] sm:$0xff]
  %v2778 = vld [vmem:[%s3 + $0x500] sm:$0xff]
  %v2779 = vld [vmem:[%s3 + $0x508] sm:$0xff]
  %v2780 = vld [vmem:[%s3 + $0x510] sm:$0xff]
  %v2781 = vld [vmem:[%s3 + $0x518] sm:$0xff]
  %v2782 = vld [vmem:[%s3 + $0x520] sm:$0xff]
  %v2783 = vld [vmem:[%s3 + $0x528] sm:$0xff]
  %v2784 = vld [vmem:[%s3 + $0x530] sm:$0xff]
  %v2785 = vld [vmem:[%s3 + $0x538] sm:$0xff]
  %v2786 = vld [vmem:[%s3 + $0x540] sm:$0xff]
  %v2787 = vld [vmem:[%s3 + $0x548] sm:$0xff]
  %v2788 = vld [vmem:[%s3 + $0x550] sm:$0xff]
  %v2789 = vld [vmem:[%s3 + $0x558] sm:$0xff]
  %v2790 = vld [vmem:[%s3 + $0x560] sm:$0xff]
  %v2791 = vld [vmem:[%s3 + $0x568] sm:$0xff]
  %v2792 = vld [vmem:[%s3 + $0x570] sm:$0xff]
  %v2793 = vld [vmem:[%s3 + $0x578] sm:$0xff]
  %v2794 = vld [vmem:[%s3 + $0x580] sm:$0xff]
  %v2795 = vld [vmem:[%s3 + $0x588] sm:$0xff]
  %v2796 = vld [vmem:[%s3 + $0x590] sm:$0xff]
  %v2797 = vld [vmem:[%s3 + $0x598] sm:$0xff]
  %v2798 = vld [vmem:[%s3 + $0x5a0] sm:$0xff]
  %v2799 = vld [vmem:[%s3 + $0x5a8] sm:$0xff]
  %v2800 = vld [vmem:[%s3 + $0x5b0] sm:$0xff]
  %v2801 = vld [vmem:[%s3 + $0x5b8] sm:$0xff]
  %v2802 = vld [vmem:[%s3 + $0x5c0] sm:$0xff]
  %v2803 = vld [vmem:[%s3 + $0x5c8] sm:$0xff]
  %v2804 = vld [vmem:[%s3 + $0x5d0] sm:$0xff]
  %v2805 = vld [vmem:[%s3 + $0x5d8] sm:$0xff]
  %v2806 = vld [vmem:[%s3 + $0x5e0] sm:$0xff]
  %v2807 = vld [vmem:[%s4] sm:$0x1]
  %v2808 = vld [vmem:[#allocation2] sm:$0xff]
  %v2809 = vld [vmem:[#allocation2 + $0x8] sm:$0xff]
  %v2810 = vld [vmem:[#allocation2 + $0x10] sm:$0xff]
  %v2811 = vld [vmem:[#allocation2 + $0x18] sm:$0xff]
  %vm2812 = vcmask 982016
  %v2814 = vsel %vm2812, %v2811, 0
  %2816 = vmatprep.subr.mxu0 %v2619
  %2817 = vmatpush1.msra.mxu0 %v2618
  %2818 = vmatprep.subr.mxu0 %v2622
  %2819 = vmatpush1.msra.mxu0 %v2621
  %2820 = vmatprep.subr.mxu0 %v2625
  %2821 = vmatpush1.msra.mxu0 %v2624
  %2822 = vmatprep.subr.mxu0 %v2628
  %2823 = vmatpush1.msra.mxu0 %v2627
  %2824 = vmatprep.subr.mxu0 %v2631
  %2825 = vmatpush1.msra.mxu0 %v2630
  %2826 = vmatprep.subr.mxu0 %v2634
  %2827 = vmatpush1.msra.mxu0 %v2633
  %2828 = vmatprep.subr.mxu0 %v2637
  %2829 = vmatpush1.msra.mxu0 %v2636
  %2830 = vmatprep.subr.mxu0 %v2640
  %2831 = vmatpush1.msra.mxu0 %v2639
  %2832 = vmatprep.subr.mxu0 %v2643
  %2833 = vmatpush1.msra.mxu0 %v2642
  %2834 = vmatprep.subr.mxu0 %v2646
  %2835 = vmatpush1.msra.mxu0 %v2645
  %2836 = vmatprep.subr.mxu0 %v2649
  %2837 = vmatpush1.msra.mxu0 %v2648
  %2838 = vmatprep.subr.mxu0 %v2652
  %2839 = vmatpush1.msra.mxu0 %v2651
  %2840 = vmatprep.subr.mxu0 %v2655
  %2841 = vmatpush1.msra.mxu0 %v2654
  %2842 = vmatprep.subr.mxu0 %v2658
  %2843 = vmatpush1.msra.mxu0 %v2657
  %2844 = vmatprep.subr.mxu0 %v2661
  %2845 = vmatpush1.msra.mxu0 %v2660
  %2846 = vmatprep.subr.mxu0 %v2664
  %2847 = vmatpush1.msra.mxu0 %v2663
  %2848 = vmatprep.subr.mxu0 %v2667
  %2849 = vmatpush1.msra.mxu0 %v2666
  %2850 = vmatprep.subr.mxu0 %v2670
  %2851 = vmatpush1.msra.mxu0 %v2669
  %2852 = vmatprep.subr.mxu0 %v2673
  %2853 = vmatpush1.msra.mxu0 %v2672
  %2854 = vmatprep.subr.mxu0 %v2676
  %2855 = vmatpush1.msra.mxu0 %v2675
  %2856 = vmatprep.subr.mxu0 %v2679
  %2857 = vmatpush1.msra.mxu0 %v2678
  %2858 = vmatprep.subr.mxu0 %v2682
  %2859 = vmatpush1.msra.mxu0 %v2681
  %2860 = vmatprep.subr.mxu0 %v2685
  %2861 = vmatpush1.msra.mxu0 %v2684
  %2862 = vmatprep.subr.mxu0 %v2688
  %2863 = vmatpush1.msra.mxu0 %v2687
  %2864 = vmatprep.subr.mxu0 %v2691
  %2865 = vmatpush1.msra.mxu0 %v2690
  %2866 = vmatprep.subr.mxu0 %v2694
  %2867 = vmatpush1.msra.mxu0 %v2693
  %2868 = vmatprep.subr.mxu0 %v2697
  %2869 = vmatpush1.msra.mxu0 %v2696
  %2870 = vmatprep.subr.mxu0 %v2700
  %2871 = vmatpush1.msra.mxu0 %v2699
  %2872 = vmatprep.subr.mxu0 %v2703
  %2873 = vmatpush1.msra.mxu0 %v2702
  %2874 = vmatprep.subr.mxu0 %v2706
  %2875 = vmatpush1.msra.mxu0 %v2705
  %2876 = vmatprep.subr.mxu0 %v2709
  %2877 = vmatpush1.msra.mxu0 %v2708
  %2878 = vmatprep.subr.mxu0 %v2712
  %2879 = vmatpush1.msra.mxu0 %v2711
  %2880 = vmatprep.mubr.f32.mxu0 %v2809
  %2881 = vmatmul.mubr.f32.gmra.mrb[0].mxu0 %v2808
  %v2882 = vpop.f32.mrb[0].mxu0
  %v2883 = vadd.f32 0.0, %v2882
  %v2884 = vpop.f32.mrb[0].mxu0
  %v2885 = vadd.f32 0.0, %v2884
  %2886 = vdwg.mxu0
  %2887 = vmatprep.subr.mxu0 %v2715
  %2888 = vmatpush1.msra.mxu0 %v2714
  %2889 = vmatprep.subr.mxu0 %v2718
  %2890 = vmatpush1.msra.mxu0 %v2717
  %2891 = vmatprep.subr.mxu0 %v2721
  %2892 = vmatpush1.msra.mxu0 %v2720
  %2893 = vmatprep.subr.mxu0 %v2724
  %2894 = vmatpush1.msra.mxu0 %v2723
  %2895 = vmatprep.subr.mxu0 %v2727
  %2896 = vmatpush1.msra.mxu0 %v2726
  %2897 = vmatprep.subr.mxu0 %v2730
  %2898 = vmatpush1.msra.mxu0 %v2729
  %2899 = vmatprep.subr.mxu0 %v2733
  %2900 = vmatpush1.msra.mxu0 %v2732
  %2901 = vmatprep.subr.mxu0 %v2736
  %2902 = vmatpush1.msra.mxu0 %v2735
  %2903 = vmatprep.subr.mxu0 %v2739
  %2904 = vmatpush1.msra.mxu0 %v2738
  %2905 = vmatprep.subr.mxu0 %v2742
  %2906 = vmatpush1.msra.mxu0 %v2741
  %2907 = vmatprep.subr.mxu0 %v2745
  %2908 = vmatpush1.msra.mxu0 %v2744
  %2909 = vmatprep.subr.mxu0 %v2748
  %2910 = vmatpush1.msra.mxu0 %v2747
  %2911 = vmatprep.subr.mxu0 %v2751
  %2912 = vmatpush1.msra.mxu0 %v2750
  %2913 = vmatprep.subr.mxu0 %v2754
  %2914 = vmatpush1.msra.mxu0 %v2753
  %2915 = vmatprep.subr.mxu0 %v2757
  %2916 = vmatpush1.msra.mxu0 %v2756
  %2917 = vmatprep.subr.mxu0 %v2760
  %2918 = vmatpush1.msra.mxu0 %v2759
  %2919 = vmatprep.subr.mxu0 %v2763
  %2920 = vmatpush1.msra.mxu0 %v2762
  %2921 = vmatprep.subr.mxu0 %v2766
  %2922 = vmatpush1.msra.mxu0 %v2765
  %2923 = vmatprep.subr.mxu0 %v2769
  %2924 = vmatpush1.msra.mxu0 %v2768
  %2925 = vmatprep.subr.mxu0 %v2772
  %2926 = vmatpush1.msra.mxu0 %v2771
  %2927 = vmatprep.subr.mxu0 %v2775
  %2928 = vmatpush1.msra.mxu0 %v2774
  %2929 = vmatprep.subr.mxu0 %v2778
  %2930 = vmatpush1.msra.mxu0 %v2777
  %2931 = vmatprep.subr.mxu0 %v2781
  %2932 = vmatpush1.msra.mxu0 %v2780
  %2933 = vmatprep.subr.mxu0 %v2784
  %2934 = vmatpush1.msra.mxu0 %v2783
  %2935 = vmatprep.subr.mxu0 %v2787
  %2936 = vmatpush1.msra.mxu0 %v2786
  %2937 = vmatprep.subr.mxu0 %v2790
  %2938 = vmatpush1.msra.mxu0 %v2789
  %2939 = vmatprep.subr.mxu0 %v2793
  %2940 = vmatpush1.msra.mxu0 %v2792
  %2941 = vmatprep.subr.mxu0 %v2796
  %2942 = vmatpush1.msra.mxu0 %v2795
  %2943 = vmatprep.subr.mxu0 %v2799
  %2944 = vmatpush1.msra.mxu0 %v2798
  %2945 = vmatprep.subr.mxu0 %v2802
  %2946 = vmatpush1.msra.mxu0 %v2801
  %2947 = vmatprep.subr.mxu0 %v2805
  %2948 = vmatpush1.msra.mxu0 %v2804
  %2949 = vmatprep.subr.mxu0 0.0
  %2950 = vmatpush1.msra.mxu0 0.0
  %2951 = vmatprep.mubr.f32.mxu0 %v2814
  %2952 = vmatmul.mubr.f32.gmra.mrb[0].mxu0 %v2810
  %v2953 = vpop.f32.mrb[0].mxu0
  %v2954 = vadd.f32 %v2883, %v2953
  %v2955 = vpop.f32.mrb[0].mxu0
  %v2956 = vadd.f32 %v2885, %v2955
  %2957 = vdwg.mxu0
  %2958 = vmatprep.subr.mxu0 0.0
  %2959 = vmatpush1.msra.mxu0 %v2620
  %2960 = vmatprep.subr.mxu0 0.0
  %2961 = vmatpush1.msra.mxu0 %v2623
  %2962 = vmatprep.subr.mxu0 0.0
  %2963 = vmatpush1.msra.mxu0 %v2626
  %2964 = vmatprep.subr.mxu0 0.0
  %2965 = vmatpush1.msra.mxu0 %v2629
  %2966 = vmatprep.subr.mxu0 0.0
  %2967 = vmatpush1.msra.mxu0 %v2632
  %2968 = vmatprep.subr.mxu0 0.0
  %2969 = vmatpush1.msra.mxu0 %v2635
  %2970 = vmatprep.subr.mxu0 0.0
  %2971 = vmatpush1.msra.mxu0 %v2638
  %2972 = vmatprep.subr.mxu0 0.0
  %2973 = vmatpush1.msra.mxu0 %v2641
  %2974 = vmatprep.subr.mxu0 0.0
  %2975 = vmatpush1.msra.mxu0 %v2644
  %2976 = vmatprep.subr.mxu0 0.0
  %2977 = vmatpush1.msra.mxu0 %v2647
  %2978 = vmatprep.subr.mxu0 0.0
  %2979 = vmatpush1.msra.mxu0 %v2650
  %2980 = vmatprep.subr.mxu0 0.0
  %2981 = vmatpush1.msra.mxu0 %v2653
  %2982 = vmatprep.subr.mxu0 0.0
  %2983 = vmatpush1.msra.mxu0 %v2656
  %2984 = vmatprep.subr.mxu0 0.0
  %2985 = vmatpush1.msra.mxu0 %v2659
  %2986 = vmatprep.subr.mxu0 0.0
  %2987 = vmatpush1.msra.mxu0 %v2662
  %2988 = vmatprep.subr.mxu0 0.0
  %2989 = vmatpush1.msra.mxu0 %v2665
  %2990 = vmatprep.subr.mxu0 0.0
  %2991 = vmatpush1.msra.mxu0 %v2668
  %2992 = vmatprep.subr.mxu0 0.0
  %2993 = vmatpush1.msra.mxu0 %v2671
  %2994 = vmatprep.subr.mxu0 0.0
  %2995 = vmatpush1.msra.mxu0 %v2674
  %2996 = vmatprep.subr.mxu0 0.0
  %2997 = vmatpush1.msra.mxu0 %v2677
  %2998 = vmatprep.subr.mxu0 0.0
  %2999 = vmatpush1.msra.mxu0 %v2680
  %3000 = vmatprep.subr.mxu0 0.0
  %3001 = vmatpush1.msra.mxu0 %v2683
  %3002 = vmatprep.subr.mxu0 0.0
  %3003 = vmatpush1.msra.mxu0 %v2686
  %3004 = vmatprep.subr.mxu0 0.0
  %3005 = vmatpush1.msra.mxu0 %v2689
  %3006 = vmatprep.subr.mxu0 0.0
  %3007 = vmatpush1.msra.mxu0 %v2692
  %3008 = vmatprep.subr.mxu0 0.0
  %3009 = vmatpush1.msra.mxu0 %v2695
  %3010 = vmatprep.subr.mxu0 0.0
  %3011 = vmatpush1.msra.mxu0 %v2698
  %3012 = vmatprep.subr.mxu0 0.0
  %3013 = vmatpush1.msra.mxu0 %v2701
  %3014 = vmatprep.subr.mxu0 0.0
  %3015 = vmatpush1.msra.mxu0 %v2704
  %3016 = vmatprep.subr.mxu0 0.0
  %3017 = vmatpush1.msra.mxu0 %v2707
  %3018 = vmatprep.subr.mxu0 0.0
  %3019 = vmatpush1.msra.mxu0 %v2710
  %3020 = vmatprep.subr.mxu0 0.0
  %3021 = vmatpush1.msra.mxu0 %v2713
  %3022 = vmatprep.mubr.f32.mxu0 %v2809
  %3023 = vmatmul.mubr.f32.gmra.mrb[0].mxu0 %v2808
  %v3024 = vpop.f32.mrb[0].mxu0
  %v3025 = vadd.f32 0.0, %v3024
  %v3026 = vpop.f32.mrb[0].mxu0
  %3027 = vdwg.mxu0
  %3028 = vmatprep.subr.mxu0 0.0
  %3029 = vmatpush1.msra.mxu0 %v2716
  %3030 = vmatprep.subr.mxu0 0.0
  %3031 = vmatpush1.msra.mxu0 %v2719
  %3032 = vmatprep.subr.mxu0 0.0
  %3033 = vmatpush1.msra.mxu0 %v2722
  %3034 = vmatprep.subr.mxu0 0.0
  %3035 = vmatpush1.msra.mxu0 %v2725
  %3036 = vmatprep.subr.mxu0 0.0
  %3037 = vmatpush1.msra.mxu0 %v2728
  %3038 = vmatprep.subr.mxu0 0.0
  %3039 = vmatpush1.msra.mxu0 %v2731
  %3040 = vmatprep.subr.mxu0 0.0
  %3041 = vmatpush1.msra.mxu0 %v2734
  %3042 = vmatprep.subr.mxu0 0.0
  %3043 = vmatpush1.msra.mxu0 %v2737
  %3044 = vmatprep.subr.mxu0 0.0
  %3045 = vmatpush1.msra.mxu0 %v2740
  %3046 = vmatprep.subr.mxu0 0.0
  %3047 = vmatpush1.msra.mxu0 %v2743
  %3048 = vmatprep.subr.mxu0 0.0
  %3049 = vmatpush1.msra.mxu0 %v2746
  %3050 = vmatprep.subr.mxu0 0.0
  %3051 = vmatpush1.msra.mxu0 %v2749
  %3052 = vmatprep.subr.mxu0 0.0
  %3053 = vmatpush1.msra.mxu0 %v2752
  %3054 = vmatprep.subr.mxu0 0.0
  %3055 = vmatpush1.msra.mxu0 %v2755
  %3056 = vmatprep.subr.mxu0 0.0
  %3057 = vmatpush1.msra.mxu0 %v2758
  %3058 = vmatprep.subr.mxu0 0.0
  %3059 = vmatpush1.msra.mxu0 %v2761
  %3060 = vmatprep.subr.mxu0 0.0
  %3061 = vmatpush1.msra.mxu0 %v2764
  %3062 = vmatprep.subr.mxu0 0.0
  %3063 = vmatpush1.msra.mxu0 %v2767
  %3064 = vmatprep.subr.mxu0 0.0
  %3065 = vmatpush1.msra.mxu0 %v2770
  %3066 = vmatprep.subr.mxu0 0.0
  %3067 = vmatpush1.msra.mxu0 %v2773
  %3068 = vmatprep.subr.mxu0 0.0
  %3069 = vmatpush1.msra.mxu0 %v2776
  %3070 = vmatprep.subr.mxu0 0.0
  %3071 = vmatpush1.msra.mxu0 %v2779
  %3072 = vmatprep.subr.mxu0 0.0
  %3073 = vmatpush1.msra.mxu0 %v2782
  %3074 = vmatprep.subr.mxu0 0.0
  %3075 = vmatpush1.msra.mxu0 %v2785
  %3076 = vmatprep.subr.mxu0 0.0
  %3077 = vmatpush1.msra.mxu0 %v2788
  %3078 = vmatprep.subr.mxu0 0.0
  %3079 = vmatpush1.msra.mxu0 %v2791
  %3080 = vmatprep.subr.mxu0 0.0
  %3081 = vmatpush1.msra.mxu0 %v2794
  %3082 = vmatprep.subr.mxu0 0.0
  %3083 = vmatpush1.msra.mxu0 %v2797
  %3084 = vmatprep.subr.mxu0 0.0
  %3085 = vmatpush1.msra.mxu0 %v2800
  %3086 = vmatprep.subr.mxu0 0.0
  %3087 = vmatpush1.msra.mxu0 %v2803
  %3088 = vmatprep.subr.mxu0 0.0
  %3089 = vmatpush1.msra.mxu0 %v2806
  %3090 = vmatprep.subr.mxu0 0.0
  %3091 = vmatpush1.msra.mxu0 0.0
  %3092 = vmatprep.mubr.f32.mxu0 %v2814
  %3093 = vmatmul.mubr.f32.gmra.mrb[0].mxu0 %v2810
  %v3094 = vpop.f32.mrb[0].mxu0
  %v3095 = vadd.f32 %v3025, %v3094
  %v3096 = vpop.f32.mrb[0].mxu0
  %3097 = vdwg.mxu0
  %3100 = vrot.lane.b32.xlu0 %v2954, 48
  %v3101 = vpop.permute.xlu0 %3100
  %3102 = vrot.lane.b32.xlu0 %v2956, 48
  %v3103 = vpop.permute.xlu0 %3102
  %vm3104 = vcmask 392192
  %v3105 = vsel %vm3104, %v3101, %v3103
  %v3107 = vmax.f32 %v2954, %v3105
  %3109 = vrot.lane.b32.xlu0 %v3095, 48
  %v3110 = vpop.permute.xlu0 %3109
  %v3111 = vsel %vm3104, %v3103, %v3110
  %v3113 = vmax.f32 %v2956, %v3111
  %3115 = vrot.lane.b32.xlu0 %v3113, 96
  %v3116 = vpop.permute.xlu0 %3115
  %v3118 = vmax.f32 %v3107, %v3116
  %v3120 = vlaneseq
  %v3121 = vshrl.u32 %v3120, 7
  %v3122 = vsub.s32 0, %v3121
  %v3123 = vrot.slane %v2807, %v3122
  %v3125 = vadd.f32 %v3118, %v3123
  %v3126 = vmax.f32 %v3125, 0.0
  %3127 = vst.msk [vmem:[#allocation3] sm:$0xff] %vm827, %v3126
  %v3128 = vld [vmem:[#allocation2 + $0x8] sm:$0xff]
  %v3129 = vld [vmem:[#allocation2 + $0x10] sm:$0xff]
  %v3130 = vld [vmem:[#allocation2 + $0x18] sm:$0xff]
  %v3131 = vld [vmem:[#allocation2 + $0x20] sm:$0xff]
  %v3132 = vld [vmem:[#allocation2 + $0x28] sm:$0xff]
  %3138 = vrot.lane.b32.xlu0 %v3128, 88
  %v3139 = vpop.permute.xlu0 %3138
  %3140 = vrot.lane.b32.xlu0 %v3129, 88
  %v3141 = vpop.permute.xlu0 %3140
  %3142 = vrot.lane.b32.xlu0 %v3130, 88
  %v3143 = vpop.permute.xlu0 %3142
  %3144 = vrot.lane.b32.xlu0 %v3131, 88
  %v3145 = vpop.permute.xlu0 %3144
  %3146 = vrot.lane.b32.xlu0 %v3132, 88
  %v3147 = vpop.permute.xlu0 %3146
  %vm3148 = vcmask 719872
  %v3149 = vsel %vm3148, %v3139, %v3141
  %v3150 = vsel %vm3148, %v3141, %v3143
  %v3151 = vsel %vm3148, %v3143, %v3145
  %v3152 = vsel %vm3148, %v3145, %v3147
  %v3156 = vsel %vm2812, %v3152, 0
  %3158 = vmatprep.subr.mxu0 %v2619
  %3159 = vmatpush1.msra.mxu0 %v2618
  %3160 = vmatprep.subr.mxu0 %v2622
  %3161 = vmatpush1.msra.mxu0 %v2621
  %3162 = vmatprep.subr.mxu0 %v2625
  %3163 = vmatpush1.msra.mxu0 %v2624
  %3164 = vmatprep.subr.mxu0 %v2628
  %3165 = vmatpush1.msra.mxu0 %v2627
  %3166 = vmatprep.subr.mxu0 %v2631
  %3167 = vmatpush1.msra.mxu0 %v2630
  %3168 = vmatprep.subr.mxu0 %v2634
  %3169 = vmatpush1.msra.mxu0 %v2633
  %3170 = vmatprep.subr.mxu0 %v2637
  %3171 = vmatpush1.msra.mxu0 %v2636
  %3172 = vmatprep.subr.mxu0 %v2640
  %3173 = vmatpush1.msra.mxu0 %v2639
  %3174 = vmatprep.subr.mxu0 %v2643
  %3175 = vmatpush1.msra.mxu0 %v2642
  %3176 = vmatprep.subr.mxu0 %v2646
  %3177 = vmatpush1.msra.mxu0 %v2645
  %3178 = vmatprep.subr.mxu0 %v2649
  %3179 = vmatpush1.msra.mxu0 %v2648
  %3180 = vmatprep.subr.mxu0 %v2652
  %3181 = vmatpush1.msra.mxu0 %v2651
  %3182 = vmatprep.subr.mxu0 %v2655
  %3183 = vmatpush1.msra.mxu0 %v2654
  %3184 = vmatprep.subr.mxu0 %v2658
  %3185 = vmatpush1.msra.mxu0 %v2657
  %3186 = vmatprep.subr.mxu0 %v2661
  %3187 = vmatpush1.msra.mxu0 %v2660
  %3188 = vmatprep.subr.mxu0 %v2664
  %3189 = vmatpush1.msra.mxu0 %v2663
  %3190 = vmatprep.subr.mxu0 %v2667
  %3191 = vmatpush1.msra.mxu0 %v2666
  %3192 = vmatprep.subr.mxu0 %v2670
  %3193 = vmatpush1.msra.mxu0 %v2669
  %3194 = vmatprep.subr.mxu0 %v2673
  %3195 = vmatpush1.msra.mxu0 %v2672
  %3196 = vmatprep.subr.mxu0 %v2676
  %3197 = vmatpush1.msra.mxu0 %v2675
  %3198 = vmatprep.subr.mxu0 %v2679
  %3199 = vmatpush1.msra.mxu0 %v2678
  %3200 = vmatprep.subr.mxu0 %v2682
  %3201 = vmatpush1.msra.mxu0 %v2681
  %3202 = vmatprep.subr.mxu0 %v2685
  %3203 = vmatpush1.msra.mxu0 %v2684
  %3204 = vmatprep.subr.mxu0 %v2688
  %3205 = vmatpush1.msra.mxu0 %v2687
  %3206 = vmatprep.subr.mxu0 %v2691
  %3207 = vmatpush1.msra.mxu0 %v2690
  %3208 = vmatprep.subr.mxu0 %v2694
  %3209 = vmatpush1.msra.mxu0 %v2693
  %3210 = vmatprep.subr.mxu0 %v2697
  %3211 = vmatpush1.msra.mxu0 %v2696
  %3212 = vmatprep.subr.mxu0 %v2700
  %3213 = vmatpush1.msra.mxu0 %v2699
  %3214 = vmatprep.subr.mxu0 %v2703
  %3215 = vmatpush1.msra.mxu0 %v2702
  %3216 = vmatprep.subr.mxu0 %v2706
  %3217 = vmatpush1.msra.mxu0 %v2705
  %3218 = vmatprep.subr.mxu0 %v2709
  %3219 = vmatpush1.msra.mxu0 %v2708
  %3220 = vmatprep.subr.mxu0 %v2712
  %3221 = vmatpush1.msra.mxu0 %v2711
  %3222 = vmatprep.mubr.f32.mxu0 %v3150
  %3223 = vmatmul.mubr.f32.gmra.mrb[0].mxu0 %v3149
  %v3224 = vpop.f32.mrb[0].mxu0
  %v3225 = vadd.f32 0.0, %v3224
  %v3226 = vpop.f32.mrb[0].mxu0
  %v3227 = vadd.f32 0.0, %v3226
  %3228 = vdwg.mxu0
  %3229 = vmatprep.subr.mxu0 %v2715
  %3230 = vmatpush1.msra.mxu0 %v2714
  %3231 = vmatprep.subr.mxu0 %v2718
  %3232 = vmatpush1.msra.mxu0 %v2717
  %3233 = vmatprep.subr.mxu0 %v2721
  %3234 = vmatpush1.msra.mxu0 %v2720
  %3235 = vmatprep.subr.mxu0 %v2724
  %3236 = vmatpush1.msra.mxu0 %v2723
  %3237 = vmatprep.subr.mxu0 %v2727
  %3238 = vmatpush1.msra.mxu0 %v2726
  %3239 = vmatprep.subr.mxu0 %v2730
  %3240 = vmatpush1.msra.mxu0 %v2729
  %3241 = vmatprep.subr.mxu0 %v2733
  %3242 = vmatpush1.msra.mxu0 %v2732
  %3243 = vmatprep.subr.mxu0 %v2736
  %3244 = vmatpush1.msra.mxu0 %v2735
  %3245 = vmatprep.subr.mxu0 %v2739
  %3246 = vmatpush1.msra.mxu0 %v2738
  %3247 = vmatprep.subr.mxu0 %v2742
  %3248 = vmatpush1.msra.mxu0 %v2741
  %3249 = vmatprep.subr.mxu0 %v2745
  %3250 = vmatpush1.msra.mxu0 %v2744
  %3251 = vmatprep.subr.mxu0 %v2748
  %3252 = vmatpush1.msra.mxu0 %v2747
  %3253 = vmatprep.subr.mxu0 %v2751
  %3254 = vmatpush1.msra.mxu0 %v2750
  %3255 = vmatprep.subr.mxu0 %v2754
  %3256 = vmatpush1.msra.mxu0 %v2753
  %3257 = vmatprep.subr.mxu0 %v2757
  %3258 = vmatpush1.msra.mxu0 %v2756
  %3259 = vmatprep.subr.mxu0 %v2760
  %3260 = vmatpush1.msra.mxu0 %v2759
  %3261 = vmatprep.subr.mxu0 %v2763
  %3262 = vmatpush1.msra.mxu0 %v2762
  %3263 = vmatprep.subr.mxu0 %v2766
  %3264 = vmatpush1.msra.mxu0 %v2765
  %3265 = vmatprep.subr.mxu0 %v2769
  %3266 = vmatpush1.msra.mxu0 %v2768
  %3267 = vmatprep.subr.mxu0 %v2772
  %3268 = vmatpush1.msra.mxu0 %v2771
  %3269 = vmatprep.subr.mxu0 %v2775
  %3270 = vmatpush1.msra.mxu0 %v2774
  %3271 = vmatprep.subr.mxu0 %v2778
  %3272 = vmatpush1.msra.mxu0 %v2777
  %3273 = vmatprep.subr.mxu0 %v2781
  %3274 = vmatpush1.msra.mxu0 %v2780
  %3275 = vmatprep.subr.mxu0 %v2784
  %3276 = vmatpush1.msra.mxu0 %v2783
  %3277 = vmatprep.subr.mxu0 %v2787
  %3278 = vmatpush1.msra.mxu0 %v2786
  %3279 = vmatprep.subr.mxu0 %v2790
  %3280 = vmatpush1.msra.mxu0 %v2789
  %3281 = vmatprep.subr.mxu0 %v2793
  %3282 = vmatpush1.msra.mxu0 %v2792
  %3283 = vmatprep.subr.mxu0 %v2796
  %3284 = vmatpush1.msra.mxu0 %v2795
  %3285 = vmatprep.subr.mxu0 %v2799
  %3286 = vmatpush1.msra.mxu0 %v2798
  %3287 = vmatprep.subr.mxu0 %v2802
  %3288 = vmatpush1.msra.mxu0 %v2801
  %3289 = vmatprep.subr.mxu0 %v2805
  %3290 = vmatpush1.msra.mxu0 %v2804
  %3291 = vmatprep.subr.mxu0 0.0
  %3292 = vmatpush1.msra.mxu0 0.0
  %3293 = vmatprep.mubr.f32.mxu0 %v3156
  %3294 = vmatmul.mubr.f32.gmra.mrb[0].mxu0 %v3151
  %v3295 = vpop.f32.mrb[0].mxu0
  %v3296 = vadd.f32 %v3225, %v3295
  %v3297 = vpop.f32.mrb[0].mxu0
  %v3298 = vadd.f32 %v3227, %v3297
  %3299 = vdwg.mxu0
  %3300 = vmatprep.subr.mxu0 0.0
  %3301 = vmatpush1.msra.mxu0 %v2620
  %3302 = vmatprep.subr.mxu0 0.0
  %3303 = vmatpush1.msra.mxu0 %v2623
  %3304 = vmatprep.subr.mxu0 0.0
  %3305 = vmatpush1.msra.mxu0 %v2626
  %3306 = vmatprep.subr.mxu0 0.0
  %3307 = vmatpush1.msra.mxu0 %v2629
  %3308 = vmatprep.subr.mxu0 0.0
  %3309 = vmatpush1.msra.mxu0 %v2632
  %3310 = vmatprep.subr.mxu0 0.0
  %3311 = vmatpush1.msra.mxu0 %v2635
  %3312 = vmatprep.subr.mxu0 0.0
  %3313 = vmatpush1.msra.mxu0 %v2638
  %3314 = vmatprep.subr.mxu0 0.0
  %3315 = vmatpush1.msra.mxu0 %v2641
  %3316 = vmatprep.subr.mxu0 0.0
  %3317 = vmatpush1.msra.mxu0 %v2644
  %3318 = vmatprep.subr.mxu0 0.0
  %3319 = vmatpush1.msra.mxu0 %v2647
  %3320 = vmatprep.subr.mxu0 0.0
  %3321 = vmatpush1.msra.mxu0 %v2650
  %3322 = vmatprep.subr.mxu0 0.0
  %3323 = vmatpush1.msra.mxu0 %v2653
  %3324 = vmatprep.subr.mxu0 0.0
  %3325 = vmatpush1.msra.mxu0 %v2656
  %3326 = vmatprep.subr.mxu0 0.0
  %3327 = vmatpush1.msra.mxu0 %v2659
  %3328 = vmatprep.subr.mxu0 0.0
  %3329 = vmatpush1.msra.mxu0 %v2662
  %3330 = vmatprep.subr.mxu0 0.0
  %3331 = vmatpush1.msra.mxu0 %v2665
  %3332 = vmatprep.subr.mxu0 0.0
  %3333 = vmatpush1.msra.mxu0 %v2668
  %3334 = vmatprep.subr.mxu0 0.0
  %3335 = vmatpush1.msra.mxu0 %v2671
  %3336 = vmatprep.subr.mxu0 0.0
  %3337 = vmatpush1.msra.mxu0 %v2674
  %3338 = vmatprep.subr.mxu0 0.0
  %3339 = vmatpush1.msra.mxu0 %v2677
  %3340 = vmatprep.subr.mxu0 0.0
  %3341 = vmatpush1.msra.mxu0 %v2680
  %3342 = vmatprep.subr.mxu0 0.0
  %3343 = vmatpush1.msra.mxu0 %v2683
  %3344 = vmatprep.subr.mxu0 0.0
  %3345 = vmatpush1.msra.mxu0 %v2686
  %3346 = vmatprep.subr.mxu0 0.0
  %3347 = vmatpush1.msra.mxu0 %v2689
  %3348 = vmatprep.subr.mxu0 0.0
  %3349 = vmatpush1.msra.mxu0 %v2692
  %3350 = vmatprep.subr.mxu0 0.0
  %3351 = vmatpush1.msra.mxu0 %v2695
  %3352 = vmatprep.subr.mxu0 0.0
  %3353 = vmatpush1.msra.mxu0 %v2698
  %3354 = vmatprep.subr.mxu0 0.0
  %3355 = vmatpush1.msra.mxu0 %v2701
  %3356 = vmatprep.subr.mxu0 0.0
  %3357 = vmatpush1.msra.mxu0 %v2704
  %3358 = vmatprep.subr.mxu0 0.0
  %3359 = vmatpush1.msra.mxu0 %v2707
  %3360 = vmatprep.subr.mxu0 0.0
  %3361 = vmatpush1.msra.mxu0 %v2710
  %3362 = vmatprep.subr.mxu0 0.0
  %3363 = vmatpush1.msra.mxu0 %v2713
  %3364 = vmatprep.mubr.f32.mxu0 %v3150
  %3365 = vmatmul.mubr.f32.gmra.mrb[0].mxu0 %v3149
  %v3366 = vpop.f32.mrb[0].mxu0
  %v3367 = vadd.f32 0.0, %v3366
  %v3368 = vpop.f32.mrb[0].mxu0
  %3369 = vdwg.mxu0
  %3370 = vmatprep.subr.mxu0 0.0
  %3371 = vmatpush1.msra.mxu0 %v2716
  %3372 = vmatprep.subr.mxu0 0.0
  %3373 = vmatpush1.msra.mxu0 %v2719
  %3374 = vmatprep.subr.mxu0 0.0
  %3375 = vmatpush1.msra.mxu0 %v2722
  %3376 = vmatprep.subr.mxu0 0.0
  %3377 = vmatpush1.msra.mxu0 %v2725
  %3378 = vmatprep.subr.mxu0 0.0
  %3379 = vmatpush1.msra.mxu0 %v2728
  %3380 = vmatprep.subr.mxu0 0.0
  %3381 = vmatpush1.msra.mxu0 %v2731
  %3382 = vmatprep.subr.mxu0 0.0
  %3383 = vmatpush1.msra.mxu0 %v2734
  %3384 = vmatprep.subr.mxu0 0.0
  %3385 = vmatpush1.msra.mxu0 %v2737
  %3386 = vmatprep.subr.mxu0 0.0
  %3387 = vmatpush1.msra.mxu0 %v2740
  %3388 = vmatprep.subr.mxu0 0.0
  %3389 = vmatpush1.msra.mxu0 %v2743
  %3390 = vmatprep.subr.mxu0 0.0
  %3391 = vmatpush1.msra.mxu0 %v2746
  %3392 = vmatprep.subr.mxu0 0.0
  %3393 = vmatpush1.msra.mxu0 %v2749
  %3394 = vmatprep.subr.mxu0 0.0
  %3395 = vmatpush1.msra.mxu0 %v2752
  %3396 = vmatprep.subr.mxu0 0.0
  %3397 = vmatpush1.msra.mxu0 %v2755
  %3398 = vmatprep.subr.mxu0 0.0
  %3399 = vmatpush1.msra.mxu0 %v2758
  %3400 = vmatprep.subr.mxu0 0.0
  %3401 = vmatpush1.msra.mxu0 %v2761
  %3402 = vmatprep.subr.mxu0 0.0
  %3403 = vmatpush1.msra.mxu0 %v2764
  %3404 = vmatprep.subr.mxu0 0.0
  %3405 = vmatpush1.msra.mxu0 %v2767
  %3406 = vmatprep.subr.mxu0 0.0
  %3407 = vmatpush1.msra.mxu0 %v2770
  %3408 = vmatprep.subr.mxu0 0.0
  %3409 = vmatpush1.msra.mxu0 %v2773
  %3410 = vmatprep.subr.mxu0 0.0
  %3411 = vmatpush1.msra.mxu0 %v2776
  %3412 = vmatprep.subr.mxu0 0.0
  %3413 = vmatpush1.msra.mxu0 %v2779
  %3414 = vmatprep.subr.mxu0 0.0
  %3415 = vmatpush1.msra.mxu0 %v2782
  %3416 = vmatprep.subr.mxu0 0.0
  %3417 = vmatpush1.msra.mxu0 %v2785
  %3418 = vmatprep.subr.mxu0 0.0
  %3419 = vmatpush1.msra.mxu0 %v2788
  %3420 = vmatprep.subr.mxu0 0.0
  %3421 = vmatpush1.msra.mxu0 %v2791
  %3422 = vmatprep.subr.mxu0 0.0
  %3423 = vmatpush1.msra.mxu0 %v2794
  %3424 = vmatprep.subr.mxu0 0.0
  %3425 = vmatpush1.msra.mxu0 %v2797
  %3426 = vmatprep.subr.mxu0 0.0
  %3427 = vmatpush1.msra.mxu0 %v2800
  %3428 = vmatprep.subr.mxu0 0.0
  %3429 = vmatpush1.msra.mxu0 %v2803
  %3430 = vmatprep.subr.mxu0 0.0
  %3431 = vmatpush1.msra.mxu0 %v2806
  %3432 = vmatprep.subr.mxu0 0.0
  %3433 = vmatpush1.msra.mxu0 0.0
  %3434 = vmatprep.mubr.f32.mxu0 %v3156
  %3435 = vmatmul.mubr.f32.gmra.mrb[0].mxu0 %v3151
  %v3436 = vpop.f32.mrb[0].mxu0
  %v3437 = vadd.f32 %v3367, %v3436
  %v3438 = vpop.f32.mrb[0].mxu0
  %3439 = vdwg.mxu0
  %3442 = vrot.lane.b32.xlu0 %v3296, 48
  %v3443 = vpop.permute.xlu0 %3442
  %3444 = vrot.lane.b32.xlu0 %v3298, 48
  %v3445 = vpop.permute.xlu0 %3444
  %v3446 = vsel %vm3104, %v3443, %v3445
  %v3448 = vmax.f32 %v3296, %v3446
  %3450 = vrot.lane.b32.xlu0 %v3437, 48
  %v3451 = vpop.permute.xlu0 %3450
  %v3452 = vsel %vm3104, %v3445, %v3451
  %v3454 = vmax.f32 %v3298, %v3452
  %3456 = vrot.lane.b32.xlu0 %v3454, 96
  %v3457 = vpop.permute.xlu0 %3456
  %v3459 = vmax.f32 %v3448, %v3457
  %v3460 = vadd.f32 %v3459, %v3123
  %v3461 = vmax.f32 %v3460, 0.0
  %3463 = vrot.lane.b32.xlu0 %v3461, 80
  %v3464 = vpop.permute.xlu0 %3463
  %3466 = vst.msk [vmem:[#allocation3] sm:$0xff] %vm1001, %v3464
  %3467 = vst.msk [vmem:[#allocation3 + $0x8] sm:$0xff] %vm1543, %v3464
  %v3468 = vld [vmem:[#allocation2 + $0x10] sm:$0xff]
  %v3469 = vld [vmem:[#allocation2 + $0x18] sm:$0xff]
  %v3470 = vld [vmem:[#allocation2 + $0x20] sm:$0xff]
  %v3471 = vld [vmem:[#allocation2 + $0x28] sm:$0xff]
  %v3472 = vld [vmem:[#allocation2 + $0x30] sm:$0xff]
  %3478 = vrot.lane.b32.xlu0 %v3468, 48
  %v3479 = vpop.permute.xlu0 %3478
  %3480 = vrot.lane.b32.xlu0 %v3469, 48
  %v3481 = vpop.permute.xlu0 %3480
  %3482 = vrot.lane.b32.xlu0 %v3470, 48
  %v3483 = vpop.permute.xlu0 %3482
  %3484 = vrot.lane.b32.xlu0 %v3471, 48
  %v3485 = vpop.permute.xlu0 %3484
  %3486 = vrot.lane.b32.xlu0 %v3472, 48
  %v3487 = vpop.permute.xlu0 %3486
  %v3488 = vsel %vm3104, %v3479, %v3481
  %v3489 = vsel %vm3104, %v3481, %v3483
  %v3490 = vsel %vm3104, %v3483, %v3485
  %v3491 = vsel %vm3104, %v3485, %v3487
  %v3495 = vsel %vm2812, %v3491, 0
  %3497 = vmatprep.subr.mxu0 %v2619
  %3498 = vmatpush1.msra.mxu0 %v2618
  %3499 = vmatprep.subr.mxu0 %v2622
  %3500 = vmatpush1.msra.mxu0 %v2621
  %3501 = vmatprep.subr.mxu0 %v2625
  %3502 = vmatpush1.msra.mxu0 %v2624
  %3503 = vmatprep.subr.mxu0 %v2628
  %3504 = vmatpush1.msra.mxu0 %v2627
  %3505 = vmatprep.subr.mxu0 %v2631
  %3506 = vmatpush1.msra.mxu0 %v2630
  %3507 = vmatprep.subr.mxu0 %v2634
  %3508 = vmatpush1.msra.mxu0 %v2633
  %3509 = vmatprep.subr.mxu0 %v2637
  %3510 = vmatpush1.msra.mxu0 %v2636
  %3511 = vmatprep.subr.mxu0 %v2640
  %3512 = vmatpush1.msra.mxu0 %v2639
  %3513 = vmatprep.subr.mxu0 %v2643
  %3514 = vmatpush1.msra.mxu0 %v2642
  %3515 = vmatprep.subr.mxu0 %v2646
  %3516 = vmatpush1.msra.mxu0 %v2645
  %3517 = vmatprep.subr.mxu0 %v2649
  %3518 = vmatpush1.msra.mxu0 %v2648
  %3519 = vmatprep.subr.mxu0 %v2652
  %3520 = vmatpush1.msra.mxu0 %v2651
  %3521 = vmatprep.subr.mxu0 %v2655
  %3522 = vmatpush1.msra.mxu0 %v2654
  %3523 = vmatprep.subr.mxu0 %v2658
  %3524 = vmatpush1.msra.mxu0 %v2657
  %3525 = vmatprep.subr.mxu0 %v2661
  %3526 = vmatpush1.msra.mxu0 %v2660
  %3527 = vmatprep.subr.mxu0 %v2664
  %3528 = vmatpush1.msra.mxu0 %v2663
  %3529 = vmatprep.subr.mxu0 %v2667
  %3530 = vmatpush1.msra.mxu0 %v2666
  %3531 = vmatprep.subr.mxu0 %v2670
  %3532 = vmatpush1.msra.mxu0 %v2669
  %3533 = vmatprep.subr.mxu0 %v2673
  %3534 = vmatpush1.msra.mxu0 %v2672
  %3535 = vmatprep.subr.mxu0 %v2676
  %3536 = vmatpush1.msra.mxu0 %v2675
  %3537 = vmatprep.subr.mxu0 %v2679
  %3538 = vmatpush1.msra.mxu0 %v2678
  %3539 = vmatprep.subr.mxu0 %v2682
  %3540 = vmatpush1.msra.mxu0 %v2681
  %3541 = vmatprep.subr.mxu0 %v2685
  %3542 = vmatpush1.msra.mxu0 %v2684
  %3543 = vmatprep.subr.mxu0 %v2688
  %3544 = vmatpush1.msra.mxu0 %v2687
  %3545 = vmatprep.subr.mxu0 %v2691
  %3546 = vmatpush1.msra.mxu0 %v2690
  %3547 = vmatprep.subr.mxu0 %v2694
  %3548 = vmatpush1.msra.mxu0 %v2693
  %3549 = vmatprep.subr.mxu0 %v2697
  %3550 = vmatpush1.msra.mxu0 %v2696
  %3551 = vmatprep.subr.mxu0 %v2700
  %3552 = vmatpush1.msra.mxu0 %v2699
  %3553 = vmatprep.subr.mxu0 %v2703
  %3554 = vmatpush1.msra.mxu0 %v2702
  %3555 = vmatprep.subr.mxu0 %v2706
  %3556 = vmatpush1.msra.mxu0 %v2705
  %3557 = vmatprep.subr.mxu0 %v2709
  %3558 = vmatpush1.msra.mxu0 %v2708
  %3559 = vmatprep.subr.mxu0 %v2712
  %3560 = vmatpush1.msra.mxu0 %v2711
  %3561 = vmatprep.mubr.f32.mxu0 %v3489
  %3562 = vmatmul.mubr.f32.gmra.mrb[0].mxu0 %v3488
  %v3563 = vpop.f32.mrb[0].mxu0
  %v3564 = vadd.f32 0.0, %v3563
  %v3565 = vpop.f32.mrb[0].mxu0
  %v3566 = vadd.f32 0.0, %v3565
  %3567 = vdwg.mxu0
  %3568 = vmatprep.subr.mxu0 %v2715
  %3569 = vmatpush1.msra.mxu0 %v2714
  %3570 = vmatprep.subr.mxu0 %v2718
  %3571 = vmatpush1.msra.mxu0 %v2717
  %3572 = vmatprep.subr.mxu0 %v2721
  %3573 = vmatpush1.msra.mxu0 %v2720
  %3574 = vmatprep.subr.mxu0 %v2724
  %3575 = vmatpush1.msra.mxu0 %v2723
  %3576 = vmatprep.subr.mxu0 %v2727
  %3577 = vmatpush1.msra.mxu0 %v2726
  %3578 = vmatprep.subr.mxu0 %v2730
  %3579 = vmatpush1.msra.mxu0 %v2729
  %3580 = vmatprep.subr.mxu0 %v2733
  %3581 = vmatpush1.msra.mxu0 %v2732
  %3582 = vmatprep.subr.mxu0 %v2736
  %3583 = vmatpush1.msra.mxu0 %v2735
  %3584 = vmatprep.subr.mxu0 %v2739
  %3585 = vmatpush1.msra.mxu0 %v2738
  %3586 = vmatprep.subr.mxu0 %v2742
  %3587 = vmatpush1.msra.mxu0 %v2741
  %3588 = vmatprep.subr.mxu0 %v2745
  %3589 = vmatpush1.msra.mxu0 %v2744
  %3590 = vmatprep.subr.mxu0 %v2748
  %3591 = vmatpush1.msra.mxu0 %v2747
  %3592 = vmatprep.subr.mxu0 %v2751
  %3593 = vmatpush1.msra.mxu0 %v2750
  %3594 = vmatprep.subr.mxu0 %v2754
  %3595 = vmatpush1.msra.mxu0 %v2753
  %3596 = vmatprep.subr.mxu0 %v2757
  %3597 = vmatpush1.msra.mxu0 %v2756
  %3598 = vmatprep.subr.mxu0 %v2760
  %3599 = vmatpush1.msra.mxu0 %v2759
  %3600 = vmatprep.subr.mxu0 %v2763
  %3601 = vmatpush1.msra.mxu0 %v2762
  %3602 = vmatprep.subr.mxu0 %v2766
  %3603 = vmatpush1.msra.mxu0 %v2765
  %3604 = vmatprep.subr.mxu0 %v2769
  %3605 = vmatpush1.msra.mxu0 %v2768
  %3606 = vmatprep.subr.mxu0 %v2772
  %3607 = vmatpush1.msra.mxu0 %v2771
  %3608 = vmatprep.subr.mxu0 %v2775
  %3609 = vmatpush1.msra.mxu0 %v2774
  %3610 = vmatprep.subr.mxu0 %v2778
  %3611 = vmatpush1.msra.mxu0 %v2777
  %3612 = vmatprep.subr.mxu0 %v2781
  %3613 = vmatpush1.msra.mxu0 %v2780
  %3614 = vmatprep.subr.mxu0 %v2784
  %3615 = vmatpush1.msra.mxu0 %v2783
  %3616 = vmatprep.subr.mxu0 %v2787
  %3617 = vmatpush1.msra.mxu0 %v2786
  %3618 = vmatprep.subr.mxu0 %v2790
  %3619 = vmatpush1.msra.mxu0 %v2789
  %3620 = vmatprep.subr.mxu0 %v2793
  %3621 = vmatpush1.msra.mxu0 %v2792
  %3622 = vmatprep.subr.mxu0 %v2796
  %3623 = vmatpush1.msra.mxu0 %v2795
  %3624 = vmatprep.subr.mxu0 %v2799
  %3625 = vmatpush1.msra.mxu0 %v2798
  %3626 = vmatprep.subr.mxu0 %v2802
  %3627 = vmatpush1.msra.mxu0 %v2801
  %3628 = vmatprep.subr.mxu0 %v2805
  %3629 = vmatpush1.msra.mxu0 %v2804
  %3630 = vmatprep.subr.mxu0 0.0
  %3631 = vmatpush1.msra.mxu0 0.0
  %3632 = vmatprep.mubr.f32.mxu0 %v3495
  %3633 = vmatmul.mubr.f32.gmra.mrb[0].mxu0 %v3490
  %v3634 = vpop.f32.mrb[0].mxu0
  %v3635 = vadd.f32 %v3564, %v3634
  %v3636 = vpop.f32.mrb[0].mxu0
  %v3637 = vadd.f32 %v3566, %v3636
  %3638 = vdwg.mxu0
  %3639 = vmatprep.subr.mxu0 0.0
  %3640 = vmatpush1.msra.mxu0 %v2620
  %3641 = vmatprep.subr.mxu0 0.0
  %3642 = vmatpush1.msra.mxu0 %v2623
  %3643 = vmatprep.subr.mxu0 0.0
  %3644 = vmatpush1.msra.mxu0 %v2626
  %3645 = vmatprep.subr.mxu0 0.0
  %3646 = vmatpush1.msra.mxu0 %v2629
  %3647 = vmatprep.subr.mxu0 0.0
  %3648 = vmatpush1.msra.mxu0 %v2632
  %3649 = vmatprep.subr.mxu0 0.0
  %3650 = vmatpush1.msra.mxu0 %v2635
  %3651 = vmatprep.subr.mxu0 0.0
  %3652 = vmatpush1.msra.mxu0 %v2638
  %3653 = vmatprep.subr.mxu0 0.0
  %3654 = vmatpush1.msra.mxu0 %v2641
  %3655 = vmatprep.subr.mxu0 0.0
  %3656 = vmatpush1.msra.mxu0 %v2644
  %3657 = vmatprep.subr.mxu0 0.0
  %3658 = vmatpush1.msra.mxu0 %v2647
  %3659 = vmatprep.subr.mxu0 0.0
  %3660 = vmatpush1.msra.mxu0 %v2650
  %3661 = vmatprep.subr.mxu0 0.0
  %3662 = vmatpush1.msra.mxu0 %v2653
  %3663 = vmatprep.subr.mxu0 0.0
  %3664 = vmatpush1.msra.mxu0 %v2656
  %3665 = vmatprep.subr.mxu0 0.0
  %3666 = vmatpush1.msra.mxu0 %v2659
  %3667 = vmatprep.subr.mxu0 0.0
  %3668 = vmatpush1.msra.mxu0 %v2662
  %3669 = vmatprep.subr.mxu0 0.0
  %3670 = vmatpush1.msra.mxu0 %v2665
  %3671 = vmatprep.subr.mxu0 0.0
  %3672 = vmatpush1.msra.mxu0 %v2668
  %3673 = vmatprep.subr.mxu0 0.0
  %3674 = vmatpush1.msra.mxu0 %v2671
  %3675 = vmatprep.subr.mxu0 0.0
  %3676 = vmatpush1.msra.mxu0 %v2674
  %3677 = vmatprep.subr.mxu0 0.0
  %3678 = vmatpush1.msra.mxu0 %v2677
  %3679 = vmatprep.subr.mxu0 0.0
  %3680 = vmatpush1.msra.mxu0 %v2680
  %3681 = vmatprep.subr.mxu0 0.0
  %3682 = vmatpush1.msra.mxu0 %v2683
  %3683 = vmatprep.subr.mxu0 0.0
  %3684 = vmatpush1.msra.mxu0 %v2686
  %3685 = vmatprep.subr.mxu0 0.0
  %3686 = vmatpush1.msra.mxu0 %v2689
  %3687 = vmatprep.subr.mxu0 0.0
  %3688 = vmatpush1.msra.mxu0 %v2692
  %3689 = vmatprep.subr.mxu0 0.0
  %3690 = vmatpush1.msra.mxu0 %v2695
  %3691 = vmatprep.subr.mxu0 0.0
  %3692 = vmatpush1.msra.mxu0 %v2698
  %3693 = vmatprep.subr.mxu0 0.0
  %3694 = vmatpush1.msra.mxu0 %v2701
  %3695 = vmatprep.subr.mxu0 0.0
  %3696 = vmatpush1.msra.mxu0 %v2704
  %3697 = vmatprep.subr.mxu0 0.0
  %3698 = vmatpush1.msra.mxu0 %v2707
  %3699 = vmatprep.subr.mxu0 0.0
  %3700 = vmatpush1.msra.mxu0 %v2710
  %3701 = vmatprep.subr.mxu0 0.0
  %3702 = vmatpush1.msra.mxu0 %v2713
  %3703 = vmatprep.mubr.f32.mxu0 %v3489
  %3704 = vmatmul.mubr.f32.gmra.mrb[0].mxu0 %v3488
  %v3705 = vpop.f32.mrb[0].mxu0
  %v3706 = vadd.f32 0.0, %v3705
  %v3707 = vpop.f32.mrb[0].mxu0
  %3708 = vdwg.mxu0
  %3709 = vmatprep.subr.mxu0 0.0
  %3710 = vmatpush1.msra.mxu0 %v2716
  %3711 = vmatprep.subr.mxu0 0.0
  %3712 = vmatpush1.msra.mxu0 %v2719
  %3713 = vmatprep.subr.mxu0 0.0
  %3714 = vmatpush1.msra.mxu0 %v2722
  %3715 = vmatprep.subr.mxu0 0.0
  %3716 = vmatpush1.msra.mxu0 %v2725
  %3717 = vmatprep.subr.mxu0 0.0
  %3718 = vmatpush1.msra.mxu0 %v2728
  %3719 = vmatprep.subr.mxu0 0.0
  %3720 = vmatpush1.msra.mxu0 %v2731
  %3721 = vmatprep.subr.mxu0 0.0
  %3722 = vmatpush1.msra.mxu0 %v2734
  %3723 = vmatprep.subr.mxu0 0.0
  %3724 = vmatpush1.msra.mxu0 %v2737
  %3725 = vmatprep.subr.mxu0 0.0
  %3726 = vmatpush1.msra.mxu0 %v2740
  %3727 = vmatprep.subr.mxu0 0.0
  %3728 = vmatpush1.msra.mxu0 %v2743
  %3729 = vmatprep.subr.mxu0 0.0
  %3730 = vmatpush1.msra.mxu0 %v2746
  %3731 = vmatprep.subr.mxu0 0.0
  %3732 = vmatpush1.msra.mxu0 %v2749
  %3733 = vmatprep.subr.mxu0 0.0
  %3734 = vmatpush1.msra.mxu0 %v2752
  %3735 = vmatprep.subr.mxu0 0.0
  %3736 = vmatpush1.msra.mxu0 %v2755
  %3737 = vmatprep.subr.mxu0 0.0
  %3738 = vmatpush1.msra.mxu0 %v2758
  %3739 = vmatprep.subr.mxu0 0.0
  %3740 = vmatpush1.msra.mxu0 %v2761
  %3741 = vmatprep.subr.mxu0 0.0
  %3742 = vmatpush1.msra.mxu0 %v2764
  %3743 = vmatprep.subr.mxu0 0.0
  %3744 = vmatpush1.msra.mxu0 %v2767
  %3745 = vmatprep.subr.mxu0 0.0
  %3746 = vmatpush1.msra.mxu0 %v2770
  %3747 = vmatprep.subr.mxu0 0.0
  %3748 = vmatpush1.msra.mxu0 %v2773
  %3749 = vmatprep.subr.mxu0 0.0
  %3750 = vmatpush1.msra.mxu0 %v2776
  %3751 = vmatprep.subr.mxu0 0.0
  %3752 = vmatpush1.msra.mxu0 %v2779
  %3753 = vmatprep.subr.mxu0 0.0
  %3754 = vmatpush1.msra.mxu0 %v2782
  %3755 = vmatprep.subr.mxu0 0.0
  %3756 = vmatpush1.msra.mxu0 %v2785
  %3757 = vmatprep.subr.mxu0 0.0
  %3758 = vmatpush1.msra.mxu0 %v2788
  %3759 = vmatprep.subr.mxu0 0.0
  %3760 = vmatpush1.msra.mxu0 %v2791
  %3761 = vmatprep.subr.mxu0 0.0
  %3762 = vmatpush1.msra.mxu0 %v2794
  %3763 = vmatprep.subr.mxu0 0.0
  %3764 = vmatpush1.msra.mxu0 %v2797
  %3765 = vmatprep.subr.mxu0 0.0
  %3766 = vmatpush1.msra.mxu0 %v2800
  %3767 = vmatprep.subr.mxu0 0.0
  %3768 = vmatpush1.msra.mxu0 %v2803
  %3769 = vmatprep.subr.mxu0 0.0
  %3770 = vmatpush1.msra.mxu0 %v2806
  %3771 = vmatprep.subr.mxu0 0.0
  %3772 = vmatpush1.msra.mxu0 0.0
  %3773 = vmatprep.mubr.f32.mxu0 %v3495
  %3774 = vmatmul.mubr.f32.gmra.mrb[0].mxu0 %v3490
  %v3775 = vpop.f32.mrb[0].mxu0
  %v3776 = vadd.f32 %v3706, %v3775
  %v3777 = vpop.f32.mrb[0].mxu0
  %3778 = vdwg.mxu0
  %3781 = vrot.lane.b32.xlu0 %v3635, 48
  %v3782 = vpop.permute.xlu0 %3781
  %3783 = vrot.lane.b32.xlu0 %v3637, 48
  %v3784 = vpop.permute.xlu0 %3783
  %v3785 = vsel %vm3104, %v3782, %v3784
  %v3787 = vmax.f32 %v3635, %v3785
  %3789 = vrot.lane.b32.xlu0 %v3776, 48
  %v3790 = vpop.permute.xlu0 %3789
  %v3791 = vsel %vm3104, %v3784, %v3790
  %v3793 = vmax.f32 %v3637, %v3791
  %3795 = vrot.lane.b32.xlu0 %v3793, 96
  %v3796 = vpop.permute.xlu0 %3795
  %v3798 = vmax.f32 %v3787, %v3796
  %v3799 = vadd.f32 %v3798, %v3123
  %v3800 = vmax.f32 %v3799, 0.0
  %3802 = vrot.lane.b32.xlu0 %v3800, 32
  %v3803 = vpop.permute.xlu0 %3802
  %vm3805 = vcmask 916736
  %3806 = vst.msk [vmem:[#allocation3 + $0x8] sm:$0xff] %vm3805, %v3803
  %v3807 = vld [vmem:[#allocation2 + $0x18] sm:$0xff]
  %v3808 = vld [vmem:[#allocation2 + $0x20] sm:$0xff]
  %v3809 = vld [vmem:[#allocation2 + $0x28] sm:$0xff]
  %v3810 = vld [vmem:[#allocation2 + $0x30] sm:$0xff]
  %v3811 = vld [vmem:[#allocation2 + $0x38] sm:$0xff]
  %3817 = vrot.lane.b32.xlu0 %v3807, 8
  %v3818 = vpop.permute.xlu0 %3817
  %3819 = vrot.lane.b32.xlu0 %v3808, 8
  %v3820 = vpop.permute.xlu0 %3819
  %3821 = vrot.lane.b32.xlu0 %v3809, 8
  %v3822 = vpop.permute.xlu0 %3821
  %3823 = vrot.lane.b32.xlu0 %v3810, 8
  %v3824 = vpop.permute.xlu0 %3823
  %3825 = vrot.lane.b32.xlu0 %v3811, 8
  %v3826 = vpop.permute.xlu0 %3825
  %vm3827 = vcmask 64512
  %v3828 = vsel %vm3827, %v3818, %v3820
  %v3829 = vsel %vm3827, %v3820, %v3822
  %v3830 = vsel %vm3827, %v3822, %v3824
  %v3831 = vsel %vm3827, %v3824, %v3826
  %v3835 = vsel %vm2812, %v3831, 0
  %3837 = vmatprep.subr.mxu0 %v2619
  %3838 = vmatpush1.msra.mxu0 %v2618
  %3839 = vmatprep.subr.mxu0 %v2622
  %3840 = vmatpush1.msra.mxu0 %v2621
  %3841 = vmatprep.subr.mxu0 %v2625
  %3842 = vmatpush1.msra.mxu0 %v2624
  %3843 = vmatprep.subr.mxu0 %v2628
  %3844 = vmatpush1.msra.mxu0 %v2627
  %3845 = vmatprep.subr.mxu0 %v2631
  %3846 = vmatpush1.msra.mxu0 %v2630
  %3847 = vmatprep.subr.mxu0 %v2634
  %3848 = vmatpush1.msra.mxu0 %v2633
  %3849 = vmatprep.subr.mxu0 %v2637
  %3850 = vmatpush1.msra.mxu0 %v2636
  %3851 = vmatprep.subr.mxu0 %v2640
  %3852 = vmatpush1.msra.mxu0 %v2639
  %3853 = vmatprep.subr.mxu0 %v2643
  %3854 = vmatpush1.msra.mxu0 %v2642
  %3855 = vmatprep.subr.mxu0 %v2646
  %3856 = vmatpush1.msra.mxu0 %v2645
  %3857 = vmatprep.subr.mxu0 %v2649
  %3858 = vmatpush1.msra.mxu0 %v2648
  %3859 = vmatprep.subr.mxu0 %v2652
  %3860 = vmatpush1.msra.mxu0 %v2651
  %3861 = vmatprep.subr.mxu0 %v2655
  %3862 = vmatpush1.msra.mxu0 %v2654
  %3863 = vmatprep.subr.mxu0 %v2658
  %3864 = vmatpush1.msra.mxu0 %v2657
  %3865 = vmatprep.subr.mxu0 %v2661
  %3866 = vmatpush1.msra.mxu0 %v2660
  %3867 = vmatprep.subr.mxu0 %v2664
  %3868 = vmatpush1.msra.mxu0 %v2663
  %3869 = vmatprep.subr.mxu0 %v2667
  %3870 = vmatpush1.msra.mxu0 %v2666
  %3871 = vmatprep.subr.mxu0 %v2670
  %3872 = vmatpush1.msra.mxu0 %v2669
  %3873 = vmatprep.subr.mxu0 %v2673
  %3874 = vmatpush1.msra.mxu0 %v2672
  %3875 = vmatprep.subr.mxu0 %v2676
  %3876 = vmatpush1.msra.mxu0 %v2675
  %3877 = vmatprep.subr.mxu0 %v2679
  %3878 = vmatpush1.msra.mxu0 %v2678
  %3879 = vmatprep.subr.mxu0 %v2682
  %3880 = vmatpush1.msra.mxu0 %v2681
  %3881 = vmatprep.subr.mxu0 %v2685
  %3882 = vmatpush1.msra.mxu0 %v2684
  %3883 = vmatprep.subr.mxu0 %v2688
  %3884 = vmatpush1.msra.mxu0 %v2687
  %3885 = vmatprep.subr.mxu0 %v2691
  %3886 = vmatpush1.msra.mxu0 %v2690
  %3887 = vmatprep.subr.mxu0 %v2694
  %3888 = vmatpush1.msra.mxu0 %v2693
  %3889 = vmatprep.subr.mxu0 %v2697
  %3890 = vmatpush1.msra.mxu0 %v2696
  %3891 = vmatprep.subr.mxu0 %v2700
  %3892 = vmatpush1.msra.mxu0 %v2699
  %3893 = vmatprep.subr.mxu0 %v2703
  %3894 = vmatpush1.msra.mxu0 %v2702
  %3895 = vmatprep.subr.mxu0 %v2706
  %3896 = vmatpush1.msra.mxu0 %v2705
  %3897 = vmatprep.subr.mxu0 %v2709
  %3898 = vmatpush1.msra.mxu0 %v2708
  %3899 = vmatprep.subr.mxu0 %v2712
  %3900 = vmatpush1.msra.mxu0 %v2711
  %3901 = vmatprep.mubr.f32.mxu0 %v3829
  %3902 = vmatmul.mubr.f32.gmra.mrb[0].mxu0 %v3828
  %v3903 = vpop.f32.mrb[0].mxu0
  %v3904 = vadd.f32 0.0, %v3903
  %v3905 = vpop.f32.mrb[0].mxu0
  %v3906 = vadd.f32 0.0, %v3905
  %3907 = vdwg.mxu0
  %3908 = vmatprep.subr.mxu0 %v2715
  %3909 = vmatpush1.msra.mxu0 %v2714
  %3910 = vmatprep.subr.mxu0 %v2718
  %3911 = vmatpush1.msra.mxu0 %v2717
  %3912 = vmatprep.subr.mxu0 %v2721
  %3913 = vmatpush1.msra.mxu0 %v2720
  %3914 = vmatprep.subr.mxu0 %v2724
  %3915 = vmatpush1.msra.mxu0 %v2723
  %3916 = vmatprep.subr.mxu0 %v2727
  %3917 = vmatpush1.msra.mxu0 %v2726
  %3918 = vmatprep.subr.mxu0 %v2730
  %3919 = vmatpush1.msra.mxu0 %v2729
  %3920 = vmatprep.subr.mxu0 %v2733
  %3921 = vmatpush1.msra.mxu0 %v2732
  %3922 = vmatprep.subr.mxu0 %v2736
  %3923 = vmatpush1.msra.mxu0 %v2735
  %3924 = vmatprep.subr.mxu0 %v2739
  %3925 = vmatpush1.msra.mxu0 %v2738
  %3926 = vmatprep.subr.mxu0 %v2742
  %3927 = vmatpush1.msra.mxu0 %v2741
  %3928 = vmatprep.subr.mxu0 %v2745
  %3929 = vmatpush1.msra.mxu0 %v2744
  %3930 = vmatprep.subr.mxu0 %v2748
  %3931 = vmatpush1.msra.mxu0 %v2747
  %3932 = vmatprep.subr.mxu0 %v2751
  %3933 = vmatpush1.msra.mxu0 %v2750
  %3934 = vmatprep.subr.mxu0 %v2754
  %3935 = vmatpush1.msra.mxu0 %v2753
  %3936 = vmatprep.subr.mxu0 %v2757
  %3937 = vmatpush1.msra.mxu0 %v2756
  %3938 = vmatprep.subr.mxu0 %v2760
  %3939 = vmatpush1.msra.mxu0 %v2759
  %3940 = vmatprep.subr.mxu0 %v2763
  %3941 = vmatpush1.msra.mxu0 %v2762
  %3942 = vmatprep.subr.mxu0 %v2766
  %3943 = vmatpush1.msra.mxu0 %v2765
  %3944 = vmatprep.subr.mxu0 %v2769
  %3945 = vmatpush1.msra.mxu0 %v2768
  %3946 = vmatprep.subr.mxu0 %v2772
  %3947 = vmatpush1.msra.mxu0 %v2771
  %3948 = vmatprep.subr.mxu0 %v2775
  %3949 = vmatpush1.msra.mxu0 %v2774
  %3950 = vmatprep.subr.mxu0 %v2778
  %3951 = vmatpush1.msra.mxu0 %v2777
  %3952 = vmatprep.subr.mxu0 %v2781
  %3953 = vmatpush1.msra.mxu0 %v2780
  %3954 = vmatprep.subr.mxu0 %v2784
  %3955 = vmatpush1.msra.mxu0 %v2783
  %3956 = vmatprep.subr.mxu0 %v2787
  %3957 = vmatpush1.msra.mxu0 %v2786
  %3958 = vmatprep.subr.mxu0 %v2790
  %3959 = vmatpush1.msra.mxu0 %v2789
  %3960 = vmatprep.subr.mxu0 %v2793
  %3961 = vmatpush1.msra.mxu0 %v2792
  %3962 = vmatprep.subr.mxu0 %v2796
  %3963 = vmatpush1.msra.mxu0 %v2795
  %3964 = vmatprep.subr.mxu0 %v2799
  %3965 = vmatpush1.msra.mxu0 %v2798
  %3966 = vmatprep.subr.mxu0 %v2802
  %3967 = vmatpush1.msra.mxu0 %v2801
  %3968 = vmatprep.subr.mxu0 %v2805
  %3969 = vmatpush1.msra.mxu0 %v2804
  %3970 = vmatprep.subr.mxu0 0.0
  %3971 = vmatpush1.msra.mxu0 0.0
  %3972 = vmatprep.mubr.f32.mxu0 %v3835
  %3973 = vmatmul.mubr.f32.gmra.mrb[0].mxu0 %v3830
  %v3974 = vpop.f32.mrb[0].mxu0
  %v3975 = vadd.f32 %v3904, %v3974
  %v3976 = vpop.f32.mrb[0].mxu0
  %v3977 = vadd.f32 %v3906, %v3976
  %3978 = vdwg.mxu0
  %3979 = vmatprep.subr.mxu0 0.0
  %3980 = vmatpush1.msra.mxu0 %v2620
  %3981 = vmatprep.subr.mxu0 0.0
  %3982 = vmatpush1.msra.mxu0 %v2623
  %3983 = vmatprep.subr.mxu0 0.0
  %3984 = vmatpush1.msra.mxu0 %v2626
  %3985 = vmatprep.subr.mxu0 0.0
  %3986 = vmatpush1.msra.mxu0 %v2629
  %3987 = vmatprep.subr.mxu0 0.0
  %3988 = vmatpush1.msra.mxu0 %v2632
  %3989 = vmatprep.subr.mxu0 0.0
  %3990 = vmatpush1.msra.mxu0 %v2635
  %3991 = vmatprep.subr.mxu0 0.0
  %3992 = vmatpush1.msra.mxu0 %v2638
  %3993 = vmatprep.subr.mxu0 0.0
  %3994 = vmatpush1.msra.mxu0 %v2641
  %3995 = vmatprep.subr.mxu0 0.0
  %3996 = vmatpush1.msra.mxu0 %v2644
  %3997 = vmatprep.subr.mxu0 0.0
  %3998 = vmatpush1.msra.mxu0 %v2647
  %3999 = vmatprep.subr.mxu0 0.0
  %4000 = vmatpush1.msra.mxu0 %v2650
  %4001 = vmatprep.subr.mxu0 0.0
  %4002 = vmatpush1.msra.mxu0 %v2653
  %4003 = vmatprep.subr.mxu0 0.0
  %4004 = vmatpush1.msra.mxu0 %v2656
  %4005 = vmatprep.subr.mxu0 0.0
  %4006 = vmatpush1.msra.mxu0 %v2659
  %4007 = vmatprep.subr.mxu0 0.0
  %4008 = vmatpush1.msra.mxu0 %v2662
  %4009 = vmatprep.subr.mxu0 0.0
  %4010 = vmatpush1.msra.mxu0 %v2665
  %4011 = vmatprep.subr.mxu0 0.0
  %4012 = vmatpush1.msra.mxu0 %v2668
  %4013 = vmatprep.subr.mxu0 0.0
  %4014 = vmatpush1.msra.mxu0 %v2671
  %4015 = vmatprep.subr.mxu0 0.0
  %4016 = vmatpush1.msra.mxu0 %v2674
  %4017 = vmatprep.subr.mxu0 0.0
  %4018 = vmatpush1.msra.mxu0 %v2677
  %4019 = vmatprep.subr.mxu0 0.0
  %4020 = vmatpush1.msra.mxu0 %v2680
  %4021 = vmatprep.subr.mxu0 0.0
  %4022 = vmatpush1.msra.mxu0 %v2683
  %4023 = vmatprep.subr.mxu0 0.0
  %4024 = vmatpush1.msra.mxu0 %v2686
  %4025 = vmatprep.subr.mxu0 0.0
  %4026 = vmatpush1.msra.mxu0 %v2689
  %4027 = vmatprep.subr.mxu0 0.0
  %4028 = vmatpush1.msra.mxu0 %v2692
  %4029 = vmatprep.subr.mxu0 0.0
  %4030 = vmatpush1.msra.mxu0 %v2695
  %4031 = vmatprep.subr.mxu0 0.0
  %4032 = vmatpush1.msra.mxu0 %v2698
  %4033 = vmatprep.subr.mxu0 0.0
  %4034 = vmatpush1.msra.mxu0 %v2701
  %4035 = vmatprep.subr.mxu0 0.0
  %4036 = vmatpush1.msra.mxu0 %v2704
  %4037 = vmatprep.subr.mxu0 0.0
  %4038 = vmatpush1.msra.mxu0 %v2707
  %4039 = vmatprep.subr.mxu0 0.0
  %4040 = vmatpush1.msra.mxu0 %v2710
  %4041 = vmatprep.subr.mxu0 0.0
  %4042 = vmatpush1.msra.mxu0 %v2713
  %4043 = vmatprep.mubr.f32.mxu0 %v3829
  %4044 = vmatmul.mubr.f32.gmra.mrb[0].mxu0 %v3828
  %v4045 = vpop.f32.mrb[0].mxu0
  %v4046 = vadd.f32 0.0, %v4045
  %v4047 = vpop.f32.mrb[0].mxu0
  %4048 = vdwg.mxu0
  %4049 = vmatprep.subr.mxu0 0.0
  %4050 = vmatpush1.msra.mxu0 %v2716
  %4051 = vmatprep.subr.mxu0 0.0
  %4052 = vmatpush1.msra.mxu0 %v2719
  %4053 = vmatprep.subr.mxu0 0.0
  %4054 = vmatpush1.msra.mxu0 %v2722
  %4055 = vmatprep.subr.mxu0 0.0
  %4056 = vmatpush1.msra.mxu0 %v2725
  %4057 = vmatprep.subr.mxu0 0.0
  %4058 = vmatpush1.msra.mxu0 %v2728
  %4059 = vmatprep.subr.mxu0 0.0
  %4060 = vmatpush1.msra.mxu0 %v2731
  %4061 = vmatprep.subr.mxu0 0.0
  %4062 = vmatpush1.msra.mxu0 %v2734
  %4063 = vmatprep.subr.mxu0 0.0
  %4064 = vmatpush1.msra.mxu0 %v2737
  %4065 = vmatprep.subr.mxu0 0.0
  %4066 = vmatpush1.msra.mxu0 %v2740
  %4067 = vmatprep.subr.mxu0 0.0
  %4068 = vmatpush1.msra.mxu0 %v2743
  %4069 = vmatprep.subr.mxu0 0.0
  %4070 = vmatpush1.msra.mxu0 %v2746
  %4071 = vmatprep.subr.mxu0 0.0
  %4072 = vmatpush1.msra.mxu0 %v2749
  %4073 = vmatprep.subr.mxu0 0.0
  %4074 = vmatpush1.msra.mxu0 %v2752
  %4075 = vmatprep.subr.mxu0 0.0
  %4076 = vmatpush1.msra.mxu0 %v2755
  %4077 = vmatprep.subr.mxu0 0.0
  %4078 = vmatpush1.msra.mxu0 %v2758
  %4079 = vmatprep.subr.mxu0 0.0
  %4080 = vmatpush1.msra.mxu0 %v2761
  %4081 = vmatprep.subr.mxu0 0.0
  %4082 = vmatpush1.msra.mxu0 %v2764
  %4083 = vmatprep.subr.mxu0 0.0
  %4084 = vmatpush1.msra.mxu0 %v2767
  %4085 = vmatprep.subr.mxu0 0.0
  %4086 = vmatpush1.msra.mxu0 %v2770
  %4087 = vmatprep.subr.mxu0 0.0
  %4088 = vmatpush1.msra.mxu0 %v2773
  %4089 = vmatprep.subr.mxu0 0.0
  %4090 = vmatpush1.msra.mxu0 %v2776
  %4091 = vmatprep.subr.mxu0 0.0
  %4092 = vmatpush1.msra.mxu0 %v2779
  %4093 = vmatprep.subr.mxu0 0.0
  %4094 = vmatpush1.msra.mxu0 %v2782
  %4095 = vmatprep.subr.mxu0 0.0
  %4096 = vmatpush1.msra.mxu0 %v2785
  %4097 = vmatprep.subr.mxu0 0.0
  %4098 = vmatpush1.msra.mxu0 %v2788
  %4099 = vmatprep.subr.mxu0 0.0
  %4100 = vmatpush1.msra.mxu0 %v2791
  %4101 = vmatprep.subr.mxu0 0.0
  %4102 = vmatpush1.msra.mxu0 %v2794
  %4103 = vmatprep.subr.mxu0 0.0
  %4104 = vmatpush1.msra.mxu0 %v2797
  %4105 = vmatprep.subr.mxu0 0.0
  %4106 = vmatpush1.msra.mxu0 %v2800
  %4107 = vmatprep.subr.mxu0 0.0
  %4108 = vmatpush1.msra.mxu0 %v2803
  %4109 = vmatprep.subr.mxu0 0.0
  %4110 = vmatpush1.msra.mxu0 %v2806
  %4111 = vmatprep.subr.mxu0 0.0
  %4112 = vmatpush1.msra.mxu0 0.0
  %4113 = vmatprep.mubr.f32.mxu0 %v3835
  %4114 = vmatmul.mubr.f32.gmra.mrb[0].mxu0 %v3830
  %v4115 = vpop.f32.mrb[0].mxu0
  %v4116 = vadd.f32 %v4046, %v4115
  %v4117 = vpop.f32.mrb[0].mxu0
  %4118 = vdwg.mxu0
  %4121 = vrot.lane.b32.xlu0 %v3975, 48
  %v4122 = vpop.permute.xlu0 %4121
  %4123 = vrot.lane.b32.xlu0 %v3977, 48
  %v4124 = vpop.permute.xlu0 %4123
  %v4125 = vsel %vm3104, %v4122, %v4124
  %v4127 = vmax.f32 %v3975, %v4125
  %4129 = vrot.lane.b32.xlu0 %v4116, 48
  %v4130 = vpop.permute.xlu0 %4129
  %v4131 = vsel %vm3104, %v4124, %v4130
  %v4133 = vmax.f32 %v3977, %v4131
  %4135 = vrot.lane.b32.xlu0 %v4133, 96
  %v4136 = vpop.permute.xlu0 %4135
  %v4138 = vmax.f32 %v4127, %v4136
  %v4139 = vadd.f32 %v4138, %v3123
  %v4140 = vmax.f32 %v4139, 0.0
  %4142 = vrot.lane.b32.xlu0 %v4140, 112
  %v4143 = vpop.permute.xlu0 %4142
  %4145 = vst.msk [vmem:[#allocation3 + $0x8] sm:$0xff] %vm2431, %v4143
  %4146 = vst.msk [vmem:[#allocation3 + $0x10] sm:$0xff] %vm113, %v4143
  %v4147 = vld [vmem:[#allocation2 + $0x28] sm:$0xff]
  %v4148 = vld [vmem:[#allocation2 + $0x30] sm:$0xff]
  %v4149 = vld [vmem:[#allocation2 + $0x38] sm:$0xff]
  %v4150 = vld [vmem:[#allocation2 + $0x40] sm:$0xff]
  %v4151 = vld [vmem:[#allocation2 + $0x48] sm:$0xff]
  %4157 = vrot.lane.b32.xlu0 %v4147, 96
  %v4158 = vpop.permute.xlu0 %4157
  %4159 = vrot.lane.b32.xlu0 %v4148, 96
  %v4160 = vpop.permute.xlu0 %4159
  %4161 = vrot.lane.b32.xlu0 %v4149, 96
  %v4162 = vpop.permute.xlu0 %4161
  %4163 = vrot.lane.b32.xlu0 %v4150, 96
  %v4164 = vpop.permute.xlu0 %4163
  %4165 = vrot.lane.b32.xlu0 %v4151, 96
  %v4166 = vpop.permute.xlu0 %4165
  %vm4167 = vcmask 785408
  %v4168 = vsel %vm4167, %v4158, %v4160
  %v4169 = vsel %vm4167, %v4160, %v4162
  %v4170 = vsel %vm4167, %v4162, %v4164
  %v4171 = vsel %vm4167, %v4164, %v4166
  %v4175 = vsel %vm2812, %v4171, 0
  %4177 = vmatprep.subr.mxu0 %v2619
  %4178 = vmatpush1.msra.mxu0 %v2618
  %4179 = vmatprep.subr.mxu0 %v2622
  %4180 = vmatpush1.msra.mxu0 %v2621
  %4181 = vmatprep.subr.mxu0 %v2625
  %4182 = vmatpush1.msra.mxu0 %v2624
  %4183 = vmatprep.subr.mxu0 %v2628
  %4184 = vmatpush1.msra.mxu0 %v2627
  %4185 = vmatprep.subr.mxu0 %v2631
  %4186 = vmatpush1.msra.mxu0 %v2630
  %4187 = vmatprep.subr.mxu0 %v2634
  %4188 = vmatpush1.msra.mxu0 %v2633
  %4189 = vmatprep.subr.mxu0 %v2637
  %4190 = vmatpush1.msra.mxu0 %v2636
  %4191 = vmatprep.subr.mxu0 %v2640
  %4192 = vmatpush1.msra.mxu0 %v2639
  %4193 = vmatprep.subr.mxu0 %v2643
  %4194 = vmatpush1.msra.mxu0 %v2642
  %4195 = vmatprep.subr.mxu0 %v2646
  %4196 = vmatpush1.msra.mxu0 %v2645
  %4197 = vmatprep.subr.mxu0 %v2649
  %4198 = vmatpush1.msra.mxu0 %v2648
  %4199 = vmatprep.subr.mxu0 %v2652
  %4200 = vmatpush1.msra.mxu0 %v2651
  %4201 = vmatprep.subr.mxu0 %v2655
  %4202 = vmatpush1.msra.mxu0 %v2654
  %4203 = vmatprep.subr.mxu0 %v2658
  %4204 = vmatpush1.msra.mxu0 %v2657
  %4205 = vmatprep.subr.mxu0 %v2661
  %4206 = vmatpush1.msra.mxu0 %v2660
  %4207 = vmatprep.subr.mxu0 %v2664
  %4208 = vmatpush1.msra.mxu0 %v2663
  %4209 = vmatprep.subr.mxu0 %v2667
  %4210 = vmatpush1.msra.mxu0 %v2666
  %4211 = vmatprep.subr.mxu0 %v2670
  %4212 = vmatpush1.msra.mxu0 %v2669
  %4213 = vmatprep.subr.mxu0 %v2673
  %4214 = vmatpush1.msra.mxu0 %v2672
  %4215 = vmatprep.subr.mxu0 %v2676
  %4216 = vmatpush1.msra.mxu0 %v2675
  %4217 = vmatprep.subr.mxu0 %v2679
  %4218 = vmatpush1.msra.mxu0 %v2678
  %4219 = vmatprep.subr.mxu0 %v2682
  %4220 = vmatpush1.msra.mxu0 %v2681
  %4221 = vmatprep.subr.mxu0 %v2685
  %4222 = vmatpush1.msra.mxu0 %v2684
  %4223 = vmatprep.subr.mxu0 %v2688
  %4224 = vmatpush1.msra.mxu0 %v2687
  %4225 = vmatprep.subr.mxu0 %v2691
  %4226 = vmatpush1.msra.mxu0 %v2690
  %4227 = vmatprep.subr.mxu0 %v2694
  %4228 = vmatpush1.msra.mxu0 %v2693
  %4229 = vmatprep.subr.mxu0 %v2697
  %4230 = vmatpush1.msra.mxu0 %v2696
  %4231 = vmatprep.subr.mxu0 %v2700
  %4232 = vmatpush1.msra.mxu0 %v2699
  %4233 = vmatprep.subr.mxu0 %v2703
  %4234 = vmatpush1.msra.mxu0 %v2702
  %4235 = vmatprep.subr.mxu0 %v2706
  %4236 = vmatpush1.msra.mxu0 %v2705
  %4237 = vmatprep.subr.mxu0 %v2709
  %4238 = vmatpush1.msra.mxu0 %v2708
  %4239 = vmatprep.subr.mxu0 %v2712
  %4240 = vmatpush1.msra.mxu0 %v2711
  %4241 = vmatprep.mubr.f32.mxu0 %v4169
  %4242 = vmatmul.mubr.f32.gmra.mrb[0].mxu0 %v4168
  %v4243 = vpop.f32.mrb[0].mxu0
  %v4244 = vadd.f32 0.0, %v4243
  %v4245 = vpop.f32.mrb[0].mxu0
  %v4246 = vadd.f32 0.0, %v4245
  %4247 = vdwg.mxu0
  %4248 = vmatprep.subr.mxu0 %v2715
  %4249 = vmatpush1.msra.mxu0 %v2714
  %4250 = vmatprep.subr.mxu0 %v2718
  %4251 = vmatpush1.msra.mxu0 %v2717
  %4252 = vmatprep.subr.mxu0 %v2721
  %4253 = vmatpush1.msra.mxu0 %v2720
  %4254 = vmatprep.subr.mxu0 %v2724
  %4255 = vmatpush1.msra.mxu0 %v2723
  %4256 = vmatprep.subr.mxu0 %v2727
  %4257 = vmatpush1.msra.mxu0 %v2726
  %4258 = vmatprep.subr.mxu0 %v2730
  %4259 = vmatpush1.msra.mxu0 %v2729
  %4260 = vmatprep.subr.mxu0 %v2733
  %4261 = vmatpush1.msra.mxu0 %v2732
  %4262 = vmatprep.subr.mxu0 %v2736
  %4263 = vmatpush1.msra.mxu0 %v2735
  %4264 = vmatprep.subr.mxu0 %v2739
  %4265 = vmatpush1.msra.mxu0 %v2738
  %4266 = vmatprep.subr.mxu0 %v2742
  %4267 = vmatpush1.msra.mxu0 %v2741
  %4268 = vmatprep.subr.mxu0 %v2745
  %4269 = vmatpush1.msra.mxu0 %v2744
  %4270 = vmatprep.subr.mxu0 %v2748
  %4271 = vmatpush1.msra.mxu0 %v2747
  %4272 = vmatprep.subr.mxu0 %v2751
  %4273 = vmatpush1.msra.mxu0 %v2750
  %4274 = vmatprep.subr.mxu0 %v2754
  %4275 = vmatpush1.msra.mxu0 %v2753
  %4276 = vmatprep.subr.mxu0 %v2757
  %4277 = vmatpush1.msra.mxu0 %v2756
  %4278 = vmatprep.subr.mxu0 %v2760
  %4279 = vmatpush1.msra.mxu0 %v2759
  %4280 = vmatprep.subr.mxu0 %v2763
  %4281 = vmatpush1.msra.mxu0 %v2762
  %4282 = vmatprep.subr.mxu0 %v2766
  %4283 = vmatpush1.msra.mxu0 %v2765
  %4284 = vmatprep.subr.mxu0 %v2769
  %4285 = vmatpush1.msra.mxu0 %v2768
  %4286 = vmatprep.subr.mxu0 %v2772
  %4287 = vmatpush1.msra.mxu0 %v2771
  %4288 = vmatprep.subr.mxu0 %v2775
  %4289 = vmatpush1.msra.mxu0 %v2774
  %4290 = vmatprep.subr.mxu0 %v2778
  %4291 = vmatpush1.msra.mxu0 %v2777
  %4292 = vmatprep.subr.mxu0 %v2781
  %4293 = vmatpush1.msra.mxu0 %v2780
  %4294 = vmatprep.subr.mxu0 %v2784
  %4295 = vmatpush1.msra.mxu0 %v2783
  %4296 = vmatprep.subr.mxu0 %v2787
  %4297 = vmatpush1.msra.mxu0 %v2786
  %4298 = vmatprep.subr.mxu0 %v2790
  %4299 = vmatpush1.msra.mxu0 %v2789
  %4300 = vmatprep.subr.mxu0 %v2793
  %4301 = vmatpush1.msra.mxu0 %v2792
  %4302 = vmatprep.subr.mxu0 %v2796
  %4303 = vmatpush1.msra.mxu0 %v2795
  %4304 = vmatprep.subr.mxu0 %v2799
  %4305 = vmatpush1.msra.mxu0 %v2798
  %4306 = vmatprep.subr.mxu0 %v2802
  %4307 = vmatpush1.msra.mxu0 %v2801
  %4308 = vmatprep.subr.mxu0 %v2805
  %4309 = vmatpush1.msra.mxu0 %v2804
  %4310 = vmatprep.subr.mxu0 0.0
  %4311 = vmatpush1.msra.mxu0 0.0
  %4312 = vmatprep.mubr.f32.mxu0 %v4175
  %4313 = vmatmul.mubr.f32.gmra.mrb[0].mxu0 %v4170
  %v4314 = vpop.f32.mrb[0].mxu0
  %v4315 = vadd.f32 %v4244, %v4314
  %v4316 = vpop.f32.mrb[0].mxu0
  %v4317 = vadd.f32 %v4246, %v4316
  %4318 = vdwg.mxu0
  %4319 = vmatprep.subr.mxu0 0.0
  %4320 = vmatpush1.msra.mxu0 %v2620
  %4321 = vmatprep.subr.mxu0 0.0
  %4322 = vmatpush1.msra.mxu0 %v2623
  %4323 = vmatprep.subr.mxu0 0.0
  %4324 = vmatpush1.msra.mxu0 %v2626
  %4325 = vmatprep.subr.mxu0 0.0
  %4326 = vmatpush1.msra.mxu0 %v2629
  %4327 = vmatprep.subr.mxu0 0.0
  %4328 = vmatpush1.msra.mxu0 %v2632
  %4329 = vmatprep.subr.mxu0 0.0
  %4330 = vmatpush1.msra.mxu0 %v2635
  %4331 = vmatprep.subr.mxu0 0.0
  %4332 = vmatpush1.msra.mxu0 %v2638
  %4333 = vmatprep.subr.mxu0 0.0
  %4334 = vmatpush1.msra.mxu0 %v2641
  %4335 = vmatprep.subr.mxu0 0.0
  %4336 = vmatpush1.msra.mxu0 %v2644
  %4337 = vmatprep.subr.mxu0 0.0
  %4338 = vmatpush1.msra.mxu0 %v2647
  %4339 = vmatprep.subr.mxu0 0.0
  %4340 = vmatpush1.msra.mxu0 %v2650
  %4341 = vmatprep.subr.mxu0 0.0
  %4342 = vmatpush1.msra.mxu0 %v2653
  %4343 = vmatprep.subr.mxu0 0.0
  %4344 = vmatpush1.msra.mxu0 %v2656
  %4345 = vmatprep.subr.mxu0 0.0
  %4346 = vmatpush1.msra.mxu0 %v2659
  %4347 = vmatprep.subr.mxu0 0.0
  %4348 = vmatpush1.msra.mxu0 %v2662
  %4349 = vmatprep.subr.mxu0 0.0
  %4350 = vmatpush1.msra.mxu0 %v2665
  %4351 = vmatprep.subr.mxu0 0.0
  %4352 = vmatpush1.msra.mxu0 %v2668
  %4353 = vmatprep.subr.mxu0 0.0
  %4354 = vmatpush1.msra.mxu0 %v2671
  %4355 = vmatprep.subr.mxu0 0.0
  %4356 = vmatpush1.msra.mxu0 %v2674
  %4357 = vmatprep.subr.mxu0 0.0
  %4358 = vmatpush1.msra.mxu0 %v2677
  %4359 = vmatprep.subr.mxu0 0.0
  %4360 = vmatpush1.msra.mxu0 %v2680
  %4361 = vmatprep.subr.mxu0 0.0
  %4362 = vmatpush1.msra.mxu0 %v2683
  %4363 = vmatprep.subr.mxu0 0.0
  %4364 = vmatpush1.msra.mxu0 %v2686
  %4365 = vmatprep.subr.mxu0 0.0
  %4366 = vmatpush1.msra.mxu0 %v2689
  %4367 = vmatprep.subr.mxu0 0.0
  %4368 = vmatpush1.msra.mxu0 %v2692
  %4369 = vmatprep.subr.mxu0 0.0
  %4370 = vmatpush1.msra.mxu0 %v2695
  %4371 = vmatprep.subr.mxu0 0.0
  %4372 = vmatpush1.msra.mxu0 %v2698
  %4373 = vmatprep.subr.mxu0 0.0
  %4374 = vmatpush1.msra.mxu0 %v2701
  %4375 = vmatprep.subr.mxu0 0.0
  %4376 = vmatpush1.msra.mxu0 %v2704
  %4377 = vmatprep.subr.mxu0 0.0
  %4378 = vmatpush1.msra.mxu0 %v2707
  %4379 = vmatprep.subr.mxu0 0.0
  %4380 = vmatpush1.msra.mxu0 %v2710
  %4381 = vmatprep.subr.mxu0 0.0
  %4382 = vmatpush1.msra.mxu0 %v2713
  %4383 = vmatprep.mubr.f32.mxu0 %v4169
  %4384 = vmatmul.mubr.f32.gmra.mrb[0].mxu0 %v4168
  %v4385 = vpop.f32.mrb[0].mxu0
  %v4386 = vadd.f32 0.0, %v4385
  %v4387 = vpop.f32.mrb[0].mxu0
  %4388 = vdwg.mxu0
  %4389 = vmatprep.subr.mxu0 0.0
  %4390 = vmatpush1.msra.mxu0 %v2716
  %4391 = vmatprep.subr.mxu0 0.0
  %4392 = vmatpush1.msra.mxu0 %v2719
  %4393 = vmatprep.subr.mxu0 0.0
  %4394 = vmatpush1.msra.mxu0 %v2722
  %4395 = vmatprep.subr.mxu0 0.0
  %4396 = vmatpush1.msra.mxu0 %v2725
  %4397 = vmatprep.subr.mxu0 0.0
  %4398 = vmatpush1.msra.mxu0 %v2728
  %4399 = vmatprep.subr.mxu0 0.0
  %4400 = vmatpush1.msra.mxu0 %v2731
  %4401 = vmatprep.subr.mxu0 0.0
  %4402 = vmatpush1.msra.mxu0 %v2734
  %4403 = vmatprep.subr.mxu0 0.0
  %4404 = vmatpush1.msra.mxu0 %v2737
  %4405 = vmatprep.subr.mxu0 0.0
  %4406 = vmatpush1.msra.mxu0 %v2740
  %4407 = vmatprep.subr.mxu0 0.0
  %4408 = vmatpush1.msra.mxu0 %v2743
  %4409 = vmatprep.subr.mxu0 0.0
  %4410 = vmatpush1.msra.mxu0 %v2746
  %4411 = vmatprep.subr.mxu0 0.0
  %4412 = vmatpush1.msra.mxu0 %v2749
  %4413 = vmatprep.subr.mxu0 0.0
  %4414 = vmatpush1.msra.mxu0 %v2752
  %4415 = vmatprep.subr.mxu0 0.0
  %4416 = vmatpush1.msra.mxu0 %v2755
  %4417 = vmatprep.subr.mxu0 0.0
  %4418 = vmatpush1.msra.mxu0 %v2758
  %4419 = vmatprep.subr.mxu0 0.0
  %4420 = vmatpush1.msra.mxu0 %v2761
  %4421 = vmatprep.subr.mxu0 0.0
  %4422 = vmatpush1.msra.mxu0 %v2764
  %4423 = vmatprep.subr.mxu0 0.0
  %4424 = vmatpush1.msra.mxu0 %v2767
  %4425 = vmatprep.subr.mxu0 0.0
  %4426 = vmatpush1.msra.mxu0 %v2770
  %4427 = vmatprep.subr.mxu0 0.0
  %4428 = vmatpush1.msra.mxu0 %v2773
  %4429 = vmatprep.subr.mxu0 0.0
  %4430 = vmatpush1.msra.mxu0 %v2776
  %4431 = vmatprep.subr.mxu0 0.0
  %4432 = vmatpush1.msra.mxu0 %v2779
  %4433 = vmatprep.subr.mxu0 0.0
  %4434 = vmatpush1.msra.mxu0 %v2782
  %4435 = vmatprep.subr.mxu0 0.0
  %4436 = vmatpush1.msra.mxu0 %v2785
  %4437 = vmatprep.subr.mxu0 0.0
  %4438 = vmatpush1.msra.mxu0 %v2788
  %4439 = vmatprep.subr.mxu0 0.0
  %4440 = vmatpush1.msra.mxu0 %v2791
  %4441 = vmatprep.subr.mxu0 0.0
  %4442 = vmatpush1.msra.mxu0 %v2794
  %4443 = vmatprep.subr.mxu0 0.0
  %4444 = vmatpush1.msra.mxu0 %v2797
  %4445 = vmatprep.subr.mxu0 0.0
  %4446 = vmatpush1.msra.mxu0 %v2800
  %4447 = vmatprep.subr.mxu0 0.0
  %4448 = vmatpush1.msra.mxu0 %v2803
  %4449 = vmatprep.subr.mxu0 0.0
  %4450 = vmatpush1.msra.mxu0 %v2806
  %4451 = vmatprep.subr.mxu0 0.0
  %4452 = vmatpush1.msra.mxu0 0.0
  %4453 = vmatprep.mubr.f32.mxu0 %v4175
  %4454 = vmatmul.mubr.f32.gmra.mrb[0].mxu0 %v4170
  %v4455 = vpop.f32.mrb[0].mxu0
  %v4456 = vadd.f32 %v4386, %v4455
  %v4457 = vpop.f32.mrb[0].mxu0
  %4458 = vdwg.mxu0
  %4461 = vrot.lane.b32.xlu0 %v4315, 48
  %v4462 = vpop.permute.xlu0 %4461
  %4463 = vrot.lane.b32.xlu0 %v4317, 48
  %v4464 = vpop.permute.xlu0 %4463
  %v4465 = vsel %vm3104, %v4462, %v4464
  %v4467 = vmax.f32 %v4315, %v4465
  %4469 = vrot.lane.b32.xlu0 %v4456, 48
  %v4470 = vpop.permute.xlu0 %4469
  %v4471 = vsel %vm3104, %v4464, %v4470
  %v4473 = vmax.f32 %v4317, %v4471
  %4475 = vrot.lane.b32.xlu0 %v4473, 96
  %v4476 = vpop.permute.xlu0 %4475
  %v4478 = vmax.f32 %v4467, %v4476
  %v4479 = vadd.f32 %v4478, %v3123
  %v4480 = vmax.f32 %v4479, 0.0
  %4482 = vrot.lane.b32.xlu0 %v4480, 64
  %v4483 = vpop.permute.xlu0 %4482
  %vm4485 = vcmask 1048064
  %4486 = vst.msk [vmem:[#allocation3 + $0x10] sm:$0xff] %vm4485, %v4483
  %vm4487 = vcmask 130048
  %4488 = vst.msk [vmem:[#allocation3 + $0x18] sm:$0xff] %vm4487, %v4483
  %v4489 = vld [vmem:[#allocation3] sm:$0xff]
  %v4490 = vld [vmem:[#allocation3 + $0x8] sm:$0xff]
  %v4491 = vld [vmem:[#allocation3 + $0x10] sm:$0xff]
  %v4492 = vld [vmem:[#allocation3 + $0x18] sm:$0xff]
  %v4493 = vld [vmem:[%s5] sm:$0xff]
  %v4494 = vld [vmem:[%s5 + $0x8] sm:$0xff]
  %v4495 = vld [vmem:[%s5 + $0x10] sm:$0xff]
  %v4496 = vld [vmem:[%s5 + $0x18] sm:$0xff]
  %v4497 = vld [vmem:[%s5 + $0x20] sm:$0xff]
  %v4498 = vld [vmem:[%s5 + $0x28] sm:$0xff]
  %v4499 = vld [vmem:[%s5 + $0x30] sm:$0xff]
  %v4500 = vld [vmem:[%s5 + $0x38] sm:$0xff]
  %v4501 = vld [vmem:[%s5 + $0x40] sm:$0xff]
  %v4502 = vld [vmem:[%s5 + $0x48] sm:$0xff]
  %v4503 = vld [vmem:[%s5 + $0x50] sm:$0xff]
  %v4504 = vld [vmem:[%s5 + $0x58] sm:$0xff]
  %v4505 = vld [vmem:[%s5 + $0x60] sm:$0xff]
  %v4506 = vld [vmem:[%s5 + $0x68] sm:$0xff]
  %v4507 = vld [vmem:[%s5 + $0x70] sm:$0xff]
  %v4508 = vld [vmem:[%s5 + $0x78] sm:$0xff]
  %v4509 = vld [vmem:[%s5 + $0x80] sm:$0xff]
  %v4510 = vld [vmem:[%s5 + $0x88] sm:$0xff]
  %v4511 = vld [vmem:[%s5 + $0x90] sm:$0xff]
  %v4512 = vld [vmem:[%s5 + $0x98] sm:$0xff]
  %v4513 = vld [vmem:[%s5 + $0xa0] sm:$0xff]
  %v4514 = vld [vmem:[%s5 + $0xa8] sm:$0xff]
  %v4515 = vld [vmem:[%s5 + $0xb0] sm:$0xff]
  %v4516 = vld [vmem:[%s5 + $0xb8] sm:$0xff]
  %v4517 = vld [vmem:[%s5 + $0xc0] sm:$0xff]
  %v4518 = vld [vmem:[%s5 + $0xc8] sm:$0xff]
  %v4519 = vld [vmem:[%s5 + $0xd0] sm:$0xff]
  %v4520 = vld [vmem:[%s5 + $0xd8] sm:$0xff]
  %v4521 = vld [vmem:[%s5 + $0xe0] sm:$0xff]
  %v4522 = vld [vmem:[%s5 + $0xe8] sm:$0xff]
  %v4523 = vld [vmem:[%s5 + $0xf0] sm:$0xff]
  %v4524 = vld [vmem:[%s5 + $0xf8] sm:$0xff]
  %v4525 = vld [vmem:[%s5 + $0x100] sm:$0xff]
  %v4526 = vld [vmem:[%s5 + $0x108] sm:$0xff]
  %v4527 = vld [vmem:[%s5 + $0x110] sm:$0xff]
  %v4528 = vld [vmem:[%s5 + $0x118] sm:$0xff]
  %v4529 = vld [vmem:[%s5 + $0x120] sm:$0xff]
  %v4530 = vld [vmem:[%s5 + $0x128] sm:$0xff]
  %v4531 = vld [vmem:[%s5 + $0x130] sm:$0xff]
  %v4532 = vld [vmem:[%s5 + $0x138] sm:$0xff]
  %v4533 = vld [vmem:[%s5 + $0x140] sm:$0xff]
  %v4534 = vld [vmem:[%s5 + $0x148] sm:$0xff]
  %v4535 = vld [vmem:[%s5 + $0x150] sm:$0xff]
  %v4536 = vld [vmem:[%s5 + $0x158] sm:$0xff]
  %v4537 = vld [vmem:[%s5 + $0x160] sm:$0xff]
  %v4538 = vld [vmem:[%s5 + $0x168] sm:$0xff]
  %v4539 = vld [vmem:[%s5 + $0x170] sm:$0xff]
  %v4540 = vld [vmem:[%s5 + $0x178] sm:$0xff]
  %v4541 = vld [vmem:[%s5 + $0x180] sm:$0xff]
  %v4542 = vld [vmem:[%s5 + $0x188] sm:$0xff]
  %v4543 = vld [vmem:[%s6] sm:$0x1]
  %v4545 = vlaneseq
  %v4546 = vshrl.u32 %v4545, 7
  %v4547 = vsub.s32 0, %v4546
  %v4548 = vrot.slane %v4543, %v4547
  %v4551 = vsel %vm4487, %v4492, 0
  %4553 = vmatprep.subr.mxu0 0.0
  %4554 = vmatpush1.msra.mxu0 %v4493
  %4555 = vmatprep.subr.mxu0 0.0
  %4556 = vmatpush1.msra.mxu0 %v4494
  %4557 = vmatprep.subr.mxu0 0.0
  %4558 = vmatpush1.msra.mxu0 %v4495
  %4559 = vmatprep.subr.mxu0 0.0
  %4560 = vmatpush1.msra.mxu0 %v4496
  %4561 = vmatprep.subr.mxu0 0.0
  %4562 = vmatpush1.msra.mxu0 %v4497
  %4563 = vmatprep.subr.mxu0 0.0
  %4564 = vmatpush1.msra.mxu0 %v4498
  %4565 = vmatprep.subr.mxu0 0.0
  %4566 = vmatpush1.msra.mxu0 %v4499
  %4567 = vmatprep.subr.mxu0 0.0
  %4568 = vmatpush1.msra.mxu0 %v4500
  %4569 = vmatprep.subr.mxu0 0.0
  %4570 = vmatpush1.msra.mxu0 %v4501
  %4571 = vmatprep.subr.mxu0 0.0
  %4572 = vmatpush1.msra.mxu0 %v4502
  %4573 = vmatprep.subr.mxu0 0.0
  %4574 = vmatpush1.msra.mxu0 %v4503
  %4575 = vmatprep.subr.mxu0 0.0
  %4576 = vmatpush1.msra.mxu0 %v4504
  %4577 = vmatprep.subr.mxu0 0.0
  %4578 = vmatpush1.msra.mxu0 %v4505
  %4579 = vmatprep.subr.mxu0 0.0
  %4580 = vmatpush1.msra.mxu0 %v4506
  %4581 = vmatprep.subr.mxu0 0.0
  %4582 = vmatpush1.msra.mxu0 %v4507
  %4583 = vmatprep.subr.mxu0 0.0
  %4584 = vmatpush1.msra.mxu0 %v4508
  %4585 = vmatprep.subr.mxu0 0.0
  %4586 = vmatpush1.msra.mxu0 %v4509
  %4587 = vmatprep.subr.mxu0 0.0
  %4588 = vmatpush1.msra.mxu0 %v4510
  %4589 = vmatprep.subr.mxu0 0.0
  %4590 = vmatpush1.msra.mxu0 %v4511
  %4591 = vmatprep.subr.mxu0 0.0
  %4592 = vmatpush1.msra.mxu0 %v4512
  %4593 = vmatprep.subr.mxu0 0.0
  %4594 = vmatpush1.msra.mxu0 %v4513
  %4595 = vmatprep.subr.mxu0 0.0
  %4596 = vmatpush1.msra.mxu0 %v4514
  %4597 = vmatprep.subr.mxu0 0.0
  %4598 = vmatpush1.msra.mxu0 %v4515
  %4599 = vmatprep.subr.mxu0 0.0
  %4600 = vmatpush1.msra.mxu0 %v4516
  %4601 = vmatprep.subr.mxu0 0.0
  %4602 = vmatpush1.msra.mxu0 %v4517
  %4603 = vmatprep.subr.mxu0 0.0
  %4604 = vmatpush1.msra.mxu0 %v4518
  %4605 = vmatprep.subr.mxu0 0.0
  %4606 = vmatpush1.msra.mxu0 %v4519
  %4607 = vmatprep.subr.mxu0 0.0
  %4608 = vmatpush1.msra.mxu0 %v4520
  %4609 = vmatprep.subr.mxu0 0.0
  %4610 = vmatpush1.msra.mxu0 %v4521
  %4611 = vmatprep.subr.mxu0 0.0
  %4612 = vmatpush1.msra.mxu0 %v4522
  %4613 = vmatprep.subr.mxu0 0.0
  %4614 = vmatpush1.msra.mxu0 %v4523
  %4615 = vmatprep.subr.mxu0 0.0
  %4616 = vmatpush1.msra.mxu0 %v4524
  %4617 = vmatprep.mubr.f32.mxu0 %v4490
  %4618 = vmatmul.mubr.f32.gmra.mrb[0].mxu0 %v4489
  %v4619 = vpop.f32.mrb[0].mxu0
  %v4620 = vadd.f32 %v4548, %v4619
  %v4621 = vpop.f32.mrb[0].mxu0
  %4622 = vdwg.mxu0
  %4623 = vmatprep.subr.mxu0 0.0
  %4624 = vmatpush1.msra.mxu0 %v4525
  %4625 = vmatprep.subr.mxu0 0.0
  %4626 = vmatpush1.msra.mxu0 %v4526
  %4627 = vmatprep.subr.mxu0 0.0
  %4628 = vmatpush1.msra.mxu0 %v4527
  %4629 = vmatprep.subr.mxu0 0.0
  %4630 = vmatpush1.msra.mxu0 %v4528
  %4631 = vmatprep.subr.mxu0 0.0
  %4632 = vmatpush1.msra.mxu0 %v4529
  %4633 = vmatprep.subr.mxu0 0.0
  %4634 = vmatpush1.msra.mxu0 %v4530
  %4635 = vmatprep.subr.mxu0 0.0
  %4636 = vmatpush1.msra.mxu0 %v4531
  %4637 = vmatprep.subr.mxu0 0.0
  %4638 = vmatpush1.msra.mxu0 %v4532
  %4639 = vmatprep.subr.mxu0 0.0
  %4640 = vmatpush1.msra.mxu0 %v4533
  %4641 = vmatprep.subr.mxu0 0.0
  %4642 = vmatpush1.msra.mxu0 %v4534
  %4643 = vmatprep.subr.mxu0 0.0
  %4644 = vmatpush1.msra.mxu0 %v4535
  %4645 = vmatprep.subr.mxu0 0.0
  %4646 = vmatpush1.msra.mxu0 %v4536
  %4647 = vmatprep.subr.mxu0 0.0
  %4648 = vmatpush1.msra.mxu0 %v4537
  %4649 = vmatprep.subr.mxu0 0.0
  %4650 = vmatpush1.msra.mxu0 %v4538
  %4651 = vmatprep.subr.mxu0 0.0
  %4652 = vmatpush1.msra.mxu0 %v4539
  %4653 = vmatprep.subr.mxu0 0.0
  %4654 = vmatpush1.msra.mxu0 %v4540
  %4655 = vmatprep.subr.mxu0 0.0
  %4656 = vmatpush1.msra.mxu0 %v4541
  %4657 = vmatprep.subr.mxu0 0.0
  %4658 = vmatpush1.msra.mxu0 %v4542
  %4659 = vmatprep.subr.mxu0 0.0
  %4660 = vmatpush1.msra.mxu0 0.0
  %4661 = vmatprep.subr.mxu0 0.0
  %4662 = vmatpush1.msra.mxu0 0.0
  %4663 = vmatprep.subr.mxu0 0.0
  %4664 = vmatpush1.msra.mxu0 0.0
  %4665 = vmatprep.subr.mxu0 0.0
  %4666 = vmatpush1.msra.mxu0 0.0
  %4667 = vmatprep.subr.mxu0 0.0
  %4668 = vmatpush1.msra.mxu0 0.0
  %4669 = vmatprep.subr.mxu0 0.0
  %4670 = vmatpush1.msra.mxu0 0.0
  %4671 = vmatprep.subr.mxu0 0.0
  %4672 = vmatpush1.msra.mxu0 0.0
  %4673 = vmatprep.subr.mxu0 0.0
  %4674 = vmatpush1.msra.mxu0 0.0
  %4675 = vmatprep.subr.mxu0 0.0
  %4676 = vmatpush1.msra.mxu0 0.0
  %4677 = vmatprep.subr.mxu0 0.0
  %4678 = vmatpush1.msra.mxu0 0.0
  %4679 = vmatprep.subr.mxu0 0.0
  %4680 = vmatpush1.msra.mxu0 0.0
  %4681 = vmatprep.subr.mxu0 0.0
  %4682 = vmatpush1.msra.mxu0 0.0
  %4683 = vmatprep.subr.mxu0 0.0
  %4684 = vmatpush1.msra.mxu0 0.0
  %4685 = vmatprep.subr.mxu0 0.0
  %4686 = vmatpush1.msra.mxu0 0.0
  %4687 = vmatprep.mubr.f32.mxu0 %v4551
  %4688 = vmatmul.mubr.f32.gmra.mrb[0].mxu0 %v4491
  %v4689 = vpop.f32.mrb[0].mxu0
  %v4690 = vadd.f32 %v4620, %v4689
  %v4691 = vpop.f32.mrb[0].mxu0
  %4692 = vdwg.mxu0
  %v4693 = vmax.f32 %v4690, 0.0
  %v4694 = vld [vmem:[%s7] sm:$0xff]
  %v4695 = vld [vmem:[%s7 + $0x8] sm:$0xff]
  %v4696 = vld [vmem:[%s7 + $0x10] sm:$0xff]
  %v4697 = vld [vmem:[%s7 + $0x18] sm:$0xff]
  %v4698 = vld [vmem:[%s7 + $0x20] sm:$0xff]
  %v4699 = vld [vmem:[%s7 + $0x28] sm:$0xff]
  %v4700 = vld [vmem:[%s7 + $0x30] sm:$0xff]
  %v4701 = vld [vmem:[%s7 + $0x38] sm:$0xff]
  %v4702 = vld [vmem:[%s7 + $0x40] sm:$0xff]
  %v4703 = vld [vmem:[%s7 + $0x48] sm:$0xff]
  %v4704 = vld [vmem:[%s7 + $0x50] sm:$0xff]
  %v4705 = vld [vmem:[%s7 + $0x58] sm:$0xff]
  %v4706 = vld [vmem:[%s7 + $0x60] sm:$0xff]
  %v4707 = vld [vmem:[%s7 + $0x68] sm:$0xff]
  %v4708 = vld [vmem:[%s7 + $0x70] sm:$0xff]
  %v4709 = vld [vmem:[%s7 + $0x78] sm:$0xff]
  %v4710 = vld [vmem:[%s8] sm:$0x1]
  %v4712 = vlaneseq
  %v4713 = vshrl.u32 %v4712, 7
  %v4714 = vsub.s32 0, %v4713
  %v4715 = vrot.slane %v4710, %v4714
  %4717 = vmatprep.subr.mxu0 0.0
  %4718 = vmatpush1.msra.mxu0 %v4694
  %4719 = vmatprep.subr.mxu0 0.0
  %4720 = vmatpush1.msra.mxu0 %v4695
  %4721 = vmatprep.subr.mxu0 0.0
  %4722 = vmatpush1.msra.mxu0 %v4696
  %4723 = vmatprep.subr.mxu0 0.0
  %4724 = vmatpush1.msra.mxu0 %v4697
  %4725 = vmatprep.subr.mxu0 0.0
  %4726 = vmatpush1.msra.mxu0 %v4698
  %4727 = vmatprep.subr.mxu0 0.0
  %4728 = vmatpush1.msra.mxu0 %v4699
  %4729 = vmatprep.subr.mxu0 0.0
  %4730 = vmatpush1.msra.mxu0 %v4700
  %4731 = vmatprep.subr.mxu0 0.0
  %4732 = vmatpush1.msra.mxu0 %v4701
  %4733 = vmatprep.subr.mxu0 0.0
  %4734 = vmatpush1.msra.mxu0 %v4702
  %4735 = vmatprep.subr.mxu0 0.0
  %4736 = vmatpush1.msra.mxu0 %v4703
  %4737 = vmatprep.subr.mxu0 0.0
  %4738 = vmatpush1.msra.mxu0 %v4704
  %4739 = vmatprep.subr.mxu0 0.0
  %4740 = vmatpush1.msra.mxu0 %v4705
  %4741 = vmatprep.subr.mxu0 0.0
  %4742 = vmatpush1.msra.mxu0 %v4706
  %4743 = vmatprep.subr.mxu0 0.0
  %4744 = vmatpush1.msra.mxu0 %v4707
  %4745 = vmatprep.subr.mxu0 0.0
  %4746 = vmatpush1.msra.mxu0 %v4708
  %4747 = vmatprep.subr.mxu0 0.0
  %4748 = vmatpush1.msra.mxu0 %v4709
  %4749 = vmatprep.subr.mxu0 0.0
  %4750 = vmatpush1.msra.mxu0 0.0
  %4751 = vmatprep.subr.mxu0 0.0
  %4752 = vmatpush1.msra.mxu0 0.0
  %4753 = vmatprep.subr.mxu0 0.0
  %4754 = vmatpush1.msra.mxu0 0.0
  %4755 = vmatprep.subr.mxu0 0.0
  %4756 = vmatpush1.msra.mxu0 0.0
  %4757 = vmatprep.subr.mxu0 0.0
  %4758 = vmatpush1.msra.mxu0 0.0
  %4759 = vmatprep.subr.mxu0 0.0
  %4760 = vmatpush1.msra.mxu0 0.0
  %4761 = vmatprep.subr.mxu0 0.0
  %4762 = vmatpush1.msra.mxu0 0.0
  %4763 = vmatprep.subr.mxu0 0.0
  %4764 = vmatpush1.msra.mxu0 0.0
  %4765 = vmatprep.subr.mxu0 0.0
  %4766 = vmatpush1.msra.mxu0 0.0
  %4767 = vmatprep.subr.mxu0 0.0
  %4768 = vmatpush1.msra.mxu0 0.0
  %4769 = vmatprep.subr.mxu0 0.0
  %4770 = vmatpush1.msra.mxu0 0.0
  %4771 = vmatprep.subr.mxu0 0.0
  %4772 = vmatpush1.msra.mxu0 0.0
  %4773 = vmatprep.subr.mxu0 0.0
  %4774 = vmatpush1.msra.mxu0 0.0
  %4775 = vmatprep.subr.mxu0 0.0
  %4776 = vmatpush1.msra.mxu0 0.0
  %4777 = vmatprep.subr.mxu0 0.0
  %4778 = vmatpush1.msra.mxu0 0.0
  %4779 = vmatprep.subr.mxu0 0.0
  %4780 = vmatpush1.msra.mxu0 0.0
  %4781 = vmatprep.mubr.f32.mxu0 0.0
  %4782 = vmatmul.mubr.f32.gmra.mrb[0].mxu0 %v4693
  %v4783 = vpop.f32.mrb[0].mxu0
  %v4784 = vadd.f32 %v4715, %v4783
  %v4785 = vpop.f32.mrb[0].mxu0
  %4786 = vdwg.mxu0
  %v4787 = vmax.f32 %v4784, 0.0
  %v4788 = vld [vmem:[%s9] sm:$0xff]
  %v4789 = vld [vmem:[%s9 + $0x8] sm:$0xff]
  %v4790 = vld [vmem:[%s9 + $0x10] sm:$0xff]
  %v4791 = vld [vmem:[%s9 + $0x18] sm:$0xff]
  %v4792 = vld [vmem:[%s9 + $0x20] sm:$0xff]
  %v4793 = vld [vmem:[%s9 + $0x28] sm:$0xff]
  %v4794 = vld [vmem:[%s9 + $0x30] sm:$0xff]
  %v4795 = vld [vmem:[%s9 + $0x38] sm:$0xff]
  %v4796 = vld [vmem:[%s9 + $0x40] sm:$0xff]
  %v4797 = vld [vmem:[%s9 + $0x48] sm:$0xff]
  %v4798 = vld [vmem:[%s9 + $0x50] sm:$0xff]
  %v4799 = vld [vmem:[%s9 + $0x58] sm:$0xff]
  %v4800 = vld [vmem:[%s9 + $0x60] sm:$0xff]
  %v4801 = vld [vmem:[%s9 + $0x68] sm:$0xff]
  %v4802 = vld [vmem:[%s9 + $0x70] sm:$0xff]
  %v4803 = vld [vmem:[%s9 + $0x78] sm:$0xff]
  %v4804 = vld [vmem:[%s10] sm:$0x1]
  %v4806 = vlaneseq
  %v4807 = vshrl.u32 %v4806, 7
  %v4808 = vsub.s32 0, %v4807
  %v4809 = vrot.slane %v4804, %v4808
  %4811 = vmatprep.subr.mxu0 0.0
  %4812 = vmatpush1.msra.mxu0 %v4788
  %4813 = vmatprep.subr.mxu0 0.0
  %4814 = vmatpush1.msra.mxu0 %v4789
  %4815 = vmatprep.subr.mxu0 0.0
  %4816 = vmatpush1.msra.mxu0 %v4790
  %4817 = vmatprep.subr.mxu0 0.0
  %4818 = vmatpush1.msra.mxu0 %v4791
  %4819 = vmatprep.subr.mxu0 0.0
  %4820 = vmatpush1.msra.mxu0 %v4792
  %4821 = vmatprep.subr.mxu0 0.0
  %4822 = vmatpush1.msra.mxu0 %v4793
  %4823 = vmatprep.subr.mxu0 0.0
  %4824 = vmatpush1.msra.mxu0 %v4794
  %4825 = vmatprep.subr.mxu0 0.0
  %4826 = vmatpush1.msra.mxu0 %v4795
  %4827 = vmatprep.subr.mxu0 0.0
  %4828 = vmatpush1.msra.mxu0 %v4796
  %4829 = vmatprep.subr.mxu0 0.0
  %4830 = vmatpush1.msra.mxu0 %v4797
  %4831 = vmatprep.subr.mxu0 0.0
  %4832 = vmatpush1.msra.mxu0 %v4798
  %4833 = vmatprep.subr.mxu0 0.0
  %4834 = vmatpush1.msra.mxu0 %v4799
  %4835 = vmatprep.subr.mxu0 0.0
  %4836 = vmatpush1.msra.mxu0 %v4800
  %4837 = vmatprep.subr.mxu0 0.0
  %4838 = vmatpush1.msra.mxu0 %v4801
  %4839 = vmatprep.subr.mxu0 0.0
  %4840 = vmatpush1.msra.mxu0 %v4802
  %4841 = vmatprep.subr.mxu0 0.0
  %4842 = vmatpush1.msra.mxu0 %v4803
  %4843 = vmatprep.subr.mxu0 0.0
  %4844 = vmatpush1.msra.mxu0 0.0
  %4845 = vmatprep.subr.mxu0 0.0
  %4846 = vmatpush1.msra.mxu0 0.0
  %4847 = vmatprep.subr.mxu0 0.0
  %4848 = vmatpush1.msra.mxu0 0.0
  %4849 = vmatprep.subr.mxu0 0.0
  %4850 = vmatpush1.msra.mxu0 0.0
  %4851 = vmatprep.subr.mxu0 0.0
  %4852 = vmatpush1.msra.mxu0 0.0
  %4853 = vmatprep.subr.mxu0 0.0
  %4854 = vmatpush1.msra.mxu0 0.0
  %4855 = vmatprep.subr.mxu0 0.0
  %4856 = vmatpush1.msra.mxu0 0.0
  %4857 = vmatprep.subr.mxu0 0.0
  %4858 = vmatpush1.msra.mxu0 0.0
  %4859 = vmatprep.subr.mxu0 0.0
  %4860 = vmatpush1.msra.mxu0 0.0
  %4861 = vmatprep.subr.mxu0 0.0
  %4862 = vmatpush1.msra.mxu0 0.0
  %4863 = vmatprep.subr.mxu0 0.0
  %4864 = vmatpush1.msra.mxu0 0.0
  %4865 = vmatprep.subr.mxu0 0.0
  %4866 = vmatpush1.msra.mxu0 0.0
  %4867 = vmatprep.subr.mxu0 0.0
  %4868 = vmatpush1.msra.mxu0 0.0
  %4869 = vmatprep.subr.mxu0 0.0
  %4870 = vmatpush1.msra.mxu0 0.0
  %4871 = vmatprep.subr.mxu0 0.0
  %4872 = vmatpush1.msra.mxu0 0.0
  %4873 = vmatprep.subr.mxu0 0.0
  %4874 = vmatpush1.msra.mxu0 0.0
  %4875 = vmatprep.mubr.f32.mxu0 0.0
  %4876 = vmatmul.mubr.f32.gmra.mrb[0].mxu0 %v4787
  %v4877 = vpop.f32.mrb[0].mxu0
  %v4878 = vadd.f32 %v4809, %v4877
  %v4879 = vpop.f32.mrb[0].mxu0
  %4880 = vdwg.mxu0
  %4881 = vst [vmem:[%s11] sm:$0xff] %v4878
  // Predicated region
  $region46: #{lenet_forward.1} parent=0 // pred_check
    _
  $region47: #{lenet_forward.1} parent=0 // pred_check_branch
    %4883 = sbr.rel (0) target = $region49
  $region48: #{lenet_forward.1} parent=0 // pred_region
    _
  $region49: #{lenet_forward.1} parent=0 // pred_fallthru
    _
  // Predicated region
  $region50: #{lenet_forward.1} parent=0 // pred_check
    _
  $region51: #{lenet_forward.1} parent=0 // pred_check_branch
    %4885 = sbr.rel (0) target = $region53
  $region52: #{lenet_forward.1} parent=0 // pred_region
    _
  $region53: #{lenet_forward.1} parent=0 // pred_fallthru
    _

</llo_original>
